<compile_context>
chip_gen: v6e
topology: v6e:2x2x1
jax: 0.10.0
libtpu: 0.0.40
codegen_flags: <defaults>
</compile_context>

<pallas_src>
import jax
import jax.numpy as jnp
import numpy as np
from jax.experimental import pallas as pl
from jax.experimental.pallas import tpu as pltpu

LANE = 128          # lane width used for padding / column alignment
FP = 128            # padded feature width inside the state slab
SW = 2 * FP         # state slab width: [feats(128) | coors(3)+pad(125)]

# rows of the vector slab
R_EB1, R_EB2, R_CB1, R_CB2, R_NB1, R_NB2, R_FCB, R_WD, R_CW2 = range(9)
R_WE = 9            # rows R_WE .. R_WE+E-1 hold ew1_e[e]


def _rup(x, m):
    return (x + m - 1) // m * m


def _silu(x):
    return x * jax.nn.sigmoid(x)


# ----------------------------------------------------------------------------
# Parameter packing: 18 arrays -> 2 grid-invariant VMEM slabs + static offsets.
# ----------------------------------------------------------------------------
def pack_egnn_linear_params(p, d, edge_dim, m_dim, out_dim):
    E = edge_dim
    H1 = 2 * (2 * d + 1 + E)
    assert max(d, H1, m_dim, 4 * m_dim, 2 * d, out_dim) <= LANE, \
        "this packing assumes every MLP width <= 128"

    # matrix slab: rows [0:K] of each matrix, columns in 128-aligned segments.
    # fi | fj | nf must come first & contiguously (fused feats matmul).
    mats = [
        ("fi",   p["ew1_fi"]),   # (d, H1)
        ("fj",   p["ew1_fj"]),   # (d, H1)
        ("nf",   p["nw1_f"]),    # (d, 2d)
        ("ew2",  p["ew2"]),      # (H1, m)
        ("cw1",  p["cw1"]),      # (m, 4m)
        ("nw1m", p["nw1_m"]),    # (m, 2d)
        ("nw2",  p["nw2"]),      # (2d, d)
        ("fc",   p["fc_w"]),     # (d, out)
    ]
    offs, col = {}, 0
    for name, w in mats:
        offs[name] = col
        col += _rup(w.shape[1], LANE)
    wslab = np.zeros((LANE, col), np.float32)
    for name, w in mats:
        w = np.asarray(w, np.float32)
        wslab[: w.shape[0], offs[name]: offs[name] + w.shape[1]] = w

    # vector slab: one (zero-padded) vector per row.
    vecs = [p["eb1"][0], p["eb2"][0], p["cb1"][0], p["cb2"][0],
            p["nb1"][0], p["nb2"][0], p["fc_b"][0],
            p["ew1_d"][0], p["cw2"][:, 0]]
    vecs += [p["ew1_e"][e] for e in range(E)]
    vslab = np.zeros((len(vecs), LANE), np.float32)
    for r, v in enumerate(vecs):
        v = np.asarray(v, np.float32)
        vslab[r, : v.shape[0]] = v

    cfg = dict(d=d, E=E, H1=H1, m=m_dim, out=out_dim, offs=offs)
    return dict(wslab=jnp.asarray(wslab), vslab=jnp.asarray(vslab), cfg=cfg)


def pack_state(feats, coors):
    B, N, d = feats.shape
    assert d <= FP
    state = jnp.zeros((B, N, SW), jnp.float32)
    state = state.at[:, :, :d].set(feats.astype(jnp.float32))
    state = state.at[:, :, FP:FP + 3].set(coors.astype(jnp.float32))
    return state


# ----------------------------------------------------------------------------
# Pallas kernel: one EGNN layer + trailing Linear, Bt graphs per grid step.
# ----------------------------------------------------------------------------
def _make_kernel(cfg):
    d, E, H1, m, out_dim = cfg["d"], cfg["E"], cfg["H1"], cfg["m"], cfg["out"]
    offs = cfg["offs"]
    assert offs["fi"] == 0
    fused_cols = offs["nf"] + _rup(2 * d, LANE)      # fi | fj | nf segments
    o_fj, o_nf = offs["fj"], offs["nf"]
    o_ew2, o_cw1, o_nw1m, o_nw2, o_fc = (offs["ew2"], offs["cw1"],
                                         offs["nw1m"], offs["nw2"], offs["fc"])

    def kernel(state_ref, edges_ref, w_ref, v_ref, out_ref):
        Bt, N = state_ref.shape[0], state_ref.shape[1]
        state = state_ref[...]                              # (Bt, N, 256)
        feats = state[:, :, :FP]                            # (Bt, N, 128) zero-padded
        coors = state[:, :, FP:FP + 3]                      # (Bt, N, 3)
        fr = feats.reshape(Bt * N, FP)

        # ---- fused feature projection: [fi | fj | node-MLP feat part] ----
        proj = jnp.dot(fr, w_ref[0:FP, 0:fused_cols],
                       preferred_element_type=jnp.float32)  # (Bt*N, fused_cols)
        fi = proj[:, 0:H1].reshape(Bt, N, H1)
        fj = proj[:, o_fj:o_fj + H1].reshape(Bt, N, H1)
        nf = proj[:, o_nf:o_nf + 2 * d]                     # (Bt*N, 2d)

        # ---- pairwise squared distances (per-channel VPU MACs, no (N,N,3)) ----
        sq = jnp.sum(coors * coors, axis=-1, keepdims=True)          # (Bt,N,1)
        cross = coors[:, :, None, 0:1] * coors[:, None, :, 0:1]
        for c in range(1, 3):
            cross = cross + coors[:, :, None, c:c + 1] * coors[:, None, :, c:c + 1]
        rel4 = sq[:, :, None, :] + sq[:, None, :, :] - 2.0 * cross   # (Bt,N,N,1)

        # ---- edge MLP layer 1: broadcast adds + E rank-1 VPU MACs ----
        wd = v_ref[R_WD:R_WD + 1, 0:H1].reshape(1, 1, 1, H1)
        eb1 = v_ref[R_EB1:R_EB1 + 1, 0:H1].reshape(1, 1, 1, H1)
        h1 = fi[:, :, None, :] + fj[:, None, :, :] + rel4 * wd + eb1
        edges = edges_ref[...]                                       # (Bt,N,N,E)
        for e in range(E):
            we = v_ref[R_WE + e:R_WE + e + 1, 0:H1].reshape(1, 1, 1, H1)
            h1 = h1 + edges[:, :, :, e:e + 1] * we
        h1 = _silu(h1)                                               # (Bt,N,N,H1)

        # ---- edge MLP layer 2 -> messages m_ij ----
        eb2 = v_ref[R_EB2:R_EB2 + 1, 0:m]
        mij = _silu(jnp.dot(h1.reshape(Bt * N * N, H1),
                            w_ref[0:H1, o_ew2:o_ew2 + m],
                            preferred_element_type=jnp.float32) + eb2)   # (Bt*N*N, m)

        # ---- coors MLP: hidden layer on MXU, width-1 output as mul + lane reduce ----
        cb1 = v_ref[R_CB1:R_CB1 + 1, 0:4 * m]
        c1 = _silu(jnp.dot(mij, w_ref[0:m, o_cw1:o_cw1 + 4 * m],
                           preferred_element_type=jnp.float32) + cb1)    # (Bt*N*N, 4m)
        cw2 = v_ref[R_CW2:R_CW2 + 1, 0:4 * m].reshape(1, 1, 1, 4 * m)
        cb2 = v_ref[R_CB2:R_CB2 + 1, 0:1]                                # (1,1)
        cw4 = jnp.sum(c1.reshape(Bt, N, N, 4 * m) * cw2,
                      axis=-1, keepdims=True) + cb2                      # (Bt,N,N,1)

        # ---- coordinate update: sum_j w_ij (x_i - x_j) = S*x_i - sum_j w_ij x_j ----
        S = jnp.sum(cw4, axis=2)                                         # (Bt,N,1)
        cparts = []
        for c in range(3):
            xc = coors[:, :, c:c + 1]                                    # (Bt,N,1)
            Ac = jnp.sum(cw4 * xc[:, None, :, :], axis=2)                # (Bt,N,1)
            cparts.append(xc + S * xc - Ac)
        coors_out = jnp.concatenate(cparts, axis=-1)                     # (Bt,N,3)

        # ---- node MLP (+residual) and trailing Linear (fc / fc1) ----
        m_i = jnp.sum(mij.reshape(Bt, N, N, m), axis=2).reshape(Bt * N, m)
        nb1 = v_ref[R_NB1:R_NB1 + 1, 0:2 * d]
        nh = _silu(jnp.dot(m_i, w_ref[0:m, o_nw1m:o_nw1m + 2 * d],
                           preferred_element_type=jnp.float32) + nf + nb1)
        nb2 = v_ref[R_NB2:R_NB2 + 1, 0:d]
        node = (jnp.dot(nh, w_ref[0:2 * d, o_nw2:o_nw2 + d],
                        preferred_element_type=jnp.float32) + nb2 + fr[:, 0:d])
        fcb = v_ref[R_FCB:R_FCB + 1, 0:FP]                               # zero-padded
        y = jnp.dot(node, w_ref[0:d, o_fc:o_fc + FP],
                    preferred_element_type=jnp.float32) + fcb            # (Bt*N, 128)

        # ---- lane-dense output slab stores (128-aligned dense vst) ----
        out_ref[:, :, 0:FP] = y.reshape(Bt, N, FP).astype(out_ref.dtype)
        out_ref[:, :, FP:SW] = jnp.concatenate(
            [coors_out, jnp.zeros((Bt, N, FP - 3), jnp.float32)], axis=-1
        ).astype(out_ref.dtype)

    return kernel


def egnn_linear_pallas(state, edges, layer):
    wslab, vslab, cfg = layer["wslab"], layer["vslab"], layer["cfg"]
    B, N, _ = state.shape
    E = edges.shape[-1]

    # batch block: fold as many graphs per program as VMEM allows, but keep >=2
    # grid steps when B >= 2 so both v7x TensorCores get work.
    per_graph = N * N * (cfg["H1"] + 6 * cfg["m"] + cfg["E"] + 8) * 4
    cap = max(1, (6 << 20) // max(per_graph, 1))
    target_steps = 2 if B >= 2 else 1
    bt = max(1, min(cap, -(-B // target_steps)))
    nblk = -(-B // bt)
    Bp = nblk * bt
    if Bp != B:
        state = jnp.pad(state, ((0, Bp - B), (0, 0), (0, 0)))
        edges = jnp.pad(edges, ((0, Bp - B), (0, 0), (0, 0), (0, 0)))

    kernel = _make_kernel(cfg)
    out = pl.pallas_call(
        kernel,
        grid=(nblk,),
        in_specs=[
            pl.BlockSpec((bt, N, SW), lambda b: (b, 0, 0)),
            pl.BlockSpec((bt, N, N, E), lambda b: (b, 0, 0, 0)),
            pl.BlockSpec(wslab.shape, lambda b: (0, 0)),     # grid-invariant slab
            pl.BlockSpec(vslab.shape, lambda b: (0, 0)),     # grid-invariant slab
        ],
        out_specs=pl.BlockSpec((bt, N, SW), lambda b: (b, 0, 0)),
        out_shape=jax.ShapeDtypeStruct((Bp, N, SW), jnp.float32),
        compiler_params=pltpu.CompilerParams(
            dimension_semantics=("parallel",),
            vmem_limit_bytes=32 << 20),
    )(state, edges, wslab, vslab)
    return out[:B]


def gae_forward_pallas(feats, coors, edge_attr, packed):
    state = pack_state(feats, coors)
    state = egnn_linear_pallas(state, edge_attr, packed["enc"])   # egnn1 + fc
    state = egnn_linear_pallas(state, edge_attr, packed["dec"])   # egnn4 + fc1
    return state[..., : packed["dec"]["cfg"]["out"]]


# ----------------------------------------------------------------------------
# Deterministic parameter init (synthetic; shapes follow the PyTorch module).
# ----------------------------------------------------------------------------
def _linear_params(key, fan_in, fan_out, scale=0.1):
    wk, bk = jax.random.split(key)
    w = scale * jax.random.normal(wk, (fan_in, fan_out), jnp.float32)
    b = scale * jax.random.normal(bk, (1, fan_out), jnp.float32)
    return w, b


def init_egnn_linear_params(key, dim, edge_dim, m_dim, out_dim):
    ks = jax.random.split(key, 7)
    edge_in = 2 * dim + 1 + edge_dim
    edge_hidden = 2 * edge_in
    ew1, eb1 = _linear_params(ks[0], edge_in, edge_hidden)
    ew2, eb2 = _linear_params(ks[1], edge_hidden, m_dim)
    cw1, cb1 = _linear_params(ks[2], m_dim, 4 * m_dim)
    cw2, cb2 = _linear_params(ks[3], 4 * m_dim, 1)
    nw1, nb1 = _linear_params(ks[4], dim + m_dim, 2 * dim)
    nw2, nb2 = _linear_params(ks[5], 2 * dim, dim)
    fcw, fcb = _linear_params(ks[6], dim, out_dim)
    return dict(
        ew1_fi=ew1[:dim], ew1_fj=ew1[dim:2 * dim],
        ew1_d=ew1[2 * dim:2 * dim + 1], ew1_e=ew1[2 * dim + 1:], eb1=eb1,
        ew2=ew2, eb2=eb2,
        cw1=cw1, cb1=cb1, cw2=cw2, cb2=cb2,
        nw1_f=nw1[:dim], nw1_m=nw1[dim:], nb1=nb1, nw2=nw2, nb2=nb2,
        fc_w=fcw, fc_b=fcb,
    )


# ----------------------------------------------------------------------------
# Pure-JAX reference (same math, dense, for correctness check).
# ----------------------------------------------------------------------------
def egnn_linear_ref(feats, coors, edges, p):
    B, N, d = feats.shape
    rel = coors[:, :, None, :] - coors[:, None, :, :]
    rel_dist = jnp.sum(rel * rel, axis=-1, keepdims=True)
    fi = jnp.broadcast_to(feats[:, :, None, :], (B, N, N, d))
    fj = jnp.broadcast_to(feats[:, None, :, :], (B, N, N, d))
    edge_in = jnp.concatenate([fi, fj, rel_dist, edges], axis=-1)
    w1 = jnp.concatenate([p["ew1_fi"], p["ew1_fj"], p["ew1_d"], p["ew1_e"]], axis=0)
    h1 = _silu(edge_in @ w1 + p["eb1"][0])
    m_ij = _silu(h1 @ p["ew2"] + p["eb2"][0])
    c1 = _silu(m_ij @ p["cw1"] + p["cb1"][0])
    cw = (c1 @ p["cw2"] + p["cb2"][0])[..., 0]
    coors_out = jnp.einsum("bij,bijc->bic", cw, rel) + coors
    m_i = m_ij.sum(axis=2)
    nw1 = jnp.concatenate([p["nw1_f"], p["nw1_m"]], axis=0)
    nh = _silu(jnp.concatenate([feats, m_i], axis=-1) @ nw1 + p["nb1"][0])
    node_out = nh @ p["nw2"] + p["nb2"][0] + feats
    out = node_out @ p["fc_w"] + p["fc_b"][0]
    return out, coors_out


def gae_forward_ref(feats, coors, edge_attr, params):
    x_enc, coors1 = egnn_linear_ref(feats, coors, edge_attr, params["enc"])
    x_hat, _ = egnn_linear_ref(x_enc, coors1, edge_attr, params["dec"])
    return x_hat


if __name__ == "__main__":
    key = jax.random.PRNGKey(0)
    B, N = 2, 16
    NUM_NODE_FEAT = 26     # 20 residue classes + 6 extra features (matches x[..., :-6])
    OUTPUT_FEAT = 20
    HIDDEN_DIM = 32
    LATENT_DIM = 16
    EDGE_DIM = 4

    kf, kc, ke, kp1, kp2 = jax.random.split(key, 5)
    feats = jax.random.normal(kf, (B, N, NUM_NODE_FEAT), jnp.float32)
    coors = jax.random.normal(kc, (B, N, 3), jnp.float32)
    edge_attr = jax.random.normal(ke, (B, N, N, EDGE_DIM), jnp.float32)

    params = {
        "enc": init_egnn_linear_params(kp1, NUM_NODE_FEAT, EDGE_DIM, HIDDEN_DIM, LATENT_DIM),
        "dec": init_egnn_linear_params(kp2, LATENT_DIM, EDGE_DIM, HIDDEN_DIM, OUTPUT_FEAT),
    }
    packed = {
        "enc": pack_egnn_linear_params(params["enc"], NUM_NODE_FEAT, EDGE_DIM,
                                       HIDDEN_DIM, LATENT_DIM),
        "dec": pack_egnn_linear_params(params["dec"], LATENT_DIM, EDGE_DIM,
                                       HIDDEN_DIM, OUTPUT_FEAT),
    }

    x_hat = gae_forward_pallas(feats, coors, edge_attr, packed)
    x_hat = jax.block_until_ready(x_hat)
    assert x_hat.shape == (B, N, OUTPUT_FEAT)

    x_hat_ref = gae_forward_ref(feats, coors, edge_attr, params)
    np.testing.assert_allclose(np.asarray(x_hat), np.asarray(x_hat_ref),
                               rtol=2e-2, atol=2e-2)

    print("KERNEL_OK")
</pallas_src>

<mosaic_0001>
module attributes {stable_mosaic.version = 11 : i64} {
  func.func @kernel(%arg0: i32, %arg1: memref<1x16x256xf32, #tpu.memory_space<vmem>>, %arg2: memref<1x16x16x4xf32, #tpu.memory_space<vmem>>, %arg3: memref<128x1024xf32, #tpu.memory_space<vmem>>, %arg4: memref<13x128xf32, #tpu.memory_space<vmem>>, %arg5: memref<1x16x256xf32, #tpu.memory_space<vmem>>) attributes {dimension_semantics = [#tpu.dimension_semantics<parallel>], iteration_bounds = array<i64: 2>, scalar_prefetch = 0 : i64, scratch_operands = 0 : i64, tpu.core_type = #tpu.core_type<tc>, window_params = [{transform_indices = @transform_0, window_bounds = array<i64: 1, 16, 256>}, {transform_indices = @transform_1, window_bounds = array<i64: 1, 16, 16, 4>}, {pipeline_mode = #tpu.pipeline_mode<synchronous>, transform_indices = @transform_2, window_bounds = array<i64: 128, 1024>}, {pipeline_mode = #tpu.pipeline_mode<synchronous>, transform_indices = @transform_3, window_bounds = array<i64: 13, 128>}, {transform_indices = @transform_4, window_bounds = array<i64: 1, 16, 256>}]} {
    %c0 = arith.constant 0 : index
    %c0_0 = arith.constant 0 : index
    %c0_1 = arith.constant 0 : index
    %0 = vector.load %arg1[%c0, %c0_0, %c0_1] : memref<1x16x256xf32, #tpu.memory_space<vmem>>, vector<1x16x256xf32>
    %1 = vector.extract_strided_slice %0 {offsets = [0, 0, 0], sizes = [1, 16, 128], strides = [1, 1, 1]} : vector<1x16x256xf32> to vector<1x16x128xf32>
    %2 = vector.extract_strided_slice %0 {offsets = [0, 0, 128], sizes = [1, 16, 3], strides = [1, 1, 1]} : vector<1x16x256xf32> to vector<1x16x3xf32>
    %3 = vector.shape_cast %1 : vector<1x16x128xf32> to vector<16x128xf32>
    %c0_2 = arith.constant 0 : index
    %c0_3 = arith.constant 0 : index
    %4 = vector.load %arg3[%c0_2, %c0_3] : memref<128x1024xf32, #tpu.memory_space<vmem>>, vector<128x384xf32>
    %cst = arith.constant dense<0.000000e+00> : vector<16x384xf32>
    %5 = tpu.matmul %3, %4, %cst {dimension_numbers = #tpu.dot_dimension_numbers<[1], [0], [0], [1], [0, 0, 1, 1], [], []>} : vector<16x128xf32>, vector<128x384xf32>, vector<16x384xf32> -> vector<16x384xf32>
    %6 = vector.extract_strided_slice %5 {offsets = [0, 0], sizes = [16, 114], strides = [1, 1]} : vector<16x384xf32> to vector<16x114xf32>
    %7 = vector.shape_cast %6 : vector<16x114xf32> to vector<1x16x114xf32>
    %8 = vector.extract_strided_slice %5 {offsets = [0, 128], sizes = [16, 114], strides = [1, 1]} : vector<16x384xf32> to vector<16x114xf32>
    %9 = vector.shape_cast %8 : vector<16x114xf32> to vector<1x16x114xf32>
    %10 = vector.extract_strided_slice %5 {offsets = [0, 256], sizes = [16, 52], strides = [1, 1]} : vector<16x384xf32> to vector<16x52xf32>
    %11 = arith.mulf %2, %2 : vector<1x16x3xf32>
    %cst_4 = arith.constant dense<0.000000e+00> : vector<1x16xf32>
    %12 = vector.multi_reduction <add>, %11, %cst_4 [2] : vector<1x16x3xf32> to vector<1x16xf32>
    %13 = vector.shape_cast %12 : vector<1x16xf32> to vector<1x16x1xf32>
    %14 = vector.extract_strided_slice %2 {offsets = [0, 0, 0], sizes = [1, 16, 1], strides = [1, 1, 1]} : vector<1x16x3xf32> to vector<1x16x1xf32>
    %15 = vector.shape_cast %14 : vector<1x16x1xf32> to vector<1x16x1x1xf32>
    %16 = vector.extract_strided_slice %2 {offsets = [0, 0, 0], sizes = [1, 16, 1], strides = [1, 1, 1]} : vector<1x16x3xf32> to vector<1x16x1xf32>
    %17 = vector.shape_cast %16 : vector<1x16x1xf32> to vector<1x1x16x1xf32>
    %18 = vector.broadcast %15 : vector<1x16x1x1xf32> to vector<1x16x16x1xf32>
    %19 = vector.broadcast %17 : vector<1x1x16x1xf32> to vector<1x16x16x1xf32>
    %20 = arith.mulf %18, %19 : vector<1x16x16x1xf32>
    %21 = vector.extract_strided_slice %2 {offsets = [0, 0, 1], sizes = [1, 16, 1], strides = [1, 1, 1]} : vector<1x16x3xf32> to vector<1x16x1xf32>
    %22 = vector.shape_cast %21 : vector<1x16x1xf32> to vector<1x16x1x1xf32>
    %23 = vector.extract_strided_slice %2 {offsets = [0, 0, 1], sizes = [1, 16, 1], strides = [1, 1, 1]} : vector<1x16x3xf32> to vector<1x16x1xf32>
    %24 = vector.shape_cast %23 : vector<1x16x1xf32> to vector<1x1x16x1xf32>
    %25 = vector.broadcast %22 : vector<1x16x1x1xf32> to vector<1x16x16x1xf32>
    %26 = vector.broadcast %24 : vector<1x1x16x1xf32> to vector<1x16x16x1xf32>
    %27 = arith.mulf %25, %26 : vector<1x16x16x1xf32>
    %28 = arith.addf %20, %27 : vector<1x16x16x1xf32>
    %29 = vector.extract_strided_slice %2 {offsets = [0, 0, 2], sizes = [1, 16, 1], strides = [1, 1, 1]} : vector<1x16x3xf32> to vector<1x16x1xf32>
    %30 = vector.shape_cast %29 : vector<1x16x1xf32> to vector<1x16x1x1xf32>
    %31 = vector.extract_strided_slice %2 {offsets = [0, 0, 2], sizes = [1, 16, 1], strides = [1, 1, 1]} : vector<1x16x3xf32> to vector<1x16x1xf32>
    %32 = vector.shape_cast %31 : vector<1x16x1xf32> to vector<1x1x16x1xf32>
    %33 = vector.broadcast %30 : vector<1x16x1x1xf32> to vector<1x16x16x1xf32>
    %34 = vector.broadcast %32 : vector<1x1x16x1xf32> to vector<1x16x16x1xf32>
    %35 = arith.mulf %33, %34 : vector<1x16x16x1xf32>
    %36 = arith.addf %28, %35 : vector<1x16x16x1xf32>
    %37 = vector.shape_cast %13 : vector<1x16x1xf32> to vector<1x16x1x1xf32>
    %38 = vector.shape_cast %13 : vector<1x16x1xf32> to vector<1x1x16x1xf32>
    %39 = vector.broadcast %37 : vector<1x16x1x1xf32> to vector<1x16x16x1xf32>
    %40 = vector.broadcast %38 : vector<1x1x16x1xf32> to vector<1x16x16x1xf32>
    %41 = arith.addf %39, %40 : vector<1x16x16x1xf32>
    %cst_5 = arith.constant 2.000000e+00 : f32
    %42 = vector.broadcast %cst_5 : f32 to vector<1x16x16x1xf32>
    %43 = arith.mulf %42, %36 : vector<1x16x16x1xf32>
    %44 = arith.subf %41, %43 : vector<1x16x16x1xf32>
    %c7 = arith.constant 7 : index
    %c0_6 = arith.constant 0 : index
    %45 = vector.load %arg4[%c7, %c0_6] : memref<13x128xf32, #tpu.memory_space<vmem>>, vector<1x114xf32>
    %46 = vector.shape_cast %45 : vector<1x114xf32> to vector<1x1x1x114xf32>
    %c0_7 = arith.constant 0 : index
    %c0_8 = arith.constant 0 : index
    %47 = vector.load %arg4[%c0_7, %c0_8] : memref<13x128xf32, #tpu.memory_space<vmem>>, vector<1x114xf32>
    %48 = vector.shape_cast %47 : vector<1x114xf32> to vector<1x1x1x114xf32>
    %49 = vector.shape_cast %7 : vector<1x16x114xf32> to vector<1x16x1x114xf32>
    %50 = vector.shape_cast %9 : vector<1x16x114xf32> to vector<1x1x16x114xf32>
    %51 = vector.broadcast %49 : vector<1x16x1x114xf32> to vector<1x16x16x114xf32>
    %52 = vector.broadcast %50 : vector<1x1x16x114xf32> to vector<1x16x16x114xf32>
    %53 = arith.addf %51, %52 : vector<1x16x16x114xf32>
    %54 = vector.broadcast %44 : vector<1x16x16x1xf32> to vector<1x16x16x114xf32>
    %55 = vector.broadcast %46 : vector<1x1x1x114xf32> to vector<1x16x16x114xf32>
    %56 = arith.mulf %54, %55 : vector<1x16x16x114xf32>
    %57 = arith.addf %53, %56 : vector<1x16x16x114xf32>
    %58 = vector.broadcast %48 : vector<1x1x1x114xf32> to vector<1x16x16x114xf32>
    %59 = arith.addf %57, %58 : vector<1x16x16x114xf32>
    %c0_9 = arith.constant 0 : index
    %c0_10 = arith.constant 0 : index
    %c0_11 = arith.constant 0 : index
    %c0_12 = arith.constant 0 : index
    %60 = vector.load %arg2[%c0_9, %c0_10, %c0_11, %c0_12] : memref<1x16x16x4xf32, #tpu.memory_space<vmem>>, vector<1x16x16x4xf32>
    %c9 = arith.constant 9 : index
    %c0_13 = arith.constant 0 : index
    %61 = vector.load %arg4[%c9, %c0_13] : memref<13x128xf32, #tpu.memory_space<vmem>>, vector<1x114xf32>
    %62 = vector.shape_cast %61 : vector<1x114xf32> to vector<1x1x1x114xf32>
    %63 = vector.extract_strided_slice %60 {offsets = [0, 0, 0, 0], sizes = [1, 16, 16, 1], strides = [1, 1, 1, 1]} : vector<1x16x16x4xf32> to vector<1x16x16x1xf32>
    %64 = vector.broadcast %63 : vector<1x16x16x1xf32> to vector<1x16x16x114xf32>
    %65 = vector.broadcast %62 : vector<1x1x1x114xf32> to vector<1x16x16x114xf32>
    %66 = arith.mulf %64, %65 : vector<1x16x16x114xf32>
    %67 = arith.addf %59, %66 : vector<1x16x16x114xf32>
    %c10 = arith.constant 10 : index
    %c0_14 = arith.constant 0 : index
    %68 = vector.load %arg4[%c10, %c0_14] : memref<13x128xf32, #tpu.memory_space<vmem>>, vector<1x114xf32>
    %69 = vector.shape_cast %68 : vector<1x114xf32> to vector<1x1x1x114xf32>
    %70 = vector.extract_strided_slice %60 {offsets = [0, 0, 0, 1], sizes = [1, 16, 16, 1], strides = [1, 1, 1, 1]} : vector<1x16x16x4xf32> to vector<1x16x16x1xf32>
    %71 = vector.broadcast %70 : vector<1x16x16x1xf32> to vector<1x16x16x114xf32>
    %72 = vector.broadcast %69 : vector<1x1x1x114xf32> to vector<1x16x16x114xf32>
    %73 = arith.mulf %71, %72 : vector<1x16x16x114xf32>
    %74 = arith.addf %67, %73 : vector<1x16x16x114xf32>
    %c11 = arith.constant 11 : index
    %c0_15 = arith.constant 0 : index
    %75 = vector.load %arg4[%c11, %c0_15] : memref<13x128xf32, #tpu.memory_space<vmem>>, vector<1x114xf32>
    %76 = vector.shape_cast %75 : vector<1x114xf32> to vector<1x1x1x114xf32>
    %77 = vector.extract_strided_slice %60 {offsets = [0, 0, 0, 2], sizes = [1, 16, 16, 1], strides = [1, 1, 1, 1]} : vector<1x16x16x4xf32> to vector<1x16x16x1xf32>
    %78 = vector.broadcast %77 : vector<1x16x16x1xf32> to vector<1x16x16x114xf32>
    %79 = vector.broadcast %76 : vector<1x1x1x114xf32> to vector<1x16x16x114xf32>
    %80 = arith.mulf %78, %79 : vector<1x16x16x114xf32>
    %81 = arith.addf %74, %80 : vector<1x16x16x114xf32>
    %c12 = arith.constant 12 : index
    %c0_16 = arith.constant 0 : index
    %82 = vector.load %arg4[%c12, %c0_16] : memref<13x128xf32, #tpu.memory_space<vmem>>, vector<1x114xf32>
    %83 = vector.shape_cast %82 : vector<1x114xf32> to vector<1x1x1x114xf32>
    %84 = vector.extract_strided_slice %60 {offsets = [0, 0, 0, 3], sizes = [1, 16, 16, 1], strides = [1, 1, 1, 1]} : vector<1x16x16x4xf32> to vector<1x16x16x1xf32>
    %85 = vector.broadcast %84 : vector<1x16x16x1xf32> to vector<1x16x16x114xf32>
    %86 = vector.broadcast %83 : vector<1x1x1x114xf32> to vector<1x16x16x114xf32>
    %87 = arith.mulf %85, %86 : vector<1x16x16x114xf32>
    %88 = arith.addf %81, %87 : vector<1x16x16x114xf32>
    %89 = arith.negf %88 : vector<1x16x16x114xf32>
    %90 = math.exp %89 : vector<1x16x16x114xf32>
    %cst_17 = arith.constant 1.000000e+00 : f32
    %91 = vector.broadcast %cst_17 : f32 to vector<1x16x16x114xf32>
    %92 = arith.addf %91, %90 : vector<1x16x16x114xf32>
    %93 = arith.divf %91, %92 : vector<1x16x16x114xf32>
    %94 = arith.mulf %88, %93 : vector<1x16x16x114xf32>
    %c1 = arith.constant 1 : index
    %c0_18 = arith.constant 0 : index
    %95 = vector.load %arg4[%c1, %c0_18] : memref<13x128xf32, #tpu.memory_space<vmem>>, vector<1x32xf32>
    %96 = vector.shape_cast %94 : vector<1x16x16x114xf32> to vector<256x114xf32>
    %c0_19 = arith.constant 0 : index
    %c384 = arith.constant 384 : index
    %97 = vector.load %arg3[%c0_19, %c384] : memref<128x1024xf32, #tpu.memory_space<vmem>>, vector<114x32xf32>
    %cst_20 = arith.constant dense<0.000000e+00> : vector<256x32xf32>
    %98 = tpu.matmul %96, %97, %cst_20 {dimension_numbers = #tpu.dot_dimension_numbers<[1], [0], [0], [1], [0, 0, 1, 1], [], []>} : vector<256x114xf32>, vector<114x32xf32>, vector<256x32xf32> -> vector<256x32xf32>
    %99 = vector.broadcast %95 : vector<1x32xf32> to vector<256x32xf32>
    %100 = arith.addf %98, %99 : vector<256x32xf32>
    %101 = arith.negf %100 : vector<256x32xf32>
    %102 = math.exp %101 : vector<256x32xf32>
    %cst_21 = arith.constant 1.000000e+00 : f32
    %103 = vector.broadcast %cst_21 : f32 to vector<256x32xf32>
    %104 = arith.addf %103, %102 : vector<256x32xf32>
    %105 = arith.divf %103, %104 : vector<256x32xf32>
    %106 = arith.mulf %100, %105 : vector<256x32xf32>
    %c2 = arith.constant 2 : index
    %c0_22 = arith.constant 0 : index
    %107 = vector.load %arg4[%c2, %c0_22] : memref<13x128xf32, #tpu.memory_space<vmem>>, vector<1x128xf32>
    %c0_23 = arith.constant 0 : index
    %c512 = arith.constant 512 : index
    %108 = vector.load %arg3[%c0_23, %c512] : memref<128x1024xf32, #tpu.memory_space<vmem>>, vector<32x128xf32>
    %cst_24 = arith.constant dense<0.000000e+00> : vector<256x128xf32>
    %109 = tpu.matmul %106, %108, %cst_24 {dimension_numbers = #tpu.dot_dimension_numbers<[1], [0], [0], [1], [0, 0, 1, 1], [], []>} : vector<256x32xf32>, vector<32x128xf32>, vector<256x128xf32> -> vector<256x128xf32>
    %110 = vector.broadcast %107 : vector<1x128xf32> to vector<256x128xf32>
    %111 = arith.addf %109, %110 : vector<256x128xf32>
    %112 = arith.negf %111 : vector<256x128xf32>
    %113 = math.exp %112 : vector<256x128xf32>
    %cst_25 = arith.constant 1.000000e+00 : f32
    %114 = vector.broadcast %cst_25 : f32 to vector<256x128xf32>
    %115 = arith.addf %114, %113 : vector<256x128xf32>
    %116 = arith.divf %114, %115 : vector<256x128xf32>
    %117 = arith.mulf %111, %116 : vector<256x128xf32>
    %c8 = arith.constant 8 : index
    %c0_26 = arith.constant 0 : index
    %118 = vector.load %arg4[%c8, %c0_26] : memref<13x128xf32, #tpu.memory_space<vmem>>, vector<1x128xf32>
    %119 = vector.shape_cast %118 : vector<1x128xf32> to vector<1x1x1x128xf32>
    %c3 = arith.constant 3 : index
    %c0_27 = arith.constant 0 : index
    %120 = vector.load %arg4[%c3, %c0_27] : memref<13x128xf32, #tpu.memory_space<vmem>>, vector<1x1xf32>
    %121 = vector.shape_cast %117 : vector<256x128xf32> to vector<1x16x16x128xf32>
    %122 = vector.broadcast %119 : vector<1x1x1x128xf32> to vector<1x16x16x128xf32>
    %123 = arith.mulf %121, %122 : vector<1x16x16x128xf32>
    %cst_28 = arith.constant dense<0.000000e+00> : vector<1x16x16xf32>
    %124 = vector.multi_reduction <add>, %123, %cst_28 [3] : vector<1x16x16x128xf32> to vector<1x16x16xf32>
    %125 = vector.shape_cast %124 : vector<1x16x16xf32> to vector<1x16x16x1xf32>
    %126 = vector.shape_cast %120 : vector<1x1xf32> to vector<1x1x1x1xf32>
    %127 = vector.broadcast %126 : vector<1x1x1x1xf32> to vector<1x16x16x1xf32>
    %128 = arith.addf %125, %127 : vector<1x16x16x1xf32>
    %cst_29 = arith.constant dense<0.000000e+00> : vector<1x16x1xf32>
    %129 = vector.multi_reduction <add>, %128, %cst_29 [2] : vector<1x16x16x1xf32> to vector<1x16x1xf32>
    %130 = vector.extract_strided_slice %2 {offsets = [0, 0, 0], sizes = [1, 16, 1], strides = [1, 1, 1]} : vector<1x16x3xf32> to vector<1x16x1xf32>
    %131 = vector.shape_cast %130 : vector<1x16x1xf32> to vector<1x1x16x1xf32>
    %132 = vector.broadcast %131 : vector<1x1x16x1xf32> to vector<1x16x16x1xf32>
    %133 = arith.mulf %128, %132 : vector<1x16x16x1xf32>
    %cst_30 = arith.constant dense<0.000000e+00> : vector<1x16x1xf32>
    %134 = vector.multi_reduction <add>, %133, %cst_30 [2] : vector<1x16x16x1xf32> to vector<1x16x1xf32>
    %135 = arith.mulf %129, %130 : vector<1x16x1xf32>
    %136 = arith.addf %130, %135 : vector<1x16x1xf32>
    %137 = arith.subf %136, %134 : vector<1x16x1xf32>
    %138 = vector.extract_strided_slice %2 {offsets = [0, 0, 1], sizes = [1, 16, 1], strides = [1, 1, 1]} : vector<1x16x3xf32> to vector<1x16x1xf32>
    %139 = vector.shape_cast %138 : vector<1x16x1xf32> to vector<1x1x16x1xf32>
    %140 = vector.broadcast %139 : vector<1x1x16x1xf32> to vector<1x16x16x1xf32>
    %141 = arith.mulf %128, %140 : vector<1x16x16x1xf32>
    %cst_31 = arith.constant dense<0.000000e+00> : vector<1x16x1xf32>
    %142 = vector.multi_reduction <add>, %141, %cst_31 [2] : vector<1x16x16x1xf32> to vector<1x16x1xf32>
    %143 = arith.mulf %129, %138 : vector<1x16x1xf32>
    %144 = arith.addf %138, %143 : vector<1x16x1xf32>
    %145 = arith.subf %144, %142 : vector<1x16x1xf32>
    %146 = vector.extract_strided_slice %2 {offsets = [0, 0, 2], sizes = [1, 16, 1], strides = [1, 1, 1]} : vector<1x16x3xf32> to vector<1x16x1xf32>
    %147 = vector.shape_cast %146 : vector<1x16x1xf32> to vector<1x1x16x1xf32>
    %148 = vector.broadcast %147 : vector<1x1x16x1xf32> to vector<1x16x16x1xf32>
    %149 = arith.mulf %128, %148 : vector<1x16x16x1xf32>
    %cst_32 = arith.constant dense<0.000000e+00> : vector<1x16x1xf32>
    %150 = vector.multi_reduction <add>, %149, %cst_32 [2] : vector<1x16x16x1xf32> to vector<1x16x1xf32>
    %151 = arith.mulf %129, %146 : vector<1x16x1xf32>
    %152 = arith.addf %146, %151 : vector<1x16x1xf32>
    %153 = arith.subf %152, %150 : vector<1x16x1xf32>
    %154 = tpu.concatenate %137, %145, %153 in 2 : vector<1x16x1xf32>, vector<1x16x1xf32>, vector<1x16x1xf32> -> vector<1x16x3xf32>
    %155 = vector.shape_cast %106 : vector<256x32xf32> to vector<1x16x16x32xf32>
    %cst_33 = arith.constant dense<0.000000e+00> : vector<1x16x32xf32>
    %156 = vector.multi_reduction <add>, %155, %cst_33 [2] : vector<1x16x16x32xf32> to vector<1x16x32xf32>
    %157 = vector.shape_cast %156 : vector<1x16x32xf32> to vector<16x32xf32>
    %c4 = arith.constant 4 : index
    %c0_34 = arith.constant 0 : index
    %158 = vector.load %arg4[%c4, %c0_34] : memref<13x128xf32, #tpu.memory_space<vmem>>, vector<1x52xf32>
    %c0_35 = arith.constant 0 : index
    %c640 = arith.constant 640 : index
    %159 = vector.load %arg3[%c0_35, %c640] : memref<128x1024xf32, #tpu.memory_space<vmem>>, vector<32x52xf32>
    %cst_36 = arith.constant dense<0.000000e+00> : vector<16x52xf32>
    %160 = tpu.matmul %157, %159, %cst_36 {dimension_numbers = #tpu.dot_dimension_numbers<[1], [0], [0], [1], [0, 0, 1, 1], [], []>} : vector<16x32xf32>, vector<32x52xf32>, vector<16x52xf32> -> vector<16x52xf32>
    %161 = arith.addf %160, %10 : vector<16x52xf32>
    %162 = vector.broadcast %158 : vector<1x52xf32> to vector<16x52xf32>
    %163 = arith.addf %161, %162 : vector<16x52xf32>
    %164 = arith.negf %163 : vector<16x52xf32>
    %165 = math.exp %164 : vector<16x52xf32>
    %cst_37 = arith.constant 1.000000e+00 : f32
    %166 = vector.broadcast %cst_37 : f32 to vector<16x52xf32>
    %167 = arith.addf %166, %165 : vector<16x52xf32>
    %168 = arith.divf %166, %167 : vector<16x52xf32>
    %169 = arith.mulf %163, %168 : vector<16x52xf32>
    %c5 = arith.constant 5 : index
    %c0_38 = arith.constant 0 : index
    %170 = vector.load %arg4[%c5, %c0_38] : memref<13x128xf32, #tpu.memory_space<vmem>>, vector<1x26xf32>
    %c0_39 = arith.constant 0 : index
    %c768 = arith.constant 768 : index
    %171 = vector.load %arg3[%c0_39, %c768] : memref<128x1024xf32, #tpu.memory_space<vmem>>, vector<52x26xf32>
    %cst_40 = arith.constant dense<0.000000e+00> : vector<16x26xf32>
    %172 = tpu.matmul %169, %171, %cst_40 {dimension_numbers = #tpu.dot_dimension_numbers<[1], [0], [0], [1], [0, 0, 1, 1], [], []>} : vector<16x52xf32>, vector<52x26xf32>, vector<16x26xf32> -> vector<16x26xf32>
    %173 = vector.broadcast %170 : vector<1x26xf32> to vector<16x26xf32>
    %174 = arith.addf %172, %173 : vector<16x26xf32>
    %175 = vector.extract_strided_slice %3 {offsets = [0, 0], sizes = [16, 26], strides = [1, 1]} : vector<16x128xf32> to vector<16x26xf32>
    %176 = arith.addf %174, %175 : vector<16x26xf32>
    %c6 = arith.constant 6 : index
    %c0_41 = arith.constant 0 : index
    %177 = vector.load %arg4[%c6, %c0_41] : memref<13x128xf32, #tpu.memory_space<vmem>>, vector<1x128xf32>
    %c0_42 = arith.constant 0 : index
    %c896 = arith.constant 896 : index
    %178 = vector.load %arg3[%c0_42, %c896] : memref<128x1024xf32, #tpu.memory_space<vmem>>, vector<26x128xf32>
    %cst_43 = arith.constant dense<0.000000e+00> : vector<16x128xf32>
    %179 = tpu.matmul %176, %178, %cst_43 {dimension_numbers = #tpu.dot_dimension_numbers<[1], [0], [0], [1], [0, 0, 1, 1], [], []>} : vector<16x26xf32>, vector<26x128xf32>, vector<16x128xf32> -> vector<16x128xf32>
    %180 = vector.broadcast %177 : vector<1x128xf32> to vector<16x128xf32>
    %181 = arith.addf %179, %180 : vector<16x128xf32>
    %182 = vector.shape_cast %181 : vector<16x128xf32> to vector<1x16x128xf32>
    %c0_44 = arith.constant 0 : index
    %c0_45 = arith.constant 0 : index
    %c0_46 = arith.constant 0 : index
    %183 = vector.load %arg5[%c0_44, %c0_45, %c0_46] : memref<1x16x256xf32, #tpu.memory_space<vmem>>, vector<1x16x128xf32>
    tpu.vector_store %arg5[%c0_44, %c0_45, %c0_46], %182 {strides = array<i32>} : memref<1x16x256xf32, #tpu.memory_space<vmem>>, vector<1x16x128xf32>,
    %cst_47 = arith.constant 0.000000e+00 : f32
    %184 = vector.broadcast %cst_47 : f32 to vector<1x16x125xf32>
    %185 = tpu.concatenate %154, %184 in 2 : vector<1x16x3xf32>, vector<1x16x125xf32> -> vector<1x16x128xf32>
    %c0_48 = arith.constant 0 : index
    %c0_49 = arith.constant 0 : index
    %c128 = arith.constant 128 : index
    %186 = vector.load %arg5[%c0_48, %c0_49, %c128] : memref<1x16x256xf32, #tpu.memory_space<vmem>>, vector<1x16x128xf32>
    tpu.vector_store %arg5[%c0_48, %c0_49, %c128], %185 {strides = array<i32>} : memref<1x16x256xf32, #tpu.memory_space<vmem>>, vector<1x16x128xf32>,
    return
  }
  func.func @transform_0(%arg0: i32) -> (i32, i32, i32) {
    %c0_i32 = arith.constant 0 : i32
    %c0_i32_0 = arith.constant 0 : i32
    %c0_i32_1 = arith.constant 0 : i32
    return %arg0, %c0_i32, %c0_i32_0 : i32, i32, i32
  }
  func.func @transform_1(%arg0: i32) -> (i32, i32, i32, i32) {
    %c0_i32 = arith.constant 0 : i32
    %c0_i32_0 = arith.constant 0 : i32
    %c0_i32_1 = arith.constant 0 : i32
    %c0_i32_2 = arith.constant 0 : i32
    return %arg0, %c0_i32, %c0_i32_0, %c0_i32_1 : i32, i32, i32, i32
  }
  func.func @transform_2(%arg0: i32) -> (i32, i32) {
    %c0_i32 = arith.constant 0 : i32
    %c0_i32_0 = arith.constant 0 : i32
    %c0_i32_1 = arith.constant 0 : i32
    return %c0_i32, %c0_i32_0 : i32, i32
  }
  func.func @transform_3(%arg0: i32) -> (i32, i32) {
    %c0_i32 = arith.constant 0 : i32
    %c0_i32_0 = arith.constant 0 : i32
    %c0_i32_1 = arith.constant 0 : i32
    return %c0_i32, %c0_i32_0 : i32, i32
  }
  func.func @transform_4(%arg0: i32) -> (i32, i32, i32) {
    %c0_i32 = arith.constant 0 : i32
    %c0_i32_0 = arith.constant 0 : i32
    %c0_i32_1 = arith.constant 0 : i32
    return %arg0, %c0_i32, %c0_i32_0 : i32, i32, i32
  }
}

</mosaic_0001>

<llo_original>
// kernel: tpu_custom_call.1
$region0: #{tpu_custom_call.1}
  #allocation0 [shape = 'u32[]', space=smem, size = 0x4, offset = 0x4, fixed_abs, tag = 'smem constant byte address 0x4 - core index']
  #allocation1 [shape = 'u32[144,128]{1,0:T(1,128)}', space=vmem, size = 0x12000, scoped, tag = 'internal scratch']
  %s0 = inlined_call_operand.vmem [shape: f32[2,16,256], index: 0, kind: input, shape index: {}]
  %s1 = inlined_call_operand.vmem [shape: f32[2,16,16,4], index: 1, kind: input, shape index: {}]
  %s2 = inlined_call_operand.hbm [shape: f32[128,1024], index: 2, kind: input, shape index: {}]
  %s3 = inlined_call_operand.vmem [shape: f32[13,128], index: 3, kind: input, shape index: {}]
  %s4 = inlined_call_operand.hbm [shape: f32[2,16,256], index: 4, kind: output, shape index: {}]
  %s5 = sld [smem:[#allocation0]]
  $region53: #{tpu_custom_call.1} parent=0
    _
  %s7 = ssub.s32 1, %s5
  %s8 = scalar_select 0, %s7, %s5
  $region1: #{tpu_custom_call.1} parent=0
    #allocation2 [shape = 'u8[524288]{0}', space=vmem, size = 0x80000, scoped, tag = 'input window, operand 2, single buffered']
    #allocation3 [shape = 's32[2]{0}', space=sflag, size = 0x8, scoped, tag = 'scoped memory for tpu_custom_call.1']
    #allocation4 [shape = 's32[2]{0}', space=sflag, size = 0x8, scoped, tag = 'scoped memory for tpu_custom_call.1']
    #allocation5 [shape = 'u8[32768]{0}', space=vmem, size = 0x8000, scoped, tag = 'output window, operand 0']
    %9 = vsyncpa [#allocation3], 0
    %10 = vsyncpa [#allocation4], 0
    %s11 = scalar_lea.sflag [#allocation4], 1
    %12 = vsyncpa %s11, 0
    loop: start=0, step=1, limit=4
    $region2: #{tpu_custom_call.1} parent=1 // loop_pre_header
      _
    $region3: #{tpu_custom_call.1} parent=1 // loop_header
      %s14 = sphi 0, %s18
      %p15 = scmp.ge.s32.totalorder %s14, 4
      %s24 = sphi 0, %s26
      %s27 = sphi 0, %s24
      %s28 = sphi 0, %s27
      %s44 = sphi 0, %s28
      %s50 = sphi 0, %s52
      %s53 = sphi 0, %s50
      %s54 = sphi 0, %s53
      %s70 = sphi 0, %s54
      %s74 = sphi 0, %s74
      %s76 = sphi 0, %s74
      %s77 = sphi 0, %s76
      %s91 = sphi 0, %s77
      %s95 = sphi 0, %s95
      %s97 = sphi 0, %s95
      %s98 = sphi 0, %s97
      %s112 = sphi 0, %s98
      %s118 = sphi 0, %s120
      %s121 = sphi 0, %s118
      %s122 = sphi 0, %s121
      %s138 = sphi 0, %s122
    $region4: #{tpu_custom_call.1} parent=1 // loop_header_branch
      %17 = sbr.rel (%p15) target = $region8
    $region5: #{tpu_custom_call.1} parent=1 // loop_body
      %s19 = ssub.s32 %s14, 1
      %s20 = ssub.s32 %s14, 2
      %s21 = sadd.s32 %s14, 1
      %s22 = ssub.s32 %s14, %s21
      %p23 = scmp.eq.s32.totalorder %s22, 0
      %s25 = sadd.s32 %s24, 1
      %s26 = scalar_select %p23, %s24, %s25
      %p29 = pneg %p23
      %p30 = scmp.eq.s32.totalorder %s14, 1
      %p31 = por %p29, %p30
      %p32 = scmp.ne.s32.totalorder %s24, %s27
      %p33 = scmp.eq.s32.totalorder %s14, 0
      %p34 = por %p32, %p33
      %p35 = scmp.ne.s32.totalorder %s24, %s27
      %p36 = scmp.eq.s32.totalorder %s19, 1
      %p37 = por %p35, %p36
      %p38 = scmp.ne.s32.totalorder %s27, %s28
      %p39 = scmp.eq.s32.totalorder %s19, 0
      %p40 = por %p38, %p39
      %p41 = scmp.ne.s32.totalorder %s27, %s28
      %p42 = scmp.eq.s32.totalorder %s20, 1
      %p43 = por %p41, %p42
      %p45 = scmp.ne.s32.totalorder %s28, %s44
      %p46 = scmp.eq.s32.totalorder %s20, 0
      %p47 = por %p45, %p46
      %s48 = ssub.s32 %s14, %s21
      %p49 = scmp.eq.s32.totalorder %s48, 0
      %s51 = sadd.s32 %s50, 1
      %s52 = scalar_select %p49, %s50, %s51
      %p55 = pneg %p49
      %p56 = scmp.eq.s32.totalorder %s14, 1
      %p57 = por %p55, %p56
      %p58 = scmp.ne.s32.totalorder %s50, %s53
      %p59 = scmp.eq.s32.totalorder %s14, 0
      %p60 = por %p58, %p59
      %p61 = scmp.ne.s32.totalorder %s50, %s53
      %p62 = scmp.eq.s32.totalorder %s19, 1
      %p63 = por %p61, %p62
      %p64 = scmp.ne.s32.totalorder %s53, %s54
      %p65 = scmp.eq.s32.totalorder %s19, 0
      %p66 = por %p64, %p65
      %p67 = scmp.ne.s32.totalorder %s53, %s54
      %p68 = scmp.eq.s32.totalorder %s20, 1
      %p69 = por %p67, %p68
      %p71 = scmp.ne.s32.totalorder %s54, %s70
      %p72 = scmp.eq.s32.totalorder %s20, 0
      %p73 = por %p71, %p72
      %s75 = sadd.s32 %s74, 1
      %p78 = scmp.eq.s32.totalorder %s14, 1
      %p79 = scmp.ne.s32.totalorder %s74, %s76
      %p80 = scmp.eq.s32.totalorder %s14, 0
      %p81 = por %p79, %p80
      %p82 = scmp.ne.s32.totalorder %s74, %s76
      %p83 = scmp.eq.s32.totalorder %s19, 1
      %p84 = por %p82, %p83
      %p85 = scmp.ne.s32.totalorder %s76, %s77
      %p86 = scmp.eq.s32.totalorder %s19, 0
      %p87 = por %p85, %p86
      %p88 = scmp.ne.s32.totalorder %s76, %s77
      %p89 = scmp.eq.s32.totalorder %s20, 1
      %p90 = por %p88, %p89
      %p92 = scmp.ne.s32.totalorder %s77, %s91
      %p93 = scmp.eq.s32.totalorder %s20, 0
      %p94 = por %p92, %p93
      %s96 = sadd.s32 %s95, 1
      %p99 = scmp.eq.s32.totalorder %s14, 1
      %p100 = scmp.ne.s32.totalorder %s95, %s97
      %p101 = scmp.eq.s32.totalorder %s14, 0
      %p102 = por %p100, %p101
      %p103 = scmp.ne.s32.totalorder %s95, %s97
      %p104 = scmp.eq.s32.totalorder %s19, 1
      %p105 = por %p103, %p104
      %p106 = scmp.ne.s32.totalorder %s97, %s98
      %p107 = scmp.eq.s32.totalorder %s19, 0
      %p108 = por %p106, %p107
      %p109 = scmp.ne.s32.totalorder %s97, %s98
      %p110 = scmp.eq.s32.totalorder %s20, 1
      %p111 = por %p109, %p110
      %p113 = scmp.ne.s32.totalorder %s98, %s112
      %p114 = scmp.eq.s32.totalorder %s20, 0
      %p115 = por %p113, %p114
      %s116 = ssub.s32 %s14, %s21
      %p117 = scmp.eq.s32.totalorder %s116, 0
      %s119 = sadd.s32 %s118, 1
      %s120 = scalar_select %p117, %s118, %s119
      %p123 = pneg %p117
      %p124 = scmp.eq.s32.totalorder %s14, 1
      %p125 = por %p123, %p124
      %p126 = scmp.ne.s32.totalorder %s118, %s121
      %p127 = scmp.eq.s32.totalorder %s14, 0
      %p128 = por %p126, %p127
      %p129 = scmp.ne.s32.totalorder %s118, %s121
      %p130 = scmp.eq.s32.totalorder %s19, 1
      %p131 = por %p129, %p130
      %p132 = scmp.ne.s32.totalorder %s121, %s122
      %p133 = scmp.eq.s32.totalorder %s19, 0
      %p134 = por %p132, %p133
      %p135 = scmp.ne.s32.totalorder %s121, %s122
      %p136 = scmp.eq.s32.totalorder %s20, 1
      %p137 = por %p135, %p136
      %p139 = scmp.ne.s32.totalorder %s122, %s138
      %p140 = scmp.eq.s32.totalorder %s20, 0
      %p141 = por %p139, %p140
      %p142 = scmp.le.s32.totalorder 1, %s14
      %p143 = scmp.lt.s32.totalorder %s14, 3
      %p144 = pnand %p142, %p143
      %p145 = pneg %p144
      // Predicated region
      $region9: #{tpu_custom_call.1} parent=5 // pred_check
        _
      $region10: #{tpu_custom_call.1} parent=5 // pred_check_branch
        %147 = sbr.rel (%p144) target = $region12
      $region11: #{tpu_custom_call.1} parent=5 // pred_region
        %s148 = ssub.s32 %s14, 1
        // Predicated region
        $region13: #{tpu_custom_call.1} parent=11 // pred_check
          %p149 = pneg %p87
        $region14: #{tpu_custom_call.1} parent=11 // pred_check_branch
          %151 = sbr.rel (%p149) target = $region16
        $region15: #{tpu_custom_call.1} parent=11 // pred_region
          %s153 = ssub.s32 16384, 16384
          %154 = vsyncadd [#allocation3], %s153
          %s155 = sshll.u32 [#allocation2], 4
          %s156 = int_to_ptr.vmem [resolvable:$true] %s155
          %161 = dma.hbm_to_vmem [thread:$0]  %s2, 16384, %s156, [#allocation3], 1024, 1024, 64
        $region16: #{tpu_custom_call.1} parent=11 // pred_fallthru
          _
        // Predicated region
        $region17: #{tpu_custom_call.1} parent=11 // pred_check
          %p162 = pneg %p108
        $region18: #{tpu_custom_call.1} parent=11 // pred_check_branch
          %164 = sbr.rel (%p162) target = $region20
        $region19: #{tpu_custom_call.1} parent=11 // pred_region
          _
        $region20: #{tpu_custom_call.1} parent=11 // pred_fallthru
          _
      $region12: #{tpu_custom_call.1} parent=5 // pred_fallthru
        _
      %p165 = scmp.lt.s32.totalorder %s14, 2
      // Predicated region
      $region21: #{tpu_custom_call.1} parent=5 // pred_check
        %p166 = pneg %p165
      $region22: #{tpu_custom_call.1} parent=5 // pred_check_branch
        %168 = sbr.rel (%p166) target = $region24
      $region23: #{tpu_custom_call.1} parent=5 // pred_region
        // Predicated region
        $region25: #{tpu_custom_call.1} parent=23 // pred_check
          %p169 = pneg %p34
        $region26: #{tpu_custom_call.1} parent=23 // pred_check_branch
          %171 = sbr.rel (%p169) target = $region28
        $region27: #{tpu_custom_call.1} parent=23 // pred_region
          %p172 = scmp.lt.s32.totalorder %s14, 1
          %s173 = scalar_select %p172, %s14, 1
          %s174 = smul.addr %s173, 4
          %s175 = smul.addr %s174, 8
          %s176 = scalar_lea.vmem %s0, %s175
        $region28: #{tpu_custom_call.1} parent=23 // pred_fallthru
          _
        // Predicated region
        $region29: #{tpu_custom_call.1} parent=23 // pred_check
          %p177 = pneg %p60
        $region30: #{tpu_custom_call.1} parent=23 // pred_check_branch
          %179 = sbr.rel (%p177) target = $region32
        $region31: #{tpu_custom_call.1} parent=23 // pred_region
          %p180 = scmp.lt.s32.totalorder %s14, 1
          %s181 = scalar_select %p180, %s14, 1
          %s182 = smul.addr %s181, 32
          %s183 = smul.addr %s182, 8
          %s184 = scalar_lea.vmem %s1, %s183
        $region32: #{tpu_custom_call.1} parent=23 // pred_fallthru
          _
      $region24: #{tpu_custom_call.1} parent=5 // pred_fallthru
        _
      %p185 = scmp.le.s32.totalorder 1, %s14
      %p186 = scmp.lt.s32.totalorder %s14, 3
      %p187 = pnand %p185, %p186
      %p188 = pneg %p187
      // Predicated region
      $region33: #{tpu_custom_call.1} parent=5 // pred_check
        _
      $region34: #{tpu_custom_call.1} parent=5 // pred_check_branch
        %190 = sbr.rel (%p187) target = $region36
      $region35: #{tpu_custom_call.1} parent=5 // pred_region
        %s191 = ssub.s32 %s14, 1
        // Predicated region
        $region37: #{tpu_custom_call.1} parent=35 // pred_check
          %p192 = pneg %p87
        $region38: #{tpu_custom_call.1} parent=35 // pred_check_branch
          %194 = sbr.rel (%p192) target = $region40
        $region39: #{tpu_custom_call.1} parent=35 // pred_region
          %195 = dma.done [#allocation3], 16384
        $region40: #{tpu_custom_call.1} parent=35 // pred_fallthru
          _
        %p196 = scmp.lt.s32.totalorder %s19, 1
        %s197 = scalar_select %p196, %s19, 1
        %s198 = smul.addr %s197, 4
        %s199 = smul.addr %s198, 8
        %s200 = scalar_lea.vmem %s0, %s199
        %p201 = pneg %p40
        %p202 = pneg %p37
        %p203 = scmp.lt.s32.totalorder %s19, 1
        %s204 = scalar_select %p203, %s19, 1
        %s205 = smul.addr %s204, 32
        %s206 = smul.addr %s205, 8
        %s207 = scalar_lea.vmem %s1, %s206
        %p208 = pneg %p66
        %p209 = pneg %p63
        %p210 = pneg %p87
        %p211 = pneg %p84
        %p212 = pneg %p108
        %p213 = pneg %p105
        %p214 = pneg %p134
        %p215 = pneg %p131
        %s216 = sand.u32 %s121, 1
        %s217 = scalar_lea.sflag [#allocation4], %s216
        %s218 = sand.u32 %s121, 1
        %s219 = smul.addr %s218, 32
        %s220 = scalar_lea.vmem [#allocation5], %s219
        %p221 = scmp.lt.s32.totalorder %s19, 1
        %s222 = scalar_select %p221, %s19, 1
        %s223 = smul.addr %s222, 4
        %s224 = smul.addr %s223, 8
        %s225 = scalar_lea.vmem %s0, %s224
        %p226 = scmp.lt.s32.totalorder %s19, 1
        %s227 = scalar_select %p226, %s19, 1
        %s228 = smul.addr %s227, 32
        %s229 = smul.addr %s228, 8
        %s230 = scalar_lea.vmem %s1, %s229
        %v231 = vld [vmem:[%s225] sm:$0xff]
        %v232 = vld [vmem:[%s225 + $0x8] sm:$0xff]
        %v233 = vld [vmem:[%s225 + $0x10] sm:$0xff]
        %v234 = vld [vmem:[%s225 + $0x18] sm:$0xff]
        %v235 = vld [vmem:[#allocation2] sm:$0xff]
        %v236 = vld [vmem:[#allocation2 + $0x8] sm:$0xff]
        %v237 = vld [vmem:[#allocation2 + $0x10] sm:$0xff]
        %v238 = vld [vmem:[#allocation2 + $0x40] sm:$0xff]
        %v239 = vld [vmem:[#allocation2 + $0x48] sm:$0xff]
        %v240 = vld [vmem:[#allocation2 + $0x50] sm:$0xff]
        %v241 = vld [vmem:[#allocation2 + $0x80] sm:$0xff]
        %v242 = vld [vmem:[#allocation2 + $0x88] sm:$0xff]
        %v243 = vld [vmem:[#allocation2 + $0x90] sm:$0xff]
        %v244 = vld [vmem:[#allocation2 + $0xc0] sm:$0xff]
        %v245 = vld [vmem:[#allocation2 + $0xc8] sm:$0xff]
        %v246 = vld [vmem:[#allocation2 + $0xd0] sm:$0xff]
        %v247 = vld [vmem:[#allocation2 + $0x100] sm:$0xff]
        %v248 = vld [vmem:[#allocation2 + $0x108] sm:$0xff]
        %v249 = vld [vmem:[#allocation2 + $0x110] sm:$0xff]
        %v250 = vld [vmem:[#allocation2 + $0x140] sm:$0xff]
        %v251 = vld [vmem:[#allocation2 + $0x148] sm:$0xff]
        %v252 = vld [vmem:[#allocation2 + $0x150] sm:$0xff]
        %v253 = vld [vmem:[#allocation2 + $0x180] sm:$0xff]
        %v254 = vld [vmem:[#allocation2 + $0x188] sm:$0xff]
        %v255 = vld [vmem:[#allocation2 + $0x190] sm:$0xff]
        %v256 = vld [vmem:[#allocation2 + $0x1c0] sm:$0xff]
        %v257 = vld [vmem:[#allocation2 + $0x1c8] sm:$0xff]
        %v258 = vld [vmem:[#allocation2 + $0x1d0] sm:$0xff]
        %v259 = vld [vmem:[#allocation2 + $0x200] sm:$0xff]
        %v260 = vld [vmem:[#allocation2 + $0x208] sm:$0xff]
        %v261 = vld [vmem:[#allocation2 + $0x210] sm:$0xff]
        %v262 = vld [vmem:[#allocation2 + $0x240] sm:$0xff]
        %v263 = vld [vmem:[#allocation2 + $0x248] sm:$0xff]
        %v264 = vld [vmem:[#allocation2 + $0x250] sm:$0xff]
        %v265 = vld [vmem:[#allocation2 + $0x280] sm:$0xff]
        %v266 = vld [vmem:[#allocation2 + $0x288] sm:$0xff]
        %v267 = vld [vmem:[#allocation2 + $0x290] sm:$0xff]
        %v268 = vld [vmem:[#allocation2 + $0x2c0] sm:$0xff]
        %v269 = vld [vmem:[#allocation2 + $0x2c8] sm:$0xff]
        %v270 = vld [vmem:[#allocation2 + $0x2d0] sm:$0xff]
        %v271 = vld [vmem:[#allocation2 + $0x300] sm:$0xff]
        %v272 = vld [vmem:[#allocation2 + $0x308] sm:$0xff]
        %v273 = vld [vmem:[#allocation2 + $0x310] sm:$0xff]
        %v274 = vld [vmem:[#allocation2 + $0x340] sm:$0xff]
        %v275 = vld [vmem:[#allocation2 + $0x348] sm:$0xff]
        %v276 = vld [vmem:[#allocation2 + $0x350] sm:$0xff]
        %v277 = vld [vmem:[#allocation2 + $0x380] sm:$0xff]
        %v278 = vld [vmem:[#allocation2 + $0x388] sm:$0xff]
        %v279 = vld [vmem:[#allocation2 + $0x390] sm:$0xff]
        %v280 = vld [vmem:[#allocation2 + $0x3c0] sm:$0xff]
        %v281 = vld [vmem:[#allocation2 + $0x3c8] sm:$0xff]
        %v282 = vld [vmem:[#allocation2 + $0x3d0] sm:$0xff]
        %283 = vmatprep.subr.mxu0 %v281
        %284 = vmatpush1.msra.mxu0 %v280
        %285 = vmatprep.subr.mxu0 %v278
        %286 = vmatpush1.msra.mxu0 %v277
        %287 = vmatprep.subr.mxu0 %v275
        %288 = vmatpush1.msra.mxu0 %v274
        %289 = vmatprep.subr.mxu0 %v272
        %290 = vmatpush1.msra.mxu0 %v271
        %291 = vmatprep.subr.mxu0 %v269
        %292 = vmatpush1.msra.mxu0 %v268
        %293 = vmatprep.subr.mxu0 %v266
        %294 = vmatpush1.msra.mxu0 %v265
        %295 = vmatprep.subr.mxu0 %v263
        %296 = vmatpush1.msra.mxu0 %v262
        %297 = vmatprep.subr.mxu0 %v260
        %298 = vmatpush1.msra.mxu0 %v259
        %299 = vmatprep.subr.mxu0 %v257
        %300 = vmatpush1.msra.mxu0 %v256
        %301 = vmatprep.subr.mxu0 %v254
        %302 = vmatpush1.msra.mxu0 %v253
        %303 = vmatprep.subr.mxu0 %v251
        %304 = vmatpush1.msra.mxu0 %v250
        %305 = vmatprep.subr.mxu0 %v248
        %306 = vmatpush1.msra.mxu0 %v247
        %307 = vmatprep.subr.mxu0 %v245
        %308 = vmatpush1.msra.mxu0 %v244
        %309 = vmatprep.subr.mxu0 %v242
        %310 = vmatpush1.msra.mxu0 %v241
        %311 = vmatprep.subr.mxu0 %v239
        %312 = vmatpush1.msra.mxu0 %v238
        %313 = vmatprep.subr.mxu0 %v236
        %314 = vmatpush1.msra.mxu0 %v235
        %315 = vmatprep.subr.mxu0 0.0
        %316 = vmatpush2.msra.mxu0 0.0
        %317 = vmatprep.subr.mxu0 0.0
        %318 = vmatpush2.msra.mxu0 0.0
        %319 = vmatprep.subr.mxu0 0.0
        %320 = vmatpush2.msra.mxu0 0.0
        %321 = vmatprep.subr.mxu0 0.0
        %322 = vmatpush2.msra.mxu0 0.0
        %323 = vmatprep.subr.mxu0 0.0
        %324 = vmatpush2.msra.mxu0 0.0
        %325 = vmatprep.subr.mxu0 0.0
        %326 = vmatpush2.msra.mxu0 0.0
        %327 = vmatprep.subr.mxu0 0.0
        %328 = vmatpush2.msra.mxu0 0.0
        %329 = vmatprep.subr.mxu0 0.0
        %330 = vmatpush2.msra.mxu0 0.0
        %331 = vmatprep.subr.mxu0 0.0
        %332 = vmatpush2.msra.mxu0 0.0
        %333 = vmatprep.subr.mxu0 0.0
        %334 = vmatpush2.msra.mxu0 0.0
        %335 = vmatprep.subr.mxu0 0.0
        %336 = vmatpush2.msra.mxu0 0.0
        %337 = vmatprep.subr.mxu0 0.0
        %338 = vmatpush2.msra.mxu0 0.0
        %339 = vmatprep.subr.mxu0 0.0
        %340 = vmatpush2.msra.mxu0 0.0
        %341 = vmatprep.subr.mxu0 0.0
        %342 = vmatpush2.msra.mxu0 0.0
        %343 = vmatprep.subr.mxu0 0.0
        %344 = vmatpush2.msra.mxu0 0.0
        %345 = vmatprep.subr.mxu0 0.0
        %346 = vmatpush2.msra.mxu0 0.0
        %347 = vmatprep.mubr.f32.mxu0 0.0
        %348 = vmatmul.mubr.f32.gmra.mxu0 %v231
        %v349 = vpop.f32.mrf.mxu0
        %v350 = vadd.f32 0.0, %v349
        %v351 = vpop.f32.mrf.mxu0
        %v352 = vadd.f32 0.0, %v351
        %353 = vmatprep.mubr.f32.mxu0 0.0
        %354 = vmatmul.mubr.f32.gmra.mxu0 %v233
        %v355 = vpop.f32.mrf.mxu0
        %v356 = vadd.f32 0.0, %v355
        %v357 = vpop.f32.mrf.mxu0
        %v358 = vadd.f32 0.0, %v357
        %359 = vdwg.mxu0
        %360 = vmatprep.subr.mxu0 0.0
        %361 = vmatpush1.msra.mxu0 %v282
        %362 = vmatprep.subr.mxu0 0.0
        %363 = vmatpush1.msra.mxu0 %v279
        %364 = vmatprep.subr.mxu0 0.0
        %365 = vmatpush1.msra.mxu0 %v276
        %366 = vmatprep.subr.mxu0 0.0
        %367 = vmatpush1.msra.mxu0 %v273
        %368 = vmatprep.subr.mxu0 0.0
        %369 = vmatpush1.msra.mxu0 %v270
        %370 = vmatprep.subr.mxu0 0.0
        %371 = vmatpush1.msra.mxu0 %v267
        %372 = vmatprep.subr.mxu0 0.0
        %373 = vmatpush1.msra.mxu0 %v264
        %374 = vmatprep.subr.mxu0 0.0
        %375 = vmatpush1.msra.mxu0 %v261
        %376 = vmatprep.subr.mxu0 0.0
        %377 = vmatpush1.msra.mxu0 %v258
        %378 = vmatprep.subr.mxu0 0.0
        %379 = vmatpush1.msra.mxu0 %v255
        %380 = vmatprep.subr.mxu0 0.0
        %381 = vmatpush1.msra.mxu0 %v252
        %382 = vmatprep.subr.mxu0 0.0
        %383 = vmatpush1.msra.mxu0 %v249
        %384 = vmatprep.subr.mxu0 0.0
        %385 = vmatpush1.msra.mxu0 %v246
        %386 = vmatprep.subr.mxu0 0.0
        %387 = vmatpush1.msra.mxu0 %v243
        %388 = vmatprep.subr.mxu0 0.0
        %389 = vmatpush1.msra.mxu0 %v240
        %390 = vmatprep.subr.mxu0 0.0
        %391 = vmatpush1.msra.mxu0 %v237
        %392 = vmatprep.subr.mxu0 0.0
        %393 = vmatpush2.msra.mxu0 0.0
        %394 = vmatprep.subr.mxu0 0.0
        %395 = vmatpush2.msra.mxu0 0.0
        %396 = vmatprep.subr.mxu0 0.0
        %397 = vmatpush2.msra.mxu0 0.0
        %398 = vmatprep.subr.mxu0 0.0
        %399 = vmatpush2.msra.mxu0 0.0
        %400 = vmatprep.subr.mxu0 0.0
        %401 = vmatpush2.msra.mxu0 0.0
        %402 = vmatprep.subr.mxu0 0.0
        %403 = vmatpush2.msra.mxu0 0.0
        %404 = vmatprep.subr.mxu0 0.0
        %405 = vmatpush2.msra.mxu0 0.0
        %406 = vmatprep.subr.mxu0 0.0
        %407 = vmatpush2.msra.mxu0 0.0
        %408 = vmatprep.subr.mxu0 0.0
        %409 = vmatpush2.msra.mxu0 0.0
        %410 = vmatprep.subr.mxu0 0.0
        %411 = vmatpush2.msra.mxu0 0.0
        %412 = vmatprep.subr.mxu0 0.0
        %413 = vmatpush2.msra.mxu0 0.0
        %414 = vmatprep.subr.mxu0 0.0
        %415 = vmatpush2.msra.mxu0 0.0
        %416 = vmatprep.subr.mxu0 0.0
        %417 = vmatpush2.msra.mxu0 0.0
        %418 = vmatprep.subr.mxu0 0.0
        %419 = vmatpush2.msra.mxu0 0.0
        %420 = vmatprep.subr.mxu0 0.0
        %421 = vmatpush2.msra.mxu0 0.0
        %422 = vmatprep.subr.mxu0 0.0
        %423 = vmatpush2.msra.mxu0 0.0
        %424 = vmatprep.mubr.f32.mxu0 0.0
        %425 = vmatmul.mubr.f32.gmra.mxu0 %v231
        %v426 = vpop.f32.mrf.mxu0
        %v427 = vadd.f32 0.0, %v426
        %v428 = vpop.f32.mrf.mxu0
        %429 = vmatprep.mubr.f32.mxu0 0.0
        %430 = vmatmul.mubr.f32.gmra.mxu0 %v233
        %v431 = vpop.f32.mrf.mxu0
        %v432 = vadd.f32 0.0, %v431
        %v433 = vpop.f32.mrf.mxu0
        %434 = vdwg.mxu0
        %v435 = vmul.f32 %v232, %v232
        %v436 = vmul.f32 %v234, %v234
        %vm437 = vcmask 23552
        %v438 = vsel %vm437, %v435, 0.0
        %439 = vadd.xlane.f32.xlu0 %v438
        %v440 = vpop.xlane.xlu0 %439
        %v441 = vsel %vm437, %v436, 0.0
        %442 = vadd.xlane.f32.xlu0 %v441
        %v443 = vpop.xlane.xlu0 %442
        %v446 = vcombine.high %v232, %v232
        %v448 = vunpack.c.l.s4 1966171168
        %v449 = vunpack.c.0.s8 %v448
        %v450 = vlaneseq
        %v451 = vshrl.u32 %v450, 7
        %v452 = vsub.s32 %v449, %v451
        %v453 = vrot.slane %v232, %v452
        %v455 = vunpack.c.l.s4 1966171168
        %v456 = vunpack.c.0.s8 %v455
        %v457 = vlaneseq
        %v458 = vshrl.u32 %v457, 7
        %v459 = vsub.s32 %v456, %v458
        %v460 = vrot.slane %v446, %v459
        %v461 = vcombine.high %v453, %v453
        %v462 = vcombine.high %v460, %v460
        %v464 = vunpack.c.l.s4 1966171168
        %v465 = vunpack.c.0.s8 %v464
        %v466 = vlaneseq
        %v467 = vshrl.u32 %v466, 7
        %v468 = vsub.s32 %v465, %v467
        %v469 = vrot.slane %v453, %v468
        %v471 = vunpack.c.l.s4 1966171168
        %v472 = vunpack.c.0.s8 %v471
        %v473 = vlaneseq
        %v474 = vshrl.u32 %v473, 7
        %v475 = vsub.s32 %v472, %v474
        %v476 = vrot.slane %v460, %v475
        %v478 = vunpack.c.l.s4 1966171168
        %v479 = vunpack.c.0.s8 %v478
        %v480 = vlaneseq
        %v481 = vshrl.u32 %v480, 7
        %v482 = vsub.s32 %v479, %v481
        %v483 = vrot.slane %v461, %v482
        %v485 = vunpack.c.l.s4 1966171168
        %v486 = vunpack.c.0.s8 %v485
        %v487 = vlaneseq
        %v488 = vshrl.u32 %v487, 7
        %v489 = vsub.s32 %v486, %v488
        %v490 = vrot.slane %v462, %v489
        %v491 = vcombine.high %v469, %v469
        %v492 = vcombine.high %v476, %v476
        %v493 = vcombine.high %v483, %v483
        %v494 = vcombine.high %v490, %v490
        %v495 = vcombine.high %v234, %v234
        %v497 = vunpack.c.l.s4 1966171168
        %v498 = vunpack.c.0.s8 %v497
        %v499 = vlaneseq
        %v500 = vshrl.u32 %v499, 7
        %v501 = vsub.s32 %v498, %v500
        %v502 = vrot.slane %v234, %v501
        %v504 = vunpack.c.l.s4 1966171168
        %v505 = vunpack.c.0.s8 %v504
        %v506 = vlaneseq
        %v507 = vshrl.u32 %v506, 7
        %v508 = vsub.s32 %v505, %v507
        %v509 = vrot.slane %v495, %v508
        %v510 = vcombine.high %v502, %v502
        %v511 = vcombine.high %v509, %v509
        %v513 = vunpack.c.l.s4 1966171168
        %v514 = vunpack.c.0.s8 %v513
        %v515 = vlaneseq
        %v516 = vshrl.u32 %v515, 7
        %v517 = vsub.s32 %v514, %v516
        %v518 = vrot.slane %v502, %v517
        %v520 = vunpack.c.l.s4 1966171168
        %v521 = vunpack.c.0.s8 %v520
        %v522 = vlaneseq
        %v523 = vshrl.u32 %v522, 7
        %v524 = vsub.s32 %v521, %v523
        %v525 = vrot.slane %v509, %v524
        %v527 = vunpack.c.l.s4 1966171168
        %v528 = vunpack.c.0.s8 %v527
        %v529 = vlaneseq
        %v530 = vshrl.u32 %v529, 7
        %v531 = vsub.s32 %v528, %v530
        %v532 = vrot.slane %v510, %v531
        %v534 = vunpack.c.l.s4 1966171168
        %v535 = vunpack.c.0.s8 %v534
        %v536 = vlaneseq
        %v537 = vshrl.u32 %v536, 7
        %v538 = vsub.s32 %v535, %v537
        %v539 = vrot.slane %v511, %v538
        %v540 = vcombine.high %v518, %v518
        %v541 = vcombine.high %v525, %v525
        %v542 = vcombine.high %v532, %v532
        %v543 = vcombine.high %v539, %v539
        %v544 = vlaneseq
        %v545 = vshrl.u32 %v544, 7
        %v546 = vsub.s32 0, %v545
        %v547 = vrot.slane %v469, %v546
        %v548 = vlaneseq
        %v549 = vshrl.u32 %v548, 7
        %v550 = vsub.s32 0, %v549
        %v551 = vrot.slane %v483, %v550
        %v552 = vlaneseq
        %v553 = vshrl.u32 %v552, 7
        %v554 = vsub.s32 0, %v553
        %v555 = vrot.slane %v491, %v554
        %v556 = vlaneseq
        %v557 = vshrl.u32 %v556, 7
        %v558 = vsub.s32 0, %v557
        %v559 = vrot.slane %v493, %v558
        %v560 = vlaneseq
        %v561 = vshrl.u32 %v560, 7
        %v562 = vsub.s32 0, %v561
        %v563 = vrot.slane %v476, %v562
        %v564 = vlaneseq
        %v565 = vshrl.u32 %v564, 7
        %v566 = vsub.s32 0, %v565
        %v567 = vrot.slane %v490, %v566
        %v568 = vlaneseq
        %v569 = vshrl.u32 %v568, 7
        %v570 = vsub.s32 0, %v569
        %v571 = vrot.slane %v492, %v570
        %v572 = vlaneseq
        %v573 = vshrl.u32 %v572, 7
        %v574 = vsub.s32 0, %v573
        %v575 = vrot.slane %v494, %v574
        %v576 = vlaneseq
        %v577 = vshrl.u32 %v576, 7
        %v578 = vsub.s32 0, %v577
        %v579 = vrot.slane %v518, %v578
        %v580 = vlaneseq
        %v581 = vshrl.u32 %v580, 7
        %v582 = vsub.s32 0, %v581
        %v583 = vrot.slane %v532, %v582
        %v584 = vlaneseq
        %v585 = vshrl.u32 %v584, 7
        %v586 = vsub.s32 0, %v585
        %v587 = vrot.slane %v540, %v586
        %v588 = vlaneseq
        %v589 = vshrl.u32 %v588, 7
        %v590 = vsub.s32 0, %v589
        %v591 = vrot.slane %v542, %v590
        %v592 = vlaneseq
        %v593 = vshrl.u32 %v592, 7
        %v594 = vsub.s32 0, %v593
        %v595 = vrot.slane %v525, %v594
        %v596 = vlaneseq
        %v597 = vshrl.u32 %v596, 7
        %v598 = vsub.s32 0, %v597
        %v599 = vrot.slane %v539, %v598
        %v600 = vlaneseq
        %v601 = vshrl.u32 %v600, 7
        %v602 = vsub.s32 0, %v601
        %v603 = vrot.slane %v541, %v602
        %v604 = vlaneseq
        %v605 = vshrl.u32 %v604, 7
        %v606 = vsub.s32 0, %v605
        %v607 = vrot.slane %v543, %v606
        %v624 = vmul.f32 %v547, %v232
        %v625 = vmul.f32 %v547, %v234
        %v626 = vmul.f32 %v551, %v232
        %v627 = vmul.f32 %v551, %v234
        %v628 = vmul.f32 %v555, %v232
        %v629 = vmul.f32 %v555, %v234
        %v630 = vmul.f32 %v559, %v232
        %v631 = vmul.f32 %v559, %v234
        %v632 = vmul.f32 %v563, %v232
        %v633 = vmul.f32 %v563, %v234
        %v634 = vmul.f32 %v567, %v232
        %v635 = vmul.f32 %v567, %v234
        %v636 = vmul.f32 %v571, %v232
        %v637 = vmul.f32 %v571, %v234
        %v638 = vmul.f32 %v575, %v232
        %v639 = vmul.f32 %v575, %v234
        %v640 = vmul.f32 %v579, %v232
        %v641 = vmul.f32 %v579, %v234
        %v642 = vmul.f32 %v583, %v232
        %v643 = vmul.f32 %v583, %v234
        %v644 = vmul.f32 %v587, %v232
        %v645 = vmul.f32 %v587, %v234
        %v646 = vmul.f32 %v591, %v232
        %v647 = vmul.f32 %v591, %v234
        %v648 = vmul.f32 %v595, %v232
        %v649 = vmul.f32 %v595, %v234
        %v650 = vmul.f32 %v599, %v232
        %v651 = vmul.f32 %v599, %v234
        %v652 = vmul.f32 %v603, %v232
        %v653 = vmul.f32 %v603, %v234
        %v654 = vmul.f32 %v607, %v232
        %v655 = vmul.f32 %v607, %v234
        %688 = vrot.lane.b32.xlu0 %v624, 127
        %v689 = vpop.permute.xlu0 %688
        %690 = vrot.lane.b32.xlu0 %v625, 127
        %v691 = vpop.permute.xlu0 %690
        %692 = vrot.lane.b32.xlu0 %v626, 127
        %v693 = vpop.permute.xlu0 %692
        %694 = vrot.lane.b32.xlu0 %v627, 127
        %v695 = vpop.permute.xlu0 %694
        %696 = vrot.lane.b32.xlu0 %v628, 127
        %v697 = vpop.permute.xlu0 %696
        %698 = vrot.lane.b32.xlu0 %v629, 127
        %v699 = vpop.permute.xlu0 %698
        %700 = vrot.lane.b32.xlu0 %v630, 127
        %v701 = vpop.permute.xlu0 %700
        %702 = vrot.lane.b32.xlu0 %v631, 127
        %v703 = vpop.permute.xlu0 %702
        %704 = vrot.lane.b32.xlu0 %v632, 127
        %v705 = vpop.permute.xlu0 %704
        %706 = vrot.lane.b32.xlu0 %v633, 127
        %v707 = vpop.permute.xlu0 %706
        %708 = vrot.lane.b32.xlu0 %v634, 127
        %v709 = vpop.permute.xlu0 %708
        %710 = vrot.lane.b32.xlu0 %v635, 127
        %v711 = vpop.permute.xlu0 %710
        %712 = vrot.lane.b32.xlu0 %v636, 127
        %v713 = vpop.permute.xlu0 %712
        %714 = vrot.lane.b32.xlu0 %v637, 127
        %v715 = vpop.permute.xlu0 %714
        %716 = vrot.lane.b32.xlu0 %v638, 127
        %v717 = vpop.permute.xlu0 %716
        %718 = vrot.lane.b32.xlu0 %v639, 127
        %v719 = vpop.permute.xlu0 %718
        %720 = vrot.lane.b32.xlu0 %v640, 127
        %v721 = vpop.permute.xlu0 %720
        %722 = vrot.lane.b32.xlu0 %v641, 127
        %v723 = vpop.permute.xlu0 %722
        %724 = vrot.lane.b32.xlu0 %v642, 127
        %v725 = vpop.permute.xlu0 %724
        %726 = vrot.lane.b32.xlu0 %v643, 127
        %v727 = vpop.permute.xlu0 %726
        %728 = vrot.lane.b32.xlu0 %v644, 127
        %v729 = vpop.permute.xlu0 %728
        %730 = vrot.lane.b32.xlu0 %v645, 127
        %v731 = vpop.permute.xlu0 %730
        %732 = vrot.lane.b32.xlu0 %v646, 127
        %v733 = vpop.permute.xlu0 %732
        %734 = vrot.lane.b32.xlu0 %v647, 127
        %v735 = vpop.permute.xlu0 %734
        %736 = vrot.lane.b32.xlu0 %v648, 127
        %v737 = vpop.permute.xlu0 %736
        %738 = vrot.lane.b32.xlu0 %v649, 127
        %v739 = vpop.permute.xlu0 %738
        %740 = vrot.lane.b32.xlu0 %v650, 127
        %v741 = vpop.permute.xlu0 %740
        %742 = vrot.lane.b32.xlu0 %v651, 127
        %v743 = vpop.permute.xlu0 %742
        %744 = vrot.lane.b32.xlu0 %v652, 127
        %v745 = vpop.permute.xlu0 %744
        %746 = vrot.lane.b32.xlu0 %v653, 127
        %v747 = vpop.permute.xlu0 %746
        %748 = vrot.lane.b32.xlu0 %v654, 127
        %v749 = vpop.permute.xlu0 %748
        %750 = vrot.lane.b32.xlu0 %v655, 127
        %v751 = vpop.permute.xlu0 %750
        %v784 = vadd.f32 %v624, %v689
        %v785 = vadd.f32 %v625, %v691
        %v786 = vadd.f32 %v626, %v693
        %v787 = vadd.f32 %v627, %v695
        %v788 = vadd.f32 %v628, %v697
        %v789 = vadd.f32 %v629, %v699
        %v790 = vadd.f32 %v630, %v701
        %v791 = vadd.f32 %v631, %v703
        %v792 = vadd.f32 %v632, %v705
        %v793 = vadd.f32 %v633, %v707
        %v794 = vadd.f32 %v634, %v709
        %v795 = vadd.f32 %v635, %v711
        %v796 = vadd.f32 %v636, %v713
        %v797 = vadd.f32 %v637, %v715
        %v798 = vadd.f32 %v638, %v717
        %v799 = vadd.f32 %v639, %v719
        %v800 = vadd.f32 %v640, %v721
        %v801 = vadd.f32 %v641, %v723
        %v802 = vadd.f32 %v642, %v725
        %v803 = vadd.f32 %v643, %v727
        %v804 = vadd.f32 %v644, %v729
        %v805 = vadd.f32 %v645, %v731
        %v806 = vadd.f32 %v646, %v733
        %v807 = vadd.f32 %v647, %v735
        %v808 = vadd.f32 %v648, %v737
        %v809 = vadd.f32 %v649, %v739
        %v810 = vadd.f32 %v650, %v741
        %v811 = vadd.f32 %v651, %v743
        %v812 = vadd.f32 %v652, %v745
        %v813 = vadd.f32 %v653, %v747
        %v814 = vadd.f32 %v654, %v749
        %v815 = vadd.f32 %v655, %v751
        %816 = vrot.lane.b32.xlu0 %v624, 126
        %v817 = vpop.permute.xlu0 %816
        %818 = vrot.lane.b32.xlu0 %v625, 126
        %v819 = vpop.permute.xlu0 %818
        %820 = vrot.lane.b32.xlu0 %v626, 126
        %v821 = vpop.permute.xlu0 %820
        %822 = vrot.lane.b32.xlu0 %v627, 126
        %v823 = vpop.permute.xlu0 %822
        %824 = vrot.lane.b32.xlu0 %v628, 126
        %v825 = vpop.permute.xlu0 %824
        %826 = vrot.lane.b32.xlu0 %v629, 126
        %v827 = vpop.permute.xlu0 %826
        %828 = vrot.lane.b32.xlu0 %v630, 126
        %v829 = vpop.permute.xlu0 %828
        %830 = vrot.lane.b32.xlu0 %v631, 126
        %v831 = vpop.permute.xlu0 %830
        %832 = vrot.lane.b32.xlu0 %v632, 126
        %v833 = vpop.permute.xlu0 %832
        %834 = vrot.lane.b32.xlu0 %v633, 126
        %v835 = vpop.permute.xlu0 %834
        %836 = vrot.lane.b32.xlu0 %v634, 126
        %v837 = vpop.permute.xlu0 %836
        %838 = vrot.lane.b32.xlu0 %v635, 126
        %v839 = vpop.permute.xlu0 %838
        %840 = vrot.lane.b32.xlu0 %v636, 126
        %v841 = vpop.permute.xlu0 %840
        %842 = vrot.lane.b32.xlu0 %v637, 126
        %v843 = vpop.permute.xlu0 %842
        %844 = vrot.lane.b32.xlu0 %v638, 126
        %v845 = vpop.permute.xlu0 %844
        %846 = vrot.lane.b32.xlu0 %v639, 126
        %v847 = vpop.permute.xlu0 %846
        %848 = vrot.lane.b32.xlu0 %v640, 126
        %v849 = vpop.permute.xlu0 %848
        %850 = vrot.lane.b32.xlu0 %v641, 126
        %v851 = vpop.permute.xlu0 %850
        %852 = vrot.lane.b32.xlu0 %v642, 126
        %v853 = vpop.permute.xlu0 %852
        %854 = vrot.lane.b32.xlu0 %v643, 126
        %v855 = vpop.permute.xlu0 %854
        %856 = vrot.lane.b32.xlu0 %v644, 126
        %v857 = vpop.permute.xlu0 %856
        %858 = vrot.lane.b32.xlu0 %v645, 126
        %v859 = vpop.permute.xlu0 %858
        %860 = vrot.lane.b32.xlu0 %v646, 126
        %v861 = vpop.permute.xlu0 %860
        %862 = vrot.lane.b32.xlu0 %v647, 126
        %v863 = vpop.permute.xlu0 %862
        %864 = vrot.lane.b32.xlu0 %v648, 126
        %v865 = vpop.permute.xlu0 %864
        %866 = vrot.lane.b32.xlu0 %v649, 126
        %v867 = vpop.permute.xlu0 %866
        %868 = vrot.lane.b32.xlu0 %v650, 126
        %v869 = vpop.permute.xlu0 %868
        %870 = vrot.lane.b32.xlu0 %v651, 126
        %v871 = vpop.permute.xlu0 %870
        %872 = vrot.lane.b32.xlu0 %v652, 126
        %v873 = vpop.permute.xlu0 %872
        %874 = vrot.lane.b32.xlu0 %v653, 126
        %v875 = vpop.permute.xlu0 %874
        %876 = vrot.lane.b32.xlu0 %v654, 126
        %v877 = vpop.permute.xlu0 %876
        %878 = vrot.lane.b32.xlu0 %v655, 126
        %v879 = vpop.permute.xlu0 %878
        %v912 = vadd.f32 %v784, %v817
        %v913 = vadd.f32 %v785, %v819
        %v914 = vadd.f32 %v786, %v821
        %v915 = vadd.f32 %v787, %v823
        %v916 = vadd.f32 %v788, %v825
        %v917 = vadd.f32 %v789, %v827
        %v918 = vadd.f32 %v790, %v829
        %v919 = vadd.f32 %v791, %v831
        %v920 = vadd.f32 %v792, %v833
        %v921 = vadd.f32 %v793, %v835
        %v922 = vadd.f32 %v794, %v837
        %v923 = vadd.f32 %v795, %v839
        %v924 = vadd.f32 %v796, %v841
        %v925 = vadd.f32 %v797, %v843
        %v926 = vadd.f32 %v798, %v845
        %v927 = vadd.f32 %v799, %v847
        %v928 = vadd.f32 %v800, %v849
        %v929 = vadd.f32 %v801, %v851
        %v930 = vadd.f32 %v802, %v853
        %v931 = vadd.f32 %v803, %v855
        %v932 = vadd.f32 %v804, %v857
        %v933 = vadd.f32 %v805, %v859
        %v934 = vadd.f32 %v806, %v861
        %v935 = vadd.f32 %v807, %v863
        %v936 = vadd.f32 %v808, %v865
        %v937 = vadd.f32 %v809, %v867
        %v938 = vadd.f32 %v810, %v869
        %v939 = vadd.f32 %v811, %v871
        %v940 = vadd.f32 %v812, %v873
        %v941 = vadd.f32 %v813, %v875
        %v942 = vadd.f32 %v814, %v877
        %v943 = vadd.f32 %v815, %v879
        %v946 = vlaneseq
        %v947 = vshrl.u32 %v946, 7
        %v948 = vsub.s32 0, %v947
        %v949 = vrot.slane %v440, %v948
        %v950 = vlaneseq
        %v951 = vshrl.u32 %v950, 7
        %v952 = vsub.s32 1, %v951
        %v953 = vrot.slane %v440, %v952
        %v954 = vlaneseq
        %v955 = vshrl.u32 %v954, 7
        %v956 = vsub.s32 2, %v955
        %v957 = vrot.slane %v440, %v956
        %v958 = vlaneseq
        %v959 = vshrl.u32 %v958, 7
        %v960 = vsub.s32 3, %v959
        %v961 = vrot.slane %v440, %v960
        %v962 = vlaneseq
        %v963 = vshrl.u32 %v962, 7
        %v964 = vsub.s32 4, %v963
        %v965 = vrot.slane %v440, %v964
        %v966 = vlaneseq
        %v967 = vshrl.u32 %v966, 7
        %v968 = vsub.s32 5, %v967
        %v969 = vrot.slane %v440, %v968
        %v970 = vlaneseq
        %v971 = vshrl.u32 %v970, 7
        %v972 = vsub.s32 6, %v971
        %v973 = vrot.slane %v440, %v972
        %v974 = vlaneseq
        %v975 = vshrl.u32 %v974, 7
        %v976 = vsub.s32 7, %v975
        %v977 = vrot.slane %v440, %v976
        %v978 = vlaneseq
        %v979 = vshrl.u32 %v978, 7
        %v980 = vsub.s32 0, %v979
        %v981 = vrot.slane %v443, %v980
        %v982 = vlaneseq
        %v983 = vshrl.u32 %v982, 7
        %v984 = vsub.s32 1, %v983
        %v985 = vrot.slane %v443, %v984
        %v986 = vlaneseq
        %v987 = vshrl.u32 %v986, 7
        %v988 = vsub.s32 2, %v987
        %v989 = vrot.slane %v443, %v988
        %v990 = vlaneseq
        %v991 = vshrl.u32 %v990, 7
        %v992 = vsub.s32 3, %v991
        %v993 = vrot.slane %v443, %v992
        %v994 = vlaneseq
        %v995 = vshrl.u32 %v994, 7
        %v996 = vsub.s32 4, %v995
        %v997 = vrot.slane %v443, %v996
        %v998 = vlaneseq
        %v999 = vshrl.u32 %v998, 7
        %v1000 = vsub.s32 5, %v999
        %v1001 = vrot.slane %v443, %v1000
        %v1002 = vlaneseq
        %v1003 = vshrl.u32 %v1002, 7
        %v1004 = vsub.s32 6, %v1003
        %v1005 = vrot.slane %v443, %v1004
        %v1006 = vlaneseq
        %v1007 = vshrl.u32 %v1006, 7
        %v1008 = vsub.s32 7, %v1007
        %v1009 = vrot.slane %v443, %v1008
        %v1026 = vadd.f32 %v949, %v440
        %v1027 = vadd.f32 %v949, %v443
        %v1028 = vadd.f32 %v953, %v440
        %v1029 = vadd.f32 %v953, %v443
        %v1030 = vadd.f32 %v957, %v440
        %v1031 = vadd.f32 %v957, %v443
        %v1032 = vadd.f32 %v961, %v440
        %v1033 = vadd.f32 %v961, %v443
        %v1034 = vadd.f32 %v965, %v440
        %v1035 = vadd.f32 %v965, %v443
        %v1036 = vadd.f32 %v969, %v440
        %v1037 = vadd.f32 %v969, %v443
        %v1038 = vadd.f32 %v973, %v440
        %v1039 = vadd.f32 %v973, %v443
        %v1040 = vadd.f32 %v977, %v440
        %v1041 = vadd.f32 %v977, %v443
        %v1042 = vadd.f32 %v981, %v440
        %v1043 = vadd.f32 %v981, %v443
        %v1044 = vadd.f32 %v985, %v440
        %v1045 = vadd.f32 %v985, %v443
        %v1046 = vadd.f32 %v989, %v440
        %v1047 = vadd.f32 %v989, %v443
        %v1048 = vadd.f32 %v993, %v440
        %v1049 = vadd.f32 %v993, %v443
        %v1050 = vadd.f32 %v997, %v440
        %v1051 = vadd.f32 %v997, %v443
        %v1052 = vadd.f32 %v1001, %v440
        %v1053 = vadd.f32 %v1001, %v443
        %v1054 = vadd.f32 %v1005, %v440
        %v1055 = vadd.f32 %v1005, %v443
        %v1056 = vadd.f32 %v1009, %v440
        %v1057 = vadd.f32 %v1009, %v443
        %v1058 = vmul.f32 %v912, 2.0
        %v1059 = vmul.f32 %v913, 2.0
        %v1060 = vmul.f32 %v914, 2.0
        %v1061 = vmul.f32 %v915, 2.0
        %v1062 = vmul.f32 %v916, 2.0
        %v1063 = vmul.f32 %v917, 2.0
        %v1064 = vmul.f32 %v918, 2.0
        %v1065 = vmul.f32 %v919, 2.0
        %v1066 = vmul.f32 %v920, 2.0
        %v1067 = vmul.f32 %v921, 2.0
        %v1068 = vmul.f32 %v922, 2.0
        %v1069 = vmul.f32 %v923, 2.0
        %v1070 = vmul.f32 %v924, 2.0
        %v1071 = vmul.f32 %v925, 2.0
        %v1072 = vmul.f32 %v926, 2.0
        %v1073 = vmul.f32 %v927, 2.0
        %v1074 = vmul.f32 %v928, 2.0
        %v1075 = vmul.f32 %v929, 2.0
        %v1076 = vmul.f32 %v930, 2.0
        %v1077 = vmul.f32 %v931, 2.0
        %v1078 = vmul.f32 %v932, 2.0
        %v1079 = vmul.f32 %v933, 2.0
        %v1080 = vmul.f32 %v934, 2.0
        %v1081 = vmul.f32 %v935, 2.0
        %v1082 = vmul.f32 %v936, 2.0
        %v1083 = vmul.f32 %v937, 2.0
        %v1084 = vmul.f32 %v938, 2.0
        %v1085 = vmul.f32 %v939, 2.0
        %v1086 = vmul.f32 %v940, 2.0
        %v1087 = vmul.f32 %v941, 2.0
        %v1088 = vmul.f32 %v942, 2.0
        %v1089 = vmul.f32 %v943, 2.0
        %v1090 = vsub.f32 %v1026, %v1058
        %v1091 = vsub.f32 %v1027, %v1059
        %v1092 = vsub.f32 %v1028, %v1060
        %v1093 = vsub.f32 %v1029, %v1061
        %v1094 = vsub.f32 %v1030, %v1062
        %v1095 = vsub.f32 %v1031, %v1063
        %v1096 = vsub.f32 %v1032, %v1064
        %v1097 = vsub.f32 %v1033, %v1065
        %v1098 = vsub.f32 %v1034, %v1066
        %v1099 = vsub.f32 %v1035, %v1067
        %v1100 = vsub.f32 %v1036, %v1068
        %v1101 = vsub.f32 %v1037, %v1069
        %v1102 = vsub.f32 %v1038, %v1070
        %v1103 = vsub.f32 %v1039, %v1071
        %v1104 = vsub.f32 %v1040, %v1072
        %v1105 = vsub.f32 %v1041, %v1073
        %v1106 = vsub.f32 %v1042, %v1074
        %v1107 = vsub.f32 %v1043, %v1075
        %v1108 = vsub.f32 %v1044, %v1076
        %v1109 = vsub.f32 %v1045, %v1077
        %v1110 = vsub.f32 %v1046, %v1078
        %v1111 = vsub.f32 %v1047, %v1079
        %v1112 = vsub.f32 %v1048, %v1080
        %v1113 = vsub.f32 %v1049, %v1081
        %v1114 = vsub.f32 %v1050, %v1082
        %v1115 = vsub.f32 %v1051, %v1083
        %v1116 = vsub.f32 %v1052, %v1084
        %v1117 = vsub.f32 %v1053, %v1085
        %v1118 = vsub.f32 %v1054, %v1086
        %v1119 = vsub.f32 %v1055, %v1087
        %v1120 = vsub.f32 %v1056, %v1088
        %v1121 = vsub.f32 %v1057, %v1089
        %v1122 = vld [vmem:[%s3 + $0x7] sm:$0x1]
        %v1123 = vld [vmem:[%s3] sm:$0x1]
        %v1126 = vcombine.high %v350, %v350
        %v1128 = vunpack.c.l.s4 1966171168
        %v1129 = vunpack.c.0.s8 %v1128
        %v1130 = vlaneseq
        %v1131 = vshrl.u32 %v1130, 7
        %v1132 = vsub.s32 %v1129, %v1131
        %v1133 = vrot.slane %v350, %v1132
        %v1135 = vunpack.c.l.s4 1966171168
        %v1136 = vunpack.c.0.s8 %v1135
        %v1137 = vlaneseq
        %v1138 = vshrl.u32 %v1137, 7
        %v1139 = vsub.s32 %v1136, %v1138
        %v1140 = vrot.slane %v1126, %v1139
        %v1141 = vcombine.high %v1133, %v1133
        %v1142 = vcombine.high %v1140, %v1140
        %v1144 = vunpack.c.l.s4 1966171168
        %v1145 = vunpack.c.0.s8 %v1144
        %v1146 = vlaneseq
        %v1147 = vshrl.u32 %v1146, 7
        %v1148 = vsub.s32 %v1145, %v1147
        %v1149 = vrot.slane %v1133, %v1148
        %v1151 = vunpack.c.l.s4 1966171168
        %v1152 = vunpack.c.0.s8 %v1151
        %v1153 = vlaneseq
        %v1154 = vshrl.u32 %v1153, 7
        %v1155 = vsub.s32 %v1152, %v1154
        %v1156 = vrot.slane %v1140, %v1155
        %v1158 = vunpack.c.l.s4 1966171168
        %v1159 = vunpack.c.0.s8 %v1158
        %v1160 = vlaneseq
        %v1161 = vshrl.u32 %v1160, 7
        %v1162 = vsub.s32 %v1159, %v1161
        %v1163 = vrot.slane %v1141, %v1162
        %v1165 = vunpack.c.l.s4 1966171168
        %v1166 = vunpack.c.0.s8 %v1165
        %v1167 = vlaneseq
        %v1168 = vshrl.u32 %v1167, 7
        %v1169 = vsub.s32 %v1166, %v1168
        %v1170 = vrot.slane %v1142, %v1169
        %v1171 = vcombine.high %v1149, %v1149
        %v1172 = vcombine.high %v1156, %v1156
        %v1173 = vcombine.high %v1163, %v1163
        %v1174 = vcombine.high %v1170, %v1170
        %v1175 = vcombine.high %v356, %v356
        %v1177 = vunpack.c.l.s4 1966171168
        %v1178 = vunpack.c.0.s8 %v1177
        %v1179 = vlaneseq
        %v1180 = vshrl.u32 %v1179, 7
        %v1181 = vsub.s32 %v1178, %v1180
        %v1182 = vrot.slane %v356, %v1181
        %v1184 = vunpack.c.l.s4 1966171168
        %v1185 = vunpack.c.0.s8 %v1184
        %v1186 = vlaneseq
        %v1187 = vshrl.u32 %v1186, 7
        %v1188 = vsub.s32 %v1185, %v1187
        %v1189 = vrot.slane %v1175, %v1188
        %v1190 = vcombine.high %v1182, %v1182
        %v1191 = vcombine.high %v1189, %v1189
        %v1193 = vunpack.c.l.s4 1966171168
        %v1194 = vunpack.c.0.s8 %v1193
        %v1195 = vlaneseq
        %v1196 = vshrl.u32 %v1195, 7
        %v1197 = vsub.s32 %v1194, %v1196
        %v1198 = vrot.slane %v1182, %v1197
        %v1200 = vunpack.c.l.s4 1966171168
        %v1201 = vunpack.c.0.s8 %v1200
        %v1202 = vlaneseq
        %v1203 = vshrl.u32 %v1202, 7
        %v1204 = vsub.s32 %v1201, %v1203
        %v1205 = vrot.slane %v1189, %v1204
        %v1207 = vunpack.c.l.s4 1966171168
        %v1208 = vunpack.c.0.s8 %v1207
        %v1209 = vlaneseq
        %v1210 = vshrl.u32 %v1209, 7
        %v1211 = vsub.s32 %v1208, %v1210
        %v1212 = vrot.slane %v1190, %v1211
        %v1214 = vunpack.c.l.s4 1966171168
        %v1215 = vunpack.c.0.s8 %v1214
        %v1216 = vlaneseq
        %v1217 = vshrl.u32 %v1216, 7
        %v1218 = vsub.s32 %v1215, %v1217
        %v1219 = vrot.slane %v1191, %v1218
        %v1220 = vcombine.high %v1198, %v1198
        %v1221 = vcombine.high %v1205, %v1205
        %v1222 = vcombine.high %v1212, %v1212
        %v1223 = vcombine.high %v1219, %v1219
        %v1224 = vlaneseq
        %v1225 = vshrl.u32 %v1224, 7
        %v1226 = vsub.s32 0, %v1225
        %v1227 = vrot.slane %v1149, %v1226
        %v1228 = vlaneseq
        %v1229 = vshrl.u32 %v1228, 7
        %v1230 = vsub.s32 0, %v1229
        %v1231 = vrot.slane %v1163, %v1230
        %v1232 = vlaneseq
        %v1233 = vshrl.u32 %v1232, 7
        %v1234 = vsub.s32 0, %v1233
        %v1235 = vrot.slane %v1171, %v1234
        %v1236 = vlaneseq
        %v1237 = vshrl.u32 %v1236, 7
        %v1238 = vsub.s32 0, %v1237
        %v1239 = vrot.slane %v1173, %v1238
        %v1240 = vlaneseq
        %v1241 = vshrl.u32 %v1240, 7
        %v1242 = vsub.s32 0, %v1241
        %v1243 = vrot.slane %v1156, %v1242
        %v1244 = vlaneseq
        %v1245 = vshrl.u32 %v1244, 7
        %v1246 = vsub.s32 0, %v1245
        %v1247 = vrot.slane %v1170, %v1246
        %v1248 = vlaneseq
        %v1249 = vshrl.u32 %v1248, 7
        %v1250 = vsub.s32 0, %v1249
        %v1251 = vrot.slane %v1172, %v1250
        %v1252 = vlaneseq
        %v1253 = vshrl.u32 %v1252, 7
        %v1254 = vsub.s32 0, %v1253
        %v1255 = vrot.slane %v1174, %v1254
        %v1256 = vlaneseq
        %v1257 = vshrl.u32 %v1256, 7
        %v1258 = vsub.s32 0, %v1257
        %v1259 = vrot.slane %v1198, %v1258
        %v1260 = vlaneseq
        %v1261 = vshrl.u32 %v1260, 7
        %v1262 = vsub.s32 0, %v1261
        %v1263 = vrot.slane %v1212, %v1262
        %v1264 = vlaneseq
        %v1265 = vshrl.u32 %v1264, 7
        %v1266 = vsub.s32 0, %v1265
        %v1267 = vrot.slane %v1220, %v1266
        %v1268 = vlaneseq
        %v1269 = vshrl.u32 %v1268, 7
        %v1270 = vsub.s32 0, %v1269
        %v1271 = vrot.slane %v1222, %v1270
        %v1272 = vlaneseq
        %v1273 = vshrl.u32 %v1272, 7
        %v1274 = vsub.s32 0, %v1273
        %v1275 = vrot.slane %v1205, %v1274
        %v1276 = vlaneseq
        %v1277 = vshrl.u32 %v1276, 7
        %v1278 = vsub.s32 0, %v1277
        %v1279 = vrot.slane %v1219, %v1278
        %v1280 = vlaneseq
        %v1281 = vshrl.u32 %v1280, 7
        %v1282 = vsub.s32 0, %v1281
        %v1283 = vrot.slane %v1221, %v1282
        %v1284 = vlaneseq
        %v1285 = vshrl.u32 %v1284, 7
        %v1286 = vsub.s32 0, %v1285
        %v1287 = vrot.slane %v1223, %v1286
        %v1304 = vadd.f32 %v1227, %v352
        %v1305 = vadd.f32 %v1227, %v358
        %v1306 = vadd.f32 %v1231, %v352
        %v1307 = vadd.f32 %v1231, %v358
        %v1308 = vadd.f32 %v1235, %v352
        %v1309 = vadd.f32 %v1235, %v358
        %v1310 = vadd.f32 %v1239, %v352
        %v1311 = vadd.f32 %v1239, %v358
        %v1312 = vadd.f32 %v1243, %v352
        %v1313 = vadd.f32 %v1243, %v358
        %v1314 = vadd.f32 %v1247, %v352
        %v1315 = vadd.f32 %v1247, %v358
        %v1316 = vadd.f32 %v1251, %v352
        %v1317 = vadd.f32 %v1251, %v358
        %v1318 = vadd.f32 %v1255, %v352
        %v1319 = vadd.f32 %v1255, %v358
        %v1320 = vadd.f32 %v1259, %v352
        %v1321 = vadd.f32 %v1259, %v358
        %v1322 = vadd.f32 %v1263, %v352
        %v1323 = vadd.f32 %v1263, %v358
        %v1324 = vadd.f32 %v1267, %v352
        %v1325 = vadd.f32 %v1267, %v358
        %v1326 = vadd.f32 %v1271, %v352
        %v1327 = vadd.f32 %v1271, %v358
        %v1328 = vadd.f32 %v1275, %v352
        %v1329 = vadd.f32 %v1275, %v358
        %v1330 = vadd.f32 %v1279, %v352
        %v1331 = vadd.f32 %v1279, %v358
        %v1332 = vadd.f32 %v1283, %v352
        %v1333 = vadd.f32 %v1283, %v358
        %v1334 = vadd.f32 %v1287, %v352
        %v1335 = vadd.f32 %v1287, %v358
        %1337 = vset.pattern.permute.xlu0 0
        %1338 = vperm.xlu0 %1337, %v1090
        %v1339 = vpop.permute.xlu0 %1338
        %1342 = vset.pattern.permute.xlu0 0
        %1343 = vperm.xlu0 %1342, %v1091
        %v1344 = vpop.permute.xlu0 %1343
        %1347 = vset.pattern.permute.xlu0 0
        %1348 = vperm.xlu0 %1347, %v1092
        %v1349 = vpop.permute.xlu0 %1348
        %1352 = vset.pattern.permute.xlu0 0
        %1353 = vperm.xlu0 %1352, %v1093
        %v1354 = vpop.permute.xlu0 %1353
        %1357 = vset.pattern.permute.xlu0 0
        %1358 = vperm.xlu0 %1357, %v1094
        %v1359 = vpop.permute.xlu0 %1358
        %1362 = vset.pattern.permute.xlu0 0
        %1363 = vperm.xlu0 %1362, %v1095
        %v1364 = vpop.permute.xlu0 %1363
        %1367 = vset.pattern.permute.xlu0 0
        %1368 = vperm.xlu0 %1367, %v1096
        %v1369 = vpop.permute.xlu0 %1368
        %1372 = vset.pattern.permute.xlu0 0
        %1373 = vperm.xlu0 %1372, %v1097
        %v1374 = vpop.permute.xlu0 %1373
        %1377 = vset.pattern.permute.xlu0 0
        %1378 = vperm.xlu0 %1377, %v1098
        %v1379 = vpop.permute.xlu0 %1378
        %1382 = vset.pattern.permute.xlu0 0
        %1383 = vperm.xlu0 %1382, %v1099
        %v1384 = vpop.permute.xlu0 %1383
        %1387 = vset.pattern.permute.xlu0 0
        %1388 = vperm.xlu0 %1387, %v1100
        %v1389 = vpop.permute.xlu0 %1388
        %1392 = vset.pattern.permute.xlu0 0
        %1393 = vperm.xlu0 %1392, %v1101
        %v1394 = vpop.permute.xlu0 %1393
        %1397 = vset.pattern.permute.xlu0 0
        %1398 = vperm.xlu0 %1397, %v1102
        %v1399 = vpop.permute.xlu0 %1398
        %1402 = vset.pattern.permute.xlu0 0
        %1403 = vperm.xlu0 %1402, %v1103
        %v1404 = vpop.permute.xlu0 %1403
        %1407 = vset.pattern.permute.xlu0 0
        %1408 = vperm.xlu0 %1407, %v1104
        %v1409 = vpop.permute.xlu0 %1408
        %1412 = vset.pattern.permute.xlu0 0
        %1413 = vperm.xlu0 %1412, %v1105
        %v1414 = vpop.permute.xlu0 %1413
        %1417 = vset.pattern.permute.xlu0 0
        %1418 = vperm.xlu0 %1417, %v1106
        %v1419 = vpop.permute.xlu0 %1418
        %1422 = vset.pattern.permute.xlu0 0
        %1423 = vperm.xlu0 %1422, %v1107
        %v1424 = vpop.permute.xlu0 %1423
        %1427 = vset.pattern.permute.xlu0 0
        %1428 = vperm.xlu0 %1427, %v1108
        %v1429 = vpop.permute.xlu0 %1428
        %1432 = vset.pattern.permute.xlu0 0
        %1433 = vperm.xlu0 %1432, %v1109
        %v1434 = vpop.permute.xlu0 %1433
        %1437 = vset.pattern.permute.xlu0 0
        %1438 = vperm.xlu0 %1437, %v1110
        %v1439 = vpop.permute.xlu0 %1438
        %1442 = vset.pattern.permute.xlu0 0
        %1443 = vperm.xlu0 %1442, %v1111
        %v1444 = vpop.permute.xlu0 %1443
        %1447 = vset.pattern.permute.xlu0 0
        %1448 = vperm.xlu0 %1447, %v1112
        %v1449 = vpop.permute.xlu0 %1448
        %1452 = vset.pattern.permute.xlu0 0
        %1453 = vperm.xlu0 %1452, %v1113
        %v1454 = vpop.permute.xlu0 %1453
        %1457 = vset.pattern.permute.xlu0 0
        %1458 = vperm.xlu0 %1457, %v1114
        %v1459 = vpop.permute.xlu0 %1458
        %1462 = vset.pattern.permute.xlu0 0
        %1463 = vperm.xlu0 %1462, %v1115
        %v1464 = vpop.permute.xlu0 %1463
        %1467 = vset.pattern.permute.xlu0 0
        %1468 = vperm.xlu0 %1467, %v1116
        %v1469 = vpop.permute.xlu0 %1468
        %1472 = vset.pattern.permute.xlu0 0
        %1473 = vperm.xlu0 %1472, %v1117
        %v1474 = vpop.permute.xlu0 %1473
        %1477 = vset.pattern.permute.xlu0 0
        %1478 = vperm.xlu0 %1477, %v1118
        %v1479 = vpop.permute.xlu0 %1478
        %1482 = vset.pattern.permute.xlu0 0
        %1483 = vperm.xlu0 %1482, %v1119
        %v1484 = vpop.permute.xlu0 %1483
        %1487 = vset.pattern.permute.xlu0 0
        %1488 = vperm.xlu0 %1487, %v1120
        %v1489 = vpop.permute.xlu0 %1488
        %1492 = vset.pattern.permute.xlu0 0
        %1493 = vperm.xlu0 %1492, %v1121
        %v1494 = vpop.permute.xlu0 %1493
        %v1496 = vlaneseq
        %v1497 = vshrl.u32 %v1496, 7
        %v1498 = vsub.s32 0, %v1497
        %v1499 = vrot.slane %v1122, %v1498
        %v1500 = vmul.f32 %v1339, %v1499
        %v1501 = vmul.f32 %v1344, %v1499
        %v1502 = vmul.f32 %v1349, %v1499
        %v1503 = vmul.f32 %v1354, %v1499
        %v1504 = vmul.f32 %v1359, %v1499
        %v1505 = vmul.f32 %v1364, %v1499
        %v1506 = vmul.f32 %v1369, %v1499
        %v1507 = vmul.f32 %v1374, %v1499
        %v1508 = vmul.f32 %v1379, %v1499
        %v1509 = vmul.f32 %v1384, %v1499
        %v1510 = vmul.f32 %v1389, %v1499
        %v1511 = vmul.f32 %v1394, %v1499
        %v1512 = vmul.f32 %v1399, %v1499
        %v1513 = vmul.f32 %v1404, %v1499
        %v1514 = vmul.f32 %v1409, %v1499
        %v1515 = vmul.f32 %v1414, %v1499
        %v1516 = vmul.f32 %v1419, %v1499
        %v1517 = vmul.f32 %v1424, %v1499
        %v1518 = vmul.f32 %v1429, %v1499
        %v1519 = vmul.f32 %v1434, %v1499
        %v1520 = vmul.f32 %v1439, %v1499
        %v1521 = vmul.f32 %v1444, %v1499
        %v1522 = vmul.f32 %v1449, %v1499
        %v1523 = vmul.f32 %v1454, %v1499
        %v1524 = vmul.f32 %v1459, %v1499
        %v1525 = vmul.f32 %v1464, %v1499
        %v1526 = vmul.f32 %v1469, %v1499
        %v1527 = vmul.f32 %v1474, %v1499
        %v1528 = vmul.f32 %v1479, %v1499
        %v1529 = vmul.f32 %v1484, %v1499
        %v1530 = vmul.f32 %v1489, %v1499
        %v1531 = vmul.f32 %v1494, %v1499
        %v1532 = vadd.f32 %v1304, %v1500
        %v1533 = vadd.f32 %v1305, %v1501
        %v1534 = vadd.f32 %v1306, %v1502
        %v1535 = vadd.f32 %v1307, %v1503
        %v1536 = vadd.f32 %v1308, %v1504
        %v1537 = vadd.f32 %v1309, %v1505
        %v1538 = vadd.f32 %v1310, %v1506
        %v1539 = vadd.f32 %v1311, %v1507
        %v1540 = vadd.f32 %v1312, %v1508
        %v1541 = vadd.f32 %v1313, %v1509
        %v1542 = vadd.f32 %v1314, %v1510
        %v1543 = vadd.f32 %v1315, %v1511
        %v1544 = vadd.f32 %v1316, %v1512
        %v1545 = vadd.f32 %v1317, %v1513
        %v1546 = vadd.f32 %v1318, %v1514
        %v1547 = vadd.f32 %v1319, %v1515
        %v1548 = vadd.f32 %v1320, %v1516
        %v1549 = vadd.f32 %v1321, %v1517
        %v1550 = vadd.f32 %v1322, %v1518
        %v1551 = vadd.f32 %v1323, %v1519
        %v1552 = vadd.f32 %v1324, %v1520
        %v1553 = vadd.f32 %v1325, %v1521
        %v1554 = vadd.f32 %v1326, %v1522
        %v1555 = vadd.f32 %v1327, %v1523
        %v1556 = vadd.f32 %v1328, %v1524
        %v1557 = vadd.f32 %v1329, %v1525
        %v1558 = vadd.f32 %v1330, %v1526
        %v1559 = vadd.f32 %v1331, %v1527
        %v1560 = vadd.f32 %v1332, %v1528
        %v1561 = vadd.f32 %v1333, %v1529
        %v1562 = vadd.f32 %v1334, %v1530
        %v1563 = vadd.f32 %v1335, %v1531
        %v1564 = vlaneseq
        %v1565 = vshrl.u32 %v1564, 7
        %v1566 = vsub.s32 0, %v1565
        %v1567 = vrot.slane %v1123, %v1566
        %v1568 = vadd.f32 %v1532, %v1567
        %v1569 = vadd.f32 %v1533, %v1567
        %v1570 = vadd.f32 %v1534, %v1567
        %v1571 = vadd.f32 %v1535, %v1567
        %v1572 = vadd.f32 %v1536, %v1567
        %v1573 = vadd.f32 %v1537, %v1567
        %v1574 = vadd.f32 %v1538, %v1567
        %v1575 = vadd.f32 %v1539, %v1567
        %v1576 = vadd.f32 %v1540, %v1567
        %v1577 = vadd.f32 %v1541, %v1567
        %v1578 = vadd.f32 %v1542, %v1567
        %v1579 = vadd.f32 %v1543, %v1567
        %v1580 = vadd.f32 %v1544, %v1567
        %v1581 = vadd.f32 %v1545, %v1567
        %v1582 = vadd.f32 %v1546, %v1567
        %v1583 = vadd.f32 %v1547, %v1567
        %v1584 = vadd.f32 %v1548, %v1567
        %v1585 = vadd.f32 %v1549, %v1567
        %v1586 = vadd.f32 %v1550, %v1567
        %v1587 = vadd.f32 %v1551, %v1567
        %v1588 = vadd.f32 %v1552, %v1567
        %v1589 = vadd.f32 %v1553, %v1567
        %v1590 = vadd.f32 %v1554, %v1567
        %v1591 = vadd.f32 %v1555, %v1567
        %v1592 = vadd.f32 %v1556, %v1567
        %v1593 = vadd.f32 %v1557, %v1567
        %v1594 = vadd.f32 %v1558, %v1567
        %v1595 = vadd.f32 %v1559, %v1567
        %v1596 = vadd.f32 %v1560, %v1567
        %v1597 = vadd.f32 %v1561, %v1567
        %v1598 = vadd.f32 %v1562, %v1567
        %v1599 = vadd.f32 %v1563, %v1567
        %v1600 = vld [vmem:[%s230] sm:$0xff]
        %v1601 = vld [vmem:[%s230 + $0x8] sm:$0xff]
        %v1602 = vld [vmem:[%s230 + $0x10] sm:$0xff]
        %v1603 = vld [vmem:[%s230 + $0x18] sm:$0xff]
        %v1604 = vld [vmem:[%s230 + $0x20] sm:$0xff]
        %v1605 = vld [vmem:[%s230 + $0x28] sm:$0xff]
        %v1606 = vld [vmem:[%s230 + $0x30] sm:$0xff]
        %v1607 = vld [vmem:[%s230 + $0x38] sm:$0xff]
        %v1608 = vld [vmem:[%s230 + $0x40] sm:$0xff]
        %v1609 = vld [vmem:[%s230 + $0x48] sm:$0xff]
        %v1610 = vld [vmem:[%s230 + $0x50] sm:$0xff]
        %v1611 = vld [vmem:[%s230 + $0x58] sm:$0xff]
        %v1612 = vld [vmem:[%s230 + $0x60] sm:$0xff]
        %v1613 = vld [vmem:[%s230 + $0x68] sm:$0xff]
        %v1614 = vld [vmem:[%s230 + $0x70] sm:$0xff]
        %v1615 = vld [vmem:[%s230 + $0x78] sm:$0xff]
        %v1616 = vld [vmem:[%s230 + $0x80] sm:$0xff]
        %v1617 = vld [vmem:[%s230 + $0x88] sm:$0xff]
        %v1618 = vld [vmem:[%s230 + $0x90] sm:$0xff]
        %v1619 = vld [vmem:[%s230 + $0x98] sm:$0xff]
        %v1620 = vld [vmem:[%s230 + $0xa0] sm:$0xff]
        %v1621 = vld [vmem:[%s230 + $0xa8] sm:$0xff]
        %v1622 = vld [vmem:[%s230 + $0xb0] sm:$0xff]
        %v1623 = vld [vmem:[%s230 + $0xb8] sm:$0xff]
        %v1624 = vld [vmem:[%s230 + $0xc0] sm:$0xff]
        %v1625 = vld [vmem:[%s230 + $0xc8] sm:$0xff]
        %v1626 = vld [vmem:[%s230 + $0xd0] sm:$0xff]
        %v1627 = vld [vmem:[%s230 + $0xd8] sm:$0xff]
        %v1628 = vld [vmem:[%s230 + $0xe0] sm:$0xff]
        %v1629 = vld [vmem:[%s230 + $0xe8] sm:$0xff]
        %v1630 = vld [vmem:[%s230 + $0xf0] sm:$0xff]
        %v1631 = vld [vmem:[%s230 + $0xf8] sm:$0xff]
        %v1632 = vld [vmem:[%s3 + $0x9] sm:$0x1]
        %1634 = vset.pattern.permute.xlu0 0
        %1635 = vperm.xlu0 %1634, %v1600
        %v1636 = vpop.permute.xlu0 %1635
        %1639 = vset.pattern.permute.xlu0 0
        %1640 = vperm.xlu0 %1639, %v1601
        %v1641 = vpop.permute.xlu0 %1640
        %1644 = vset.pattern.permute.xlu0 0
        %1645 = vperm.xlu0 %1644, %v1602
        %v1646 = vpop.permute.xlu0 %1645
        %1649 = vset.pattern.permute.xlu0 0
        %1650 = vperm.xlu0 %1649, %v1603
        %v1651 = vpop.permute.xlu0 %1650
        %1654 = vset.pattern.permute.xlu0 0
        %1655 = vperm.xlu0 %1654, %v1604
        %v1656 = vpop.permute.xlu0 %1655
        %1659 = vset.pattern.permute.xlu0 0
        %1660 = vperm.xlu0 %1659, %v1605
        %v1661 = vpop.permute.xlu0 %1660
        %1664 = vset.pattern.permute.xlu0 0
        %1665 = vperm.xlu0 %1664, %v1606
        %v1666 = vpop.permute.xlu0 %1665
        %1669 = vset.pattern.permute.xlu0 0
        %1670 = vperm.xlu0 %1669, %v1607
        %v1671 = vpop.permute.xlu0 %1670
        %1674 = vset.pattern.permute.xlu0 0
        %1675 = vperm.xlu0 %1674, %v1608
        %v1676 = vpop.permute.xlu0 %1675
        %1679 = vset.pattern.permute.xlu0 0
        %1680 = vperm.xlu0 %1679, %v1609
        %v1681 = vpop.permute.xlu0 %1680
        %1684 = vset.pattern.permute.xlu0 0
        %1685 = vperm.xlu0 %1684, %v1610
        %v1686 = vpop.permute.xlu0 %1685
        %1689 = vset.pattern.permute.xlu0 0
        %1690 = vperm.xlu0 %1689, %v1611
        %v1691 = vpop.permute.xlu0 %1690
        %1694 = vset.pattern.permute.xlu0 0
        %1695 = vperm.xlu0 %1694, %v1612
        %v1696 = vpop.permute.xlu0 %1695
        %1699 = vset.pattern.permute.xlu0 0
        %1700 = vperm.xlu0 %1699, %v1613
        %v1701 = vpop.permute.xlu0 %1700
        %1704 = vset.pattern.permute.xlu0 0
        %1705 = vperm.xlu0 %1704, %v1614
        %v1706 = vpop.permute.xlu0 %1705
        %1709 = vset.pattern.permute.xlu0 0
        %1710 = vperm.xlu0 %1709, %v1615
        %v1711 = vpop.permute.xlu0 %1710
        %1714 = vset.pattern.permute.xlu0 0
        %1715 = vperm.xlu0 %1714, %v1616
        %v1716 = vpop.permute.xlu0 %1715
        %1719 = vset.pattern.permute.xlu0 0
        %1720 = vperm.xlu0 %1719, %v1617
        %v1721 = vpop.permute.xlu0 %1720
        %1724 = vset.pattern.permute.xlu0 0
        %1725 = vperm.xlu0 %1724, %v1618
        %v1726 = vpop.permute.xlu0 %1725
        %1729 = vset.pattern.permute.xlu0 0
        %1730 = vperm.xlu0 %1729, %v1619
        %v1731 = vpop.permute.xlu0 %1730
        %1734 = vset.pattern.permute.xlu0 0
        %1735 = vperm.xlu0 %1734, %v1620
        %v1736 = vpop.permute.xlu0 %1735
        %1739 = vset.pattern.permute.xlu0 0
        %1740 = vperm.xlu0 %1739, %v1621
        %v1741 = vpop.permute.xlu0 %1740
        %1744 = vset.pattern.permute.xlu0 0
        %1745 = vperm.xlu0 %1744, %v1622
        %v1746 = vpop.permute.xlu0 %1745
        %1749 = vset.pattern.permute.xlu0 0
        %1750 = vperm.xlu0 %1749, %v1623
        %v1751 = vpop.permute.xlu0 %1750
        %1754 = vset.pattern.permute.xlu0 0
        %1755 = vperm.xlu0 %1754, %v1624
        %v1756 = vpop.permute.xlu0 %1755
        %1759 = vset.pattern.permute.xlu0 0
        %1760 = vperm.xlu0 %1759, %v1625
        %v1761 = vpop.permute.xlu0 %1760
        %1764 = vset.pattern.permute.xlu0 0
        %1765 = vperm.xlu0 %1764, %v1626
        %v1766 = vpop.permute.xlu0 %1765
        %1769 = vset.pattern.permute.xlu0 0
        %1770 = vperm.xlu0 %1769, %v1627
        %v1771 = vpop.permute.xlu0 %1770
        %1774 = vset.pattern.permute.xlu0 0
        %1775 = vperm.xlu0 %1774, %v1628
        %v1776 = vpop.permute.xlu0 %1775
        %1779 = vset.pattern.permute.xlu0 0
        %1780 = vperm.xlu0 %1779, %v1629
        %v1781 = vpop.permute.xlu0 %1780
        %1784 = vset.pattern.permute.xlu0 0
        %1785 = vperm.xlu0 %1784, %v1630
        %v1786 = vpop.permute.xlu0 %1785
        %1789 = vset.pattern.permute.xlu0 0
        %1790 = vperm.xlu0 %1789, %v1631
        %v1791 = vpop.permute.xlu0 %1790
        %v1793 = vlaneseq
        %v1794 = vshrl.u32 %v1793, 7
        %v1795 = vsub.s32 0, %v1794
        %v1796 = vrot.slane %v1632, %v1795
        %v1797 = vmul.f32 %v1636, %v1796
        %v1798 = vmul.f32 %v1641, %v1796
        %v1799 = vmul.f32 %v1646, %v1796
        %v1800 = vmul.f32 %v1651, %v1796
        %v1801 = vmul.f32 %v1656, %v1796
        %v1802 = vmul.f32 %v1661, %v1796
        %v1803 = vmul.f32 %v1666, %v1796
        %v1804 = vmul.f32 %v1671, %v1796
        %v1805 = vmul.f32 %v1676, %v1796
        %v1806 = vmul.f32 %v1681, %v1796
        %v1807 = vmul.f32 %v1686, %v1796
        %v1808 = vmul.f32 %v1691, %v1796
        %v1809 = vmul.f32 %v1696, %v1796
        %v1810 = vmul.f32 %v1701, %v1796
        %v1811 = vmul.f32 %v1706, %v1796
        %v1812 = vmul.f32 %v1711, %v1796
        %v1813 = vmul.f32 %v1716, %v1796
        %v1814 = vmul.f32 %v1721, %v1796
        %v1815 = vmul.f32 %v1726, %v1796
        %v1816 = vmul.f32 %v1731, %v1796
        %v1817 = vmul.f32 %v1736, %v1796
        %v1818 = vmul.f32 %v1741, %v1796
        %v1819 = vmul.f32 %v1746, %v1796
        %v1820 = vmul.f32 %v1751, %v1796
        %v1821 = vmul.f32 %v1756, %v1796
        %v1822 = vmul.f32 %v1761, %v1796
        %v1823 = vmul.f32 %v1766, %v1796
        %v1824 = vmul.f32 %v1771, %v1796
        %v1825 = vmul.f32 %v1776, %v1796
        %v1826 = vmul.f32 %v1781, %v1796
        %v1827 = vmul.f32 %v1786, %v1796
        %v1828 = vmul.f32 %v1791, %v1796
        %v1829 = vadd.f32 %v1568, %v1797
        %v1830 = vadd.f32 %v1569, %v1798
        %v1831 = vadd.f32 %v1570, %v1799
        %v1832 = vadd.f32 %v1571, %v1800
        %v1833 = vadd.f32 %v1572, %v1801
        %v1834 = vadd.f32 %v1573, %v1802
        %v1835 = vadd.f32 %v1574, %v1803
        %v1836 = vadd.f32 %v1575, %v1804
        %v1837 = vadd.f32 %v1576, %v1805
        %v1838 = vadd.f32 %v1577, %v1806
        %v1839 = vadd.f32 %v1578, %v1807
        %v1840 = vadd.f32 %v1579, %v1808
        %v1841 = vadd.f32 %v1580, %v1809
        %v1842 = vadd.f32 %v1581, %v1810
        %v1843 = vadd.f32 %v1582, %v1811
        %v1844 = vadd.f32 %v1583, %v1812
        %v1845 = vadd.f32 %v1584, %v1813
        %v1846 = vadd.f32 %v1585, %v1814
        %v1847 = vadd.f32 %v1586, %v1815
        %v1848 = vadd.f32 %v1587, %v1816
        %v1849 = vadd.f32 %v1588, %v1817
        %v1850 = vadd.f32 %v1589, %v1818
        %v1851 = vadd.f32 %v1590, %v1819
        %v1852 = vadd.f32 %v1591, %v1820
        %v1853 = vadd.f32 %v1592, %v1821
        %v1854 = vadd.f32 %v1593, %v1822
        %v1855 = vadd.f32 %v1594, %v1823
        %v1856 = vadd.f32 %v1595, %v1824
        %v1857 = vadd.f32 %v1596, %v1825
        %v1858 = vadd.f32 %v1597, %v1826
        %v1859 = vadd.f32 %v1598, %v1827
        %v1860 = vadd.f32 %v1599, %v1828
        %v1861 = vld [vmem:[%s3 + $0xa] sm:$0x1]
        %1862 = vset.pattern.permute.xlu0 1
        %1863 = vperm.xlu0 %1862, %v1600
        %v1864 = vpop.permute.xlu0 %1863
        %1866 = vset.pattern.permute.xlu0 1
        %1867 = vperm.xlu0 %1866, %v1601
        %v1868 = vpop.permute.xlu0 %1867
        %1870 = vset.pattern.permute.xlu0 1
        %1871 = vperm.xlu0 %1870, %v1602
        %v1872 = vpop.permute.xlu0 %1871
        %1874 = vset.pattern.permute.xlu0 1
        %1875 = vperm.xlu0 %1874, %v1603
        %v1876 = vpop.permute.xlu0 %1875
        %1878 = vset.pattern.permute.xlu0 1
        %1879 = vperm.xlu0 %1878, %v1604
        %v1880 = vpop.permute.xlu0 %1879
        %1882 = vset.pattern.permute.xlu0 1
        %1883 = vperm.xlu0 %1882, %v1605
        %v1884 = vpop.permute.xlu0 %1883
        %1886 = vset.pattern.permute.xlu0 1
        %1887 = vperm.xlu0 %1886, %v1606
        %v1888 = vpop.permute.xlu0 %1887
        %1890 = vset.pattern.permute.xlu0 1
        %1891 = vperm.xlu0 %1890, %v1607
        %v1892 = vpop.permute.xlu0 %1891
        %1894 = vset.pattern.permute.xlu0 1
        %1895 = vperm.xlu0 %1894, %v1608
        %v1896 = vpop.permute.xlu0 %1895
        %1898 = vset.pattern.permute.xlu0 1
        %1899 = vperm.xlu0 %1898, %v1609
        %v1900 = vpop.permute.xlu0 %1899
        %1902 = vset.pattern.permute.xlu0 1
        %1903 = vperm.xlu0 %1902, %v1610
        %v1904 = vpop.permute.xlu0 %1903
        %1906 = vset.pattern.permute.xlu0 1
        %1907 = vperm.xlu0 %1906, %v1611
        %v1908 = vpop.permute.xlu0 %1907
        %1910 = vset.pattern.permute.xlu0 1
        %1911 = vperm.xlu0 %1910, %v1612
        %v1912 = vpop.permute.xlu0 %1911
        %1914 = vset.pattern.permute.xlu0 1
        %1915 = vperm.xlu0 %1914, %v1613
        %v1916 = vpop.permute.xlu0 %1915
        %1918 = vset.pattern.permute.xlu0 1
        %1919 = vperm.xlu0 %1918, %v1614
        %v1920 = vpop.permute.xlu0 %1919
        %1922 = vset.pattern.permute.xlu0 1
        %1923 = vperm.xlu0 %1922, %v1615
        %v1924 = vpop.permute.xlu0 %1923
        %1926 = vset.pattern.permute.xlu0 1
        %1927 = vperm.xlu0 %1926, %v1616
        %v1928 = vpop.permute.xlu0 %1927
        %1930 = vset.pattern.permute.xlu0 1
        %1931 = vperm.xlu0 %1930, %v1617
        %v1932 = vpop.permute.xlu0 %1931
        %1934 = vset.pattern.permute.xlu0 1
        %1935 = vperm.xlu0 %1934, %v1618
        %v1936 = vpop.permute.xlu0 %1935
        %1938 = vset.pattern.permute.xlu0 1
        %1939 = vperm.xlu0 %1938, %v1619
        %v1940 = vpop.permute.xlu0 %1939
        %1942 = vset.pattern.permute.xlu0 1
        %1943 = vperm.xlu0 %1942, %v1620
        %v1944 = vpop.permute.xlu0 %1943
        %1946 = vset.pattern.permute.xlu0 1
        %1947 = vperm.xlu0 %1946, %v1621
        %v1948 = vpop.permute.xlu0 %1947
        %1950 = vset.pattern.permute.xlu0 1
        %1951 = vperm.xlu0 %1950, %v1622
        %v1952 = vpop.permute.xlu0 %1951
        %1954 = vset.pattern.permute.xlu0 1
        %1955 = vperm.xlu0 %1954, %v1623
        %v1956 = vpop.permute.xlu0 %1955
        %1958 = vset.pattern.permute.xlu0 1
        %1959 = vperm.xlu0 %1958, %v1624
        %v1960 = vpop.permute.xlu0 %1959
        %1962 = vset.pattern.permute.xlu0 1
        %1963 = vperm.xlu0 %1962, %v1625
        %v1964 = vpop.permute.xlu0 %1963
        %1966 = vset.pattern.permute.xlu0 1
        %1967 = vperm.xlu0 %1966, %v1626
        %v1968 = vpop.permute.xlu0 %1967
        %1970 = vset.pattern.permute.xlu0 1
        %1971 = vperm.xlu0 %1970, %v1627
        %v1972 = vpop.permute.xlu0 %1971
        %1974 = vset.pattern.permute.xlu0 1
        %1975 = vperm.xlu0 %1974, %v1628
        %v1976 = vpop.permute.xlu0 %1975
        %1978 = vset.pattern.permute.xlu0 1
        %1979 = vperm.xlu0 %1978, %v1629
        %v1980 = vpop.permute.xlu0 %1979
        %1982 = vset.pattern.permute.xlu0 1
        %1983 = vperm.xlu0 %1982, %v1630
        %v1984 = vpop.permute.xlu0 %1983
        %1986 = vset.pattern.permute.xlu0 1
        %1987 = vperm.xlu0 %1986, %v1631
        %v1988 = vpop.permute.xlu0 %1987
        %v1990 = vlaneseq
        %v1991 = vshrl.u32 %v1990, 7
        %v1992 = vsub.s32 0, %v1991
        %v1993 = vrot.slane %v1861, %v1992
        %v1994 = vmul.f32 %v1864, %v1993
        %v1995 = vmul.f32 %v1868, %v1993
        %v1996 = vmul.f32 %v1872, %v1993
        %v1997 = vmul.f32 %v1876, %v1993
        %v1998 = vmul.f32 %v1880, %v1993
        %v1999 = vmul.f32 %v1884, %v1993
        %v2000 = vmul.f32 %v1888, %v1993
        %v2001 = vmul.f32 %v1892, %v1993
        %v2002 = vmul.f32 %v1896, %v1993
        %v2003 = vmul.f32 %v1900, %v1993
        %v2004 = vmul.f32 %v1904, %v1993
        %v2005 = vmul.f32 %v1908, %v1993
        %v2006 = vmul.f32 %v1912, %v1993
        %v2007 = vmul.f32 %v1916, %v1993
        %v2008 = vmul.f32 %v1920, %v1993
        %v2009 = vmul.f32 %v1924, %v1993
        %v2010 = vmul.f32 %v1928, %v1993
        %v2011 = vmul.f32 %v1932, %v1993
        %v2012 = vmul.f32 %v1936, %v1993
        %v2013 = vmul.f32 %v1940, %v1993
        %v2014 = vmul.f32 %v1944, %v1993
        %v2015 = vmul.f32 %v1948, %v1993
        %v2016 = vmul.f32 %v1952, %v1993
        %v2017 = vmul.f32 %v1956, %v1993
        %v2018 = vmul.f32 %v1960, %v1993
        %v2019 = vmul.f32 %v1964, %v1993
        %v2020 = vmul.f32 %v1968, %v1993
        %v2021 = vmul.f32 %v1972, %v1993
        %v2022 = vmul.f32 %v1976, %v1993
        %v2023 = vmul.f32 %v1980, %v1993
        %v2024 = vmul.f32 %v1984, %v1993
        %v2025 = vmul.f32 %v1988, %v1993
        %v2026 = vadd.f32 %v1829, %v1994
        %v2027 = vadd.f32 %v1830, %v1995
        %v2028 = vadd.f32 %v1831, %v1996
        %v2029 = vadd.f32 %v1832, %v1997
        %v2030 = vadd.f32 %v1833, %v1998
        %v2031 = vadd.f32 %v1834, %v1999
        %v2032 = vadd.f32 %v1835, %v2000
        %v2033 = vadd.f32 %v1836, %v2001
        %v2034 = vadd.f32 %v1837, %v2002
        %v2035 = vadd.f32 %v1838, %v2003
        %v2036 = vadd.f32 %v1839, %v2004
        %v2037 = vadd.f32 %v1840, %v2005
        %v2038 = vadd.f32 %v1841, %v2006
        %v2039 = vadd.f32 %v1842, %v2007
        %v2040 = vadd.f32 %v1843, %v2008
        %v2041 = vadd.f32 %v1844, %v2009
        %v2042 = vadd.f32 %v1845, %v2010
        %v2043 = vadd.f32 %v1846, %v2011
        %v2044 = vadd.f32 %v1847, %v2012
        %v2045 = vadd.f32 %v1848, %v2013
        %v2046 = vadd.f32 %v1849, %v2014
        %v2047 = vadd.f32 %v1850, %v2015
        %v2048 = vadd.f32 %v1851, %v2016
        %v2049 = vadd.f32 %v1852, %v2017
        %v2050 = vadd.f32 %v1853, %v2018
        %v2051 = vadd.f32 %v1854, %v2019
        %v2052 = vadd.f32 %v1855, %v2020
        %v2053 = vadd.f32 %v1856, %v2021
        %v2054 = vadd.f32 %v1857, %v2022
        %v2055 = vadd.f32 %v1858, %v2023
        %v2056 = vadd.f32 %v1859, %v2024
        %v2057 = vadd.f32 %v1860, %v2025
        %v2058 = vld [vmem:[%s3 + $0xb] sm:$0x1]
        %2059 = vset.pattern.permute.xlu0 2
        %2060 = vperm.xlu0 %2059, %v1600
        %v2061 = vpop.permute.xlu0 %2060
        %2063 = vset.pattern.permute.xlu0 2
        %2064 = vperm.xlu0 %2063, %v1601
        %v2065 = vpop.permute.xlu0 %2064
        %2067 = vset.pattern.permute.xlu0 2
        %2068 = vperm.xlu0 %2067, %v1602
        %v2069 = vpop.permute.xlu0 %2068
        %2071 = vset.pattern.permute.xlu0 2
        %2072 = vperm.xlu0 %2071, %v1603
        %v2073 = vpop.permute.xlu0 %2072
        %2075 = vset.pattern.permute.xlu0 2
        %2076 = vperm.xlu0 %2075, %v1604
        %v2077 = vpop.permute.xlu0 %2076
        %2079 = vset.pattern.permute.xlu0 2
        %2080 = vperm.xlu0 %2079, %v1605
        %v2081 = vpop.permute.xlu0 %2080
        %2083 = vset.pattern.permute.xlu0 2
        %2084 = vperm.xlu0 %2083, %v1606
        %v2085 = vpop.permute.xlu0 %2084
        %2087 = vset.pattern.permute.xlu0 2
        %2088 = vperm.xlu0 %2087, %v1607
        %v2089 = vpop.permute.xlu0 %2088
        %2091 = vset.pattern.permute.xlu0 2
        %2092 = vperm.xlu0 %2091, %v1608
        %v2093 = vpop.permute.xlu0 %2092
        %2095 = vset.pattern.permute.xlu0 2
        %2096 = vperm.xlu0 %2095, %v1609
        %v2097 = vpop.permute.xlu0 %2096
        %2099 = vset.pattern.permute.xlu0 2
        %2100 = vperm.xlu0 %2099, %v1610
        %v2101 = vpop.permute.xlu0 %2100
        %2103 = vset.pattern.permute.xlu0 2
        %2104 = vperm.xlu0 %2103, %v1611
        %v2105 = vpop.permute.xlu0 %2104
        %2107 = vset.pattern.permute.xlu0 2
        %2108 = vperm.xlu0 %2107, %v1612
        %v2109 = vpop.permute.xlu0 %2108
        %2111 = vset.pattern.permute.xlu0 2
        %2112 = vperm.xlu0 %2111, %v1613
        %v2113 = vpop.permute.xlu0 %2112
        %2115 = vset.pattern.permute.xlu0 2
        %2116 = vperm.xlu0 %2115, %v1614
        %v2117 = vpop.permute.xlu0 %2116
        %2119 = vset.pattern.permute.xlu0 2
        %2120 = vperm.xlu0 %2119, %v1615
        %v2121 = vpop.permute.xlu0 %2120
        %2123 = vset.pattern.permute.xlu0 2
        %2124 = vperm.xlu0 %2123, %v1616
        %v2125 = vpop.permute.xlu0 %2124
        %2127 = vset.pattern.permute.xlu0 2
        %2128 = vperm.xlu0 %2127, %v1617
        %v2129 = vpop.permute.xlu0 %2128
        %2131 = vset.pattern.permute.xlu0 2
        %2132 = vperm.xlu0 %2131, %v1618
        %v2133 = vpop.permute.xlu0 %2132
        %2135 = vset.pattern.permute.xlu0 2
        %2136 = vperm.xlu0 %2135, %v1619
        %v2137 = vpop.permute.xlu0 %2136
        %2139 = vset.pattern.permute.xlu0 2
        %2140 = vperm.xlu0 %2139, %v1620
        %v2141 = vpop.permute.xlu0 %2140
        %2143 = vset.pattern.permute.xlu0 2
        %2144 = vperm.xlu0 %2143, %v1621
        %v2145 = vpop.permute.xlu0 %2144
        %2147 = vset.pattern.permute.xlu0 2
        %2148 = vperm.xlu0 %2147, %v1622
        %v2149 = vpop.permute.xlu0 %2148
        %2151 = vset.pattern.permute.xlu0 2
        %2152 = vperm.xlu0 %2151, %v1623
        %v2153 = vpop.permute.xlu0 %2152
        %2155 = vset.pattern.permute.xlu0 2
        %2156 = vperm.xlu0 %2155, %v1624
        %v2157 = vpop.permute.xlu0 %2156
        %2159 = vset.pattern.permute.xlu0 2
        %2160 = vperm.xlu0 %2159, %v1625
        %v2161 = vpop.permute.xlu0 %2160
        %2163 = vset.pattern.permute.xlu0 2
        %2164 = vperm.xlu0 %2163, %v1626
        %v2165 = vpop.permute.xlu0 %2164
        %2167 = vset.pattern.permute.xlu0 2
        %2168 = vperm.xlu0 %2167, %v1627
        %v2169 = vpop.permute.xlu0 %2168
        %2171 = vset.pattern.permute.xlu0 2
        %2172 = vperm.xlu0 %2171, %v1628
        %v2173 = vpop.permute.xlu0 %2172
        %2175 = vset.pattern.permute.xlu0 2
        %2176 = vperm.xlu0 %2175, %v1629
        %v2177 = vpop.permute.xlu0 %2176
        %2179 = vset.pattern.permute.xlu0 2
        %2180 = vperm.xlu0 %2179, %v1630
        %v2181 = vpop.permute.xlu0 %2180
        %2183 = vset.pattern.permute.xlu0 2
        %2184 = vperm.xlu0 %2183, %v1631
        %v2185 = vpop.permute.xlu0 %2184
        %v2187 = vlaneseq
        %v2188 = vshrl.u32 %v2187, 7
        %v2189 = vsub.s32 0, %v2188
        %v2190 = vrot.slane %v2058, %v2189
        %v2191 = vmul.f32 %v2061, %v2190
        %v2192 = vmul.f32 %v2065, %v2190
        %v2193 = vmul.f32 %v2069, %v2190
        %v2194 = vmul.f32 %v2073, %v2190
        %v2195 = vmul.f32 %v2077, %v2190
        %v2196 = vmul.f32 %v2081, %v2190
        %v2197 = vmul.f32 %v2085, %v2190
        %v2198 = vmul.f32 %v2089, %v2190
        %v2199 = vmul.f32 %v2093, %v2190
        %v2200 = vmul.f32 %v2097, %v2190
        %v2201 = vmul.f32 %v2101, %v2190
        %v2202 = vmul.f32 %v2105, %v2190
        %v2203 = vmul.f32 %v2109, %v2190
        %v2204 = vmul.f32 %v2113, %v2190
        %v2205 = vmul.f32 %v2117, %v2190
        %v2206 = vmul.f32 %v2121, %v2190
        %v2207 = vmul.f32 %v2125, %v2190
        %v2208 = vmul.f32 %v2129, %v2190
        %v2209 = vmul.f32 %v2133, %v2190
        %v2210 = vmul.f32 %v2137, %v2190
        %v2211 = vmul.f32 %v2141, %v2190
        %v2212 = vmul.f32 %v2145, %v2190
        %v2213 = vmul.f32 %v2149, %v2190
        %v2214 = vmul.f32 %v2153, %v2190
        %v2215 = vmul.f32 %v2157, %v2190
        %v2216 = vmul.f32 %v2161, %v2190
        %v2217 = vmul.f32 %v2165, %v2190
        %v2218 = vmul.f32 %v2169, %v2190
        %v2219 = vmul.f32 %v2173, %v2190
        %v2220 = vmul.f32 %v2177, %v2190
        %v2221 = vmul.f32 %v2181, %v2190
        %v2222 = vmul.f32 %v2185, %v2190
        %v2223 = vadd.f32 %v2026, %v2191
        %v2224 = vadd.f32 %v2027, %v2192
        %v2225 = vadd.f32 %v2028, %v2193
        %v2226 = vadd.f32 %v2029, %v2194
        %v2227 = vadd.f32 %v2030, %v2195
        %v2228 = vadd.f32 %v2031, %v2196
        %v2229 = vadd.f32 %v2032, %v2197
        %v2230 = vadd.f32 %v2033, %v2198
        %v2231 = vadd.f32 %v2034, %v2199
        %v2232 = vadd.f32 %v2035, %v2200
        %v2233 = vadd.f32 %v2036, %v2201
        %v2234 = vadd.f32 %v2037, %v2202
        %v2235 = vadd.f32 %v2038, %v2203
        %v2236 = vadd.f32 %v2039, %v2204
        %v2237 = vadd.f32 %v2040, %v2205
        %v2238 = vadd.f32 %v2041, %v2206
        %v2239 = vadd.f32 %v2042, %v2207
        %v2240 = vadd.f32 %v2043, %v2208
        %v2241 = vadd.f32 %v2044, %v2209
        %v2242 = vadd.f32 %v2045, %v2210
        %v2243 = vadd.f32 %v2046, %v2211
        %v2244 = vadd.f32 %v2047, %v2212
        %v2245 = vadd.f32 %v2048, %v2213
        %v2246 = vadd.f32 %v2049, %v2214
        %v2247 = vadd.f32 %v2050, %v2215
        %v2248 = vadd.f32 %v2051, %v2216
        %v2249 = vadd.f32 %v2052, %v2217
        %v2250 = vadd.f32 %v2053, %v2218
        %v2251 = vadd.f32 %v2054, %v2219
        %v2252 = vadd.f32 %v2055, %v2220
        %v2253 = vadd.f32 %v2056, %v2221
        %v2254 = vadd.f32 %v2057, %v2222
        %v2255 = vld [vmem:[%s3 + $0xc] sm:$0x1]
        %2256 = vset.pattern.permute.xlu0 3
        %2257 = vperm.xlu0 %2256, %v1600
        %v2258 = vpop.permute.xlu0 %2257
        %2260 = vset.pattern.permute.xlu0 3
        %2261 = vperm.xlu0 %2260, %v1601
        %v2262 = vpop.permute.xlu0 %2261
        %2264 = vset.pattern.permute.xlu0 3
        %2265 = vperm.xlu0 %2264, %v1602
        %v2266 = vpop.permute.xlu0 %2265
        %2268 = vset.pattern.permute.xlu0 3
        %2269 = vperm.xlu0 %2268, %v1603
        %v2270 = vpop.permute.xlu0 %2269
        %2272 = vset.pattern.permute.xlu0 3
        %2273 = vperm.xlu0 %2272, %v1604
        %v2274 = vpop.permute.xlu0 %2273
        %2276 = vset.pattern.permute.xlu0 3
        %2277 = vperm.xlu0 %2276, %v1605
        %v2278 = vpop.permute.xlu0 %2277
        %2280 = vset.pattern.permute.xlu0 3
        %2281 = vperm.xlu0 %2280, %v1606
        %v2282 = vpop.permute.xlu0 %2281
        %2284 = vset.pattern.permute.xlu0 3
        %2285 = vperm.xlu0 %2284, %v1607
        %v2286 = vpop.permute.xlu0 %2285
        %2288 = vset.pattern.permute.xlu0 3
        %2289 = vperm.xlu0 %2288, %v1608
        %v2290 = vpop.permute.xlu0 %2289
        %2292 = vset.pattern.permute.xlu0 3
        %2293 = vperm.xlu0 %2292, %v1609
        %v2294 = vpop.permute.xlu0 %2293
        %2296 = vset.pattern.permute.xlu0 3
        %2297 = vperm.xlu0 %2296, %v1610
        %v2298 = vpop.permute.xlu0 %2297
        %2300 = vset.pattern.permute.xlu0 3
        %2301 = vperm.xlu0 %2300, %v1611
        %v2302 = vpop.permute.xlu0 %2301
        %2304 = vset.pattern.permute.xlu0 3
        %2305 = vperm.xlu0 %2304, %v1612
        %v2306 = vpop.permute.xlu0 %2305
        %2308 = vset.pattern.permute.xlu0 3
        %2309 = vperm.xlu0 %2308, %v1613
        %v2310 = vpop.permute.xlu0 %2309
        %2312 = vset.pattern.permute.xlu0 3
        %2313 = vperm.xlu0 %2312, %v1614
        %v2314 = vpop.permute.xlu0 %2313
        %2316 = vset.pattern.permute.xlu0 3
        %2317 = vperm.xlu0 %2316, %v1615
        %v2318 = vpop.permute.xlu0 %2317
        %2320 = vset.pattern.permute.xlu0 3
        %2321 = vperm.xlu0 %2320, %v1616
        %v2322 = vpop.permute.xlu0 %2321
        %2324 = vset.pattern.permute.xlu0 3
        %2325 = vperm.xlu0 %2324, %v1617
        %v2326 = vpop.permute.xlu0 %2325
        %2328 = vset.pattern.permute.xlu0 3
        %2329 = vperm.xlu0 %2328, %v1618
        %v2330 = vpop.permute.xlu0 %2329
        %2332 = vset.pattern.permute.xlu0 3
        %2333 = vperm.xlu0 %2332, %v1619
        %v2334 = vpop.permute.xlu0 %2333
        %2336 = vset.pattern.permute.xlu0 3
        %2337 = vperm.xlu0 %2336, %v1620
        %v2338 = vpop.permute.xlu0 %2337
        %2340 = vset.pattern.permute.xlu0 3
        %2341 = vperm.xlu0 %2340, %v1621
        %v2342 = vpop.permute.xlu0 %2341
        %2344 = vset.pattern.permute.xlu0 3
        %2345 = vperm.xlu0 %2344, %v1622
        %v2346 = vpop.permute.xlu0 %2345
        %2348 = vset.pattern.permute.xlu0 3
        %2349 = vperm.xlu0 %2348, %v1623
        %v2350 = vpop.permute.xlu0 %2349
        %2352 = vset.pattern.permute.xlu0 3
        %2353 = vperm.xlu0 %2352, %v1624
        %v2354 = vpop.permute.xlu0 %2353
        %2356 = vset.pattern.permute.xlu0 3
        %2357 = vperm.xlu0 %2356, %v1625
        %v2358 = vpop.permute.xlu0 %2357
        %2360 = vset.pattern.permute.xlu0 3
        %2361 = vperm.xlu0 %2360, %v1626
        %v2362 = vpop.permute.xlu0 %2361
        %2364 = vset.pattern.permute.xlu0 3
        %2365 = vperm.xlu0 %2364, %v1627
        %v2366 = vpop.permute.xlu0 %2365
        %2368 = vset.pattern.permute.xlu0 3
        %2369 = vperm.xlu0 %2368, %v1628
        %v2370 = vpop.permute.xlu0 %2369
        %2372 = vset.pattern.permute.xlu0 3
        %2373 = vperm.xlu0 %2372, %v1629
        %v2374 = vpop.permute.xlu0 %2373
        %2376 = vset.pattern.permute.xlu0 3
        %2377 = vperm.xlu0 %2376, %v1630
        %v2378 = vpop.permute.xlu0 %2377
        %2380 = vset.pattern.permute.xlu0 3
        %2381 = vperm.xlu0 %2380, %v1631
        %v2382 = vpop.permute.xlu0 %2381
        %v2384 = vlaneseq
        %v2385 = vshrl.u32 %v2384, 7
        %v2386 = vsub.s32 0, %v2385
        %v2387 = vrot.slane %v2255, %v2386
        %v2388 = vmul.f32 %v2258, %v2387
        %v2389 = vmul.f32 %v2262, %v2387
        %v2390 = vmul.f32 %v2266, %v2387
        %v2391 = vmul.f32 %v2270, %v2387
        %v2392 = vmul.f32 %v2274, %v2387
        %v2393 = vmul.f32 %v2278, %v2387
        %v2394 = vmul.f32 %v2282, %v2387
        %v2395 = vmul.f32 %v2286, %v2387
        %v2396 = vmul.f32 %v2290, %v2387
        %v2397 = vmul.f32 %v2294, %v2387
        %v2398 = vmul.f32 %v2298, %v2387
        %v2399 = vmul.f32 %v2302, %v2387
        %v2400 = vmul.f32 %v2306, %v2387
        %v2401 = vmul.f32 %v2310, %v2387
        %v2402 = vmul.f32 %v2314, %v2387
        %v2403 = vmul.f32 %v2318, %v2387
        %v2404 = vmul.f32 %v2322, %v2387
        %v2405 = vmul.f32 %v2326, %v2387
        %v2406 = vmul.f32 %v2330, %v2387
        %v2407 = vmul.f32 %v2334, %v2387
        %v2408 = vmul.f32 %v2338, %v2387
        %v2409 = vmul.f32 %v2342, %v2387
        %v2410 = vmul.f32 %v2346, %v2387
        %v2411 = vmul.f32 %v2350, %v2387
        %v2412 = vmul.f32 %v2354, %v2387
        %v2413 = vmul.f32 %v2358, %v2387
        %v2414 = vmul.f32 %v2362, %v2387
        %v2415 = vmul.f32 %v2366, %v2387
        %v2416 = vmul.f32 %v2370, %v2387
        %v2417 = vmul.f32 %v2374, %v2387
        %v2418 = vmul.f32 %v2378, %v2387
        %v2419 = vmul.f32 %v2382, %v2387
        %v2420 = vadd.f32 %v2223, %v2388
        %v2421 = vadd.f32 %v2224, %v2389
        %v2422 = vadd.f32 %v2225, %v2390
        %v2423 = vadd.f32 %v2226, %v2391
        %v2424 = vadd.f32 %v2227, %v2392
        %v2425 = vadd.f32 %v2228, %v2393
        %v2426 = vadd.f32 %v2229, %v2394
        %v2427 = vadd.f32 %v2230, %v2395
        %v2428 = vadd.f32 %v2231, %v2396
        %v2429 = vadd.f32 %v2232, %v2397
        %v2430 = vadd.f32 %v2233, %v2398
        %v2431 = vadd.f32 %v2234, %v2399
        %v2432 = vadd.f32 %v2235, %v2400
        %v2433 = vadd.f32 %v2236, %v2401
        %v2434 = vadd.f32 %v2237, %v2402
        %v2435 = vadd.f32 %v2238, %v2403
        %v2436 = vadd.f32 %v2239, %v2404
        %v2437 = vadd.f32 %v2240, %v2405
        %v2438 = vadd.f32 %v2241, %v2406
        %v2439 = vadd.f32 %v2242, %v2407
        %v2440 = vadd.f32 %v2243, %v2408
        %v2441 = vadd.f32 %v2244, %v2409
        %v2442 = vadd.f32 %v2245, %v2410
        %v2443 = vadd.f32 %v2246, %v2411
        %v2444 = vadd.f32 %v2247, %v2412
        %v2445 = vadd.f32 %v2248, %v2413
        %v2446 = vadd.f32 %v2249, %v2414
        %v2447 = vadd.f32 %v2250, %v2415
        %v2448 = vadd.f32 %v2251, %v2416
        %v2449 = vadd.f32 %v2252, %v2417
        %v2450 = vadd.f32 %v2253, %v2418
        %v2451 = vadd.f32 %v2254, %v2419
        %v2452 = vxor.u32 %v2420, 2147483648
        %v2453 = vxor.u32 %v2421, 2147483648
        %v2454 = vxor.u32 %v2422, 2147483648
        %v2455 = vxor.u32 %v2423, 2147483648
        %v2456 = vxor.u32 %v2424, 2147483648
        %v2457 = vxor.u32 %v2425, 2147483648
        %v2458 = vxor.u32 %v2426, 2147483648
        %v2459 = vxor.u32 %v2427, 2147483648
        %v2460 = vxor.u32 %v2428, 2147483648
        %v2461 = vxor.u32 %v2429, 2147483648
        %v2462 = vxor.u32 %v2430, 2147483648
        %v2463 = vxor.u32 %v2431, 2147483648
        %v2464 = vxor.u32 %v2432, 2147483648
        %v2465 = vxor.u32 %v2433, 2147483648
        %v2466 = vxor.u32 %v2434, 2147483648
        %v2467 = vxor.u32 %v2435, 2147483648
        %v2468 = vxor.u32 %v2436, 2147483648
        %v2469 = vxor.u32 %v2437, 2147483648
        %v2470 = vxor.u32 %v2438, 2147483648
        %v2471 = vxor.u32 %v2439, 2147483648
        %v2472 = vxor.u32 %v2440, 2147483648
        %v2473 = vxor.u32 %v2441, 2147483648
        %v2474 = vxor.u32 %v2442, 2147483648
        %v2475 = vxor.u32 %v2443, 2147483648
        %v2476 = vxor.u32 %v2444, 2147483648
        %v2477 = vxor.u32 %v2445, 2147483648
        %v2478 = vxor.u32 %v2446, 2147483648
        %v2479 = vxor.u32 %v2447, 2147483648
        %v2480 = vxor.u32 %v2448, 2147483648
        %v2481 = vxor.u32 %v2449, 2147483648
        %v2482 = vxor.u32 %v2450, 2147483648
        %v2483 = vxor.u32 %v2451, 2147483648
        %v2484 = vmul.f32 %v2452, 1.442695
        %v2485 = vpow.pop %v2484
        %v2486 = vmul.f32 %v2453, 1.442695
        %v2487 = vpow.pop %v2486
        %v2488 = vmul.f32 %v2454, 1.442695
        %v2489 = vpow.pop %v2488
        %v2490 = vmul.f32 %v2455, 1.442695
        %v2491 = vpow.pop %v2490
        %v2492 = vmul.f32 %v2456, 1.442695
        %v2493 = vpow.pop %v2492
        %v2494 = vmul.f32 %v2457, 1.442695
        %v2495 = vpow.pop %v2494
        %v2496 = vmul.f32 %v2458, 1.442695
        %v2497 = vpow.pop %v2496
        %v2498 = vmul.f32 %v2459, 1.442695
        %v2499 = vpow.pop %v2498
        %v2500 = vmul.f32 %v2460, 1.442695
        %v2501 = vpow.pop %v2500
        %v2502 = vmul.f32 %v2461, 1.442695
        %v2503 = vpow.pop %v2502
        %v2504 = vmul.f32 %v2462, 1.442695
        %v2505 = vpow.pop %v2504
        %v2506 = vmul.f32 %v2463, 1.442695
        %v2507 = vpow.pop %v2506
        %v2508 = vmul.f32 %v2464, 1.442695
        %v2509 = vpow.pop %v2508
        %v2510 = vmul.f32 %v2465, 1.442695
        %v2511 = vpow.pop %v2510
        %v2512 = vmul.f32 %v2466, 1.442695
        %v2513 = vpow.pop %v2512
        %v2514 = vmul.f32 %v2467, 1.442695
        %v2515 = vpow.pop %v2514
        %v2516 = vmul.f32 %v2468, 1.442695
        %v2517 = vpow.pop %v2516
        %v2518 = vmul.f32 %v2469, 1.442695
        %v2519 = vpow.pop %v2518
        %v2520 = vmul.f32 %v2470, 1.442695
        %v2521 = vpow.pop %v2520
        %v2522 = vmul.f32 %v2471, 1.442695
        %v2523 = vpow.pop %v2522
        %v2524 = vmul.f32 %v2472, 1.442695
        %v2525 = vpow.pop %v2524
        %v2526 = vmul.f32 %v2473, 1.442695
        %v2527 = vpow.pop %v2526
        %v2528 = vmul.f32 %v2474, 1.442695
        %v2529 = vpow.pop %v2528
        %v2530 = vmul.f32 %v2475, 1.442695
        %v2531 = vpow.pop %v2530
        %v2532 = vmul.f32 %v2476, 1.442695
        %v2533 = vpow.pop %v2532
        %v2534 = vmul.f32 %v2477, 1.442695
        %v2535 = vpow.pop %v2534
        %v2536 = vmul.f32 %v2478, 1.442695
        %v2537 = vpow.pop %v2536
        %v2538 = vmul.f32 %v2479, 1.442695
        %v2539 = vpow.pop %v2538
        %v2540 = vmul.f32 %v2480, 1.442695
        %v2541 = vpow.pop %v2540
        %v2542 = vmul.f32 %v2481, 1.442695
        %v2543 = vpow.pop %v2542
        %v2544 = vmul.f32 %v2482, 1.442695
        %v2545 = vpow.pop %v2544
        %v2546 = vmul.f32 %v2483, 1.442695
        %v2547 = vpow.pop %v2546
        %v2548 = vadd.f32 %v2485, 1.0
        %v2549 = vadd.f32 %v2487, 1.0
        %v2550 = vadd.f32 %v2489, 1.0
        %v2551 = vadd.f32 %v2491, 1.0
        %v2552 = vadd.f32 %v2493, 1.0
        %v2553 = vadd.f32 %v2495, 1.0
        %v2554 = vadd.f32 %v2497, 1.0
        %v2555 = vadd.f32 %v2499, 1.0
        %v2556 = vadd.f32 %v2501, 1.0
        %v2557 = vadd.f32 %v2503, 1.0
        %v2558 = vadd.f32 %v2505, 1.0
        %v2559 = vadd.f32 %v2507, 1.0
        %v2560 = vadd.f32 %v2509, 1.0
        %v2561 = vadd.f32 %v2511, 1.0
        %v2562 = vadd.f32 %v2513, 1.0
        %v2563 = vadd.f32 %v2515, 1.0
        %v2564 = vadd.f32 %v2517, 1.0
        %v2565 = vadd.f32 %v2519, 1.0
        %v2566 = vadd.f32 %v2521, 1.0
        %v2567 = vadd.f32 %v2523, 1.0
        %v2568 = vadd.f32 %v2525, 1.0
        %v2569 = vadd.f32 %v2527, 1.0
        %v2570 = vadd.f32 %v2529, 1.0
        %v2571 = vadd.f32 %v2531, 1.0
        %v2572 = vadd.f32 %v2533, 1.0
        %v2573 = vadd.f32 %v2535, 1.0
        %v2574 = vadd.f32 %v2537, 1.0
        %v2575 = vadd.f32 %v2539, 1.0
        %v2576 = vadd.f32 %v2541, 1.0
        %v2577 = vadd.f32 %v2543, 1.0
        %v2578 = vadd.f32 %v2545, 1.0
        %v2579 = vadd.f32 %v2547, 1.0
        %v2580 = vrcp.pop %v2548
        %v2581 = vmul.f32 1.0, %v2580
        %v2582 = vrcp.pop %v2549
        %v2583 = vmul.f32 1.0, %v2582
        %v2584 = vrcp.pop %v2550
        %v2585 = vmul.f32 1.0, %v2584
        %v2586 = vrcp.pop %v2551
        %v2587 = vmul.f32 1.0, %v2586
        %v2588 = vrcp.pop %v2552
        %v2589 = vmul.f32 1.0, %v2588
        %v2590 = vrcp.pop %v2553
        %v2591 = vmul.f32 1.0, %v2590
        %v2592 = vrcp.pop %v2554
        %v2593 = vmul.f32 1.0, %v2592
        %v2594 = vrcp.pop %v2555
        %v2595 = vmul.f32 1.0, %v2594
        %v2596 = vrcp.pop %v2556
        %v2597 = vmul.f32 1.0, %v2596
        %v2598 = vrcp.pop %v2557
        %v2599 = vmul.f32 1.0, %v2598
        %v2600 = vrcp.pop %v2558
        %v2601 = vmul.f32 1.0, %v2600
        %v2602 = vrcp.pop %v2559
        %v2603 = vmul.f32 1.0, %v2602
        %v2604 = vrcp.pop %v2560
        %v2605 = vmul.f32 1.0, %v2604
        %v2606 = vrcp.pop %v2561
        %v2607 = vmul.f32 1.0, %v2606
        %v2608 = vrcp.pop %v2562
        %v2609 = vmul.f32 1.0, %v2608
        %v2610 = vrcp.pop %v2563
        %v2611 = vmul.f32 1.0, %v2610
        %v2612 = vrcp.pop %v2564
        %v2613 = vmul.f32 1.0, %v2612
        %v2614 = vrcp.pop %v2565
        %v2615 = vmul.f32 1.0, %v2614
        %v2616 = vrcp.pop %v2566
        %v2617 = vmul.f32 1.0, %v2616
        %v2618 = vrcp.pop %v2567
        %v2619 = vmul.f32 1.0, %v2618
        %v2620 = vrcp.pop %v2568
        %v2621 = vmul.f32 1.0, %v2620
        %v2622 = vrcp.pop %v2569
        %v2623 = vmul.f32 1.0, %v2622
        %v2624 = vrcp.pop %v2570
        %v2625 = vmul.f32 1.0, %v2624
        %v2626 = vrcp.pop %v2571
        %v2627 = vmul.f32 1.0, %v2626
        %v2628 = vrcp.pop %v2572
        %v2629 = vmul.f32 1.0, %v2628
        %v2630 = vrcp.pop %v2573
        %v2631 = vmul.f32 1.0, %v2630
        %v2632 = vrcp.pop %v2574
        %v2633 = vmul.f32 1.0, %v2632
        %v2634 = vrcp.pop %v2575
        %v2635 = vmul.f32 1.0, %v2634
        %v2636 = vrcp.pop %v2576
        %v2637 = vmul.f32 1.0, %v2636
        %v2638 = vrcp.pop %v2577
        %v2639 = vmul.f32 1.0, %v2638
        %v2640 = vrcp.pop %v2578
        %v2641 = vmul.f32 1.0, %v2640
        %v2642 = vrcp.pop %v2579
        %v2643 = vmul.f32 1.0, %v2642
        %v2644 = vmul.f32 %v2420, %v2581
        %v2645 = vmul.f32 %v2421, %v2583
        %v2646 = vmul.f32 %v2422, %v2585
        %v2647 = vmul.f32 %v2423, %v2587
        %v2648 = vmul.f32 %v2424, %v2589
        %v2649 = vmul.f32 %v2425, %v2591
        %v2650 = vmul.f32 %v2426, %v2593
        %v2651 = vmul.f32 %v2427, %v2595
        %v2652 = vmul.f32 %v2428, %v2597
        %v2653 = vmul.f32 %v2429, %v2599
        %v2654 = vmul.f32 %v2430, %v2601
        %v2655 = vmul.f32 %v2431, %v2603
        %v2656 = vmul.f32 %v2432, %v2605
        %v2657 = vmul.f32 %v2433, %v2607
        %v2658 = vmul.f32 %v2434, %v2609
        %v2659 = vmul.f32 %v2435, %v2611
        %v2660 = vmul.f32 %v2436, %v2613
        %v2661 = vmul.f32 %v2437, %v2615
        %v2662 = vmul.f32 %v2438, %v2617
        %v2663 = vmul.f32 %v2439, %v2619
        %v2664 = vmul.f32 %v2440, %v2621
        %v2665 = vmul.f32 %v2441, %v2623
        %v2666 = vmul.f32 %v2442, %v2625
        %v2667 = vmul.f32 %v2443, %v2627
        %v2668 = vmul.f32 %v2444, %v2629
        %v2669 = vmul.f32 %v2445, %v2631
        %v2670 = vmul.f32 %v2446, %v2633
        %v2671 = vmul.f32 %v2447, %v2635
        %v2672 = vmul.f32 %v2448, %v2637
        %v2673 = vmul.f32 %v2449, %v2639
        %v2674 = vmul.f32 %v2450, %v2641
        %v2675 = vmul.f32 %v2451, %v2643
        %v2676 = vld [vmem:[%s3 + $0x1] sm:$0x1]
        %v2677 = vld [vmem:[#allocation2 + $0x18] sm:$0xff]
        %v2678 = vld [vmem:[#allocation2 + $0x58] sm:$0xff]
        %v2679 = vld [vmem:[#allocation2 + $0x98] sm:$0xff]
        %v2680 = vld [vmem:[#allocation2 + $0xd8] sm:$0xff]
        %v2681 = vld [vmem:[#allocation2 + $0x118] sm:$0xff]
        %v2682 = vld [vmem:[#allocation2 + $0x158] sm:$0xff]
        %v2683 = vld [vmem:[#allocation2 + $0x198] sm:$0xff]
        %v2684 = vld [vmem:[#allocation2 + $0x1d8] sm:$0xff]
        %v2685 = vld [vmem:[#allocation2 + $0x218] sm:$0xff]
        %v2686 = vld [vmem:[#allocation2 + $0x258] sm:$0xff]
        %v2687 = vld [vmem:[#allocation2 + $0x298] sm:$0xff]
        %v2688 = vld [vmem:[#allocation2 + $0x2d8] sm:$0xff]
        %v2689 = vld [vmem:[#allocation2 + $0x318] sm:$0xff]
        %v2690 = vld [vmem:[#allocation2 + $0x358] sm:$0xff]
        %v2691 = vld [vmem:[#allocation2 + $0x398] sm:$0x3]
        %v2692 = vlaneseq
        %v2693 = vshrl.u32 %v2692, 7
        %v2694 = vsub.s32 0, %v2693
        %v2695 = vrot.slane %v2676, %v2694
        %vm2696 = vcmask 932864
        %v2698 = vsel %vm2696, %v2644, 0
        %v2701 = vsel %vm2696, %v2645, 0
        %v2704 = vsel %vm2696, %v2646, 0
        %v2707 = vsel %vm2696, %v2647, 0
        %v2710 = vsel %vm2696, %v2648, 0
        %v2713 = vsel %vm2696, %v2649, 0
        %v2716 = vsel %vm2696, %v2650, 0
        %v2719 = vsel %vm2696, %v2651, 0
        %v2722 = vsel %vm2696, %v2652, 0
        %v2725 = vsel %vm2696, %v2653, 0
        %v2728 = vsel %vm2696, %v2654, 0
        %v2731 = vsel %vm2696, %v2655, 0
        %v2734 = vsel %vm2696, %v2656, 0
        %v2737 = vsel %vm2696, %v2657, 0
        %v2740 = vsel %vm2696, %v2658, 0
        %v2743 = vsel %vm2696, %v2659, 0
        %v2746 = vsel %vm2696, %v2660, 0
        %v2749 = vsel %vm2696, %v2661, 0
        %v2752 = vsel %vm2696, %v2662, 0
        %v2755 = vsel %vm2696, %v2663, 0
        %v2758 = vsel %vm2696, %v2664, 0
        %v2761 = vsel %vm2696, %v2665, 0
        %v2764 = vsel %vm2696, %v2666, 0
        %v2767 = vsel %vm2696, %v2667, 0
        %v2770 = vsel %vm2696, %v2668, 0
        %v2773 = vsel %vm2696, %v2669, 0
        %v2776 = vsel %vm2696, %v2670, 0
        %v2779 = vsel %vm2696, %v2671, 0
        %v2782 = vsel %vm2696, %v2672, 0
        %v2785 = vsel %vm2696, %v2673, 0
        %v2788 = vsel %vm2696, %v2674, 0
        %v2791 = vsel %vm2696, %v2675, 0
        %vm2793 = vcmask 1041408
        %v2795 = vsel %vm2793, %v2691, 0
        %2797 = vmatprep.subr.mxu0 0.0
        %2798 = vmatpush1.msra.mxu0 0.0
        %2799 = vmatprep.subr.mxu0 0.0
        %2800 = vmatpush1.msra.mxu0 %v2795
        %2801 = vmatprep.subr.mxu0 0.0
        %2802 = vmatpush1.msra.mxu0 %v2690
        %2803 = vmatprep.subr.mxu0 0.0
        %2804 = vmatpush1.msra.mxu0 %v2689
        %2805 = vmatprep.subr.mxu0 0.0
        %2806 = vmatpush1.msra.mxu0 %v2688
        %2807 = vmatprep.subr.mxu0 0.0
        %2808 = vmatpush1.msra.mxu0 %v2687
        %2809 = vmatprep.subr.mxu0 0.0
        %2810 = vmatpush1.msra.mxu0 %v2686
        %2811 = vmatprep.subr.mxu0 0.0
        %2812 = vmatpush1.msra.mxu0 %v2685
        %2813 = vmatprep.subr.mxu0 0.0
        %2814 = vmatpush1.msra.mxu0 %v2684
        %2815 = vmatprep.subr.mxu0 0.0
        %2816 = vmatpush1.msra.mxu0 %v2683
        %2817 = vmatprep.subr.mxu0 0.0
        %2818 = vmatpush1.msra.mxu0 %v2682
        %2819 = vmatprep.subr.mxu0 0.0
        %2820 = vmatpush1.msra.mxu0 %v2681
        %2821 = vmatprep.subr.mxu0 0.0
        %2822 = vmatpush1.msra.mxu0 %v2680
        %2823 = vmatprep.subr.mxu0 0.0
        %2824 = vmatpush1.msra.mxu0 %v2679
        %2825 = vmatprep.subr.mxu0 0.0
        %2826 = vmatpush1.msra.mxu0 %v2678
        %2827 = vmatprep.subr.mxu0 0.0
        %2828 = vmatpush1.msra.mxu0 %v2677
        %2829 = vmatprep.subr.mxu0 0.0
        %2830 = vmatpush2.msra.mxu0 0.0
        %2831 = vmatprep.subr.mxu0 0.0
        %2832 = vmatpush2.msra.mxu0 0.0
        %2833 = vmatprep.subr.mxu0 0.0
        %2834 = vmatpush2.msra.mxu0 0.0
        %2835 = vmatprep.subr.mxu0 0.0
        %2836 = vmatpush2.msra.mxu0 0.0
        %2837 = vmatprep.subr.mxu0 0.0
        %2838 = vmatpush2.msra.mxu0 0.0
        %2839 = vmatprep.subr.mxu0 0.0
        %2840 = vmatpush2.msra.mxu0 0.0
        %2841 = vmatprep.subr.mxu0 0.0
        %2842 = vmatpush2.msra.mxu0 0.0
        %2843 = vmatprep.subr.mxu0 0.0
        %2844 = vmatpush2.msra.mxu0 0.0
        %2845 = vmatprep.subr.mxu0 0.0
        %2846 = vmatpush2.msra.mxu0 0.0
        %2847 = vmatprep.subr.mxu0 0.0
        %2848 = vmatpush2.msra.mxu0 0.0
        %2849 = vmatprep.subr.mxu0 0.0
        %2850 = vmatpush2.msra.mxu0 0.0
        %2851 = vmatprep.subr.mxu0 0.0
        %2852 = vmatpush2.msra.mxu0 0.0
        %2853 = vmatprep.subr.mxu0 0.0
        %2854 = vmatpush2.msra.mxu0 0.0
        %2855 = vmatprep.subr.mxu0 0.0
        %2856 = vmatpush2.msra.mxu0 0.0
        %2857 = vmatprep.subr.mxu0 0.0
        %2858 = vmatpush2.msra.mxu0 0.0
        %2859 = vmatprep.subr.mxu0 0.0
        %2860 = vmatpush2.msra.mxu0 0.0
        %2861 = vmatprep.mubr.f32.mxu0 0.0
        %2862 = vmatmul.mubr.f32.gmra.mxu0 %v2698
        %v2863 = vpop.f32.mrf.mxu0
        %v2864 = vadd.f32 %v2695, %v2863
        %v2865 = vpop.f32.mrf.mxu0
        %2866 = vmatprep.mubr.f32.mxu0 0.0
        %2867 = vmatmul.mubr.f32.gmra.mxu0 %v2701
        %v2868 = vpop.f32.mrf.mxu0
        %v2869 = vadd.f32 %v2695, %v2868
        %v2870 = vpop.f32.mrf.mxu0
        %2871 = vmatprep.mubr.f32.mxu0 0.0
        %2872 = vmatmul.mubr.f32.gmra.mxu0 %v2704
        %v2873 = vpop.f32.mrf.mxu0
        %v2874 = vadd.f32 %v2695, %v2873
        %v2875 = vpop.f32.mrf.mxu0
        %2876 = vmatprep.mubr.f32.mxu0 0.0
        %2877 = vmatmul.mubr.f32.gmra.mxu0 %v2707
        %v2878 = vpop.f32.mrf.mxu0
        %v2879 = vadd.f32 %v2695, %v2878
        %v2880 = vpop.f32.mrf.mxu0
        %2881 = vmatprep.mubr.f32.mxu0 0.0
        %2882 = vmatmul.mubr.f32.gmra.mxu0 %v2710
        %v2883 = vpop.f32.mrf.mxu0
        %v2884 = vadd.f32 %v2695, %v2883
        %v2885 = vpop.f32.mrf.mxu0
        %2886 = vmatprep.mubr.f32.mxu0 0.0
        %2887 = vmatmul.mubr.f32.gmra.mxu0 %v2713
        %v2888 = vpop.f32.mrf.mxu0
        %v2889 = vadd.f32 %v2695, %v2888
        %v2890 = vpop.f32.mrf.mxu0
        %2891 = vmatprep.mubr.f32.mxu0 0.0
        %2892 = vmatmul.mubr.f32.gmra.mxu0 %v2716
        %v2893 = vpop.f32.mrf.mxu0
        %v2894 = vadd.f32 %v2695, %v2893
        %v2895 = vpop.f32.mrf.mxu0
        %2896 = vmatprep.mubr.f32.mxu0 0.0
        %2897 = vmatmul.mubr.f32.gmra.mxu0 %v2719
        %v2898 = vpop.f32.mrf.mxu0
        %v2899 = vadd.f32 %v2695, %v2898
        %v2900 = vpop.f32.mrf.mxu0
        %2901 = vmatprep.mubr.f32.mxu0 0.0
        %2902 = vmatmul.mubr.f32.gmra.mxu0 %v2722
        %v2903 = vpop.f32.mrf.mxu0
        %v2904 = vadd.f32 %v2695, %v2903
        %v2905 = vpop.f32.mrf.mxu0
        %2906 = vmatprep.mubr.f32.mxu0 0.0
        %2907 = vmatmul.mubr.f32.gmra.mxu0 %v2725
        %v2908 = vpop.f32.mrf.mxu0
        %v2909 = vadd.f32 %v2695, %v2908
        %v2910 = vpop.f32.mrf.mxu0
        %2911 = vmatprep.mubr.f32.mxu0 0.0
        %2912 = vmatmul.mubr.f32.gmra.mxu0 %v2728
        %v2913 = vpop.f32.mrf.mxu0
        %v2914 = vadd.f32 %v2695, %v2913
        %v2915 = vpop.f32.mrf.mxu0
        %2916 = vmatprep.mubr.f32.mxu0 0.0
        %2917 = vmatmul.mubr.f32.gmra.mxu0 %v2731
        %v2918 = vpop.f32.mrf.mxu0
        %v2919 = vadd.f32 %v2695, %v2918
        %v2920 = vpop.f32.mrf.mxu0
        %2921 = vmatprep.mubr.f32.mxu0 0.0
        %2922 = vmatmul.mubr.f32.gmra.mxu0 %v2734
        %v2923 = vpop.f32.mrf.mxu0
        %v2924 = vadd.f32 %v2695, %v2923
        %v2925 = vpop.f32.mrf.mxu0
        %2926 = vmatprep.mubr.f32.mxu0 0.0
        %2927 = vmatmul.mubr.f32.gmra.mxu0 %v2737
        %v2928 = vpop.f32.mrf.mxu0
        %v2929 = vadd.f32 %v2695, %v2928
        %v2930 = vpop.f32.mrf.mxu0
        %2931 = vmatprep.mubr.f32.mxu0 0.0
        %2932 = vmatmul.mubr.f32.gmra.mxu0 %v2740
        %v2933 = vpop.f32.mrf.mxu0
        %v2934 = vadd.f32 %v2695, %v2933
        %v2935 = vpop.f32.mrf.mxu0
        %2936 = vmatprep.mubr.f32.mxu0 0.0
        %2937 = vmatmul.mubr.f32.gmra.mxu0 %v2743
        %v2938 = vpop.f32.mrf.mxu0
        %v2939 = vadd.f32 %v2695, %v2938
        %v2940 = vpop.f32.mrf.mxu0
        %2941 = vmatprep.mubr.f32.mxu0 0.0
        %2942 = vmatmul.mubr.f32.gmra.mxu0 %v2746
        %v2943 = vpop.f32.mrf.mxu0
        %v2944 = vadd.f32 %v2695, %v2943
        %v2945 = vpop.f32.mrf.mxu0
        %2946 = vmatprep.mubr.f32.mxu0 0.0
        %2947 = vmatmul.mubr.f32.gmra.mxu0 %v2749
        %v2948 = vpop.f32.mrf.mxu0
        %v2949 = vadd.f32 %v2695, %v2948
        %v2950 = vpop.f32.mrf.mxu0
        %2951 = vmatprep.mubr.f32.mxu0 0.0
        %2952 = vmatmul.mubr.f32.gmra.mxu0 %v2752
        %v2953 = vpop.f32.mrf.mxu0
        %v2954 = vadd.f32 %v2695, %v2953
        %v2955 = vpop.f32.mrf.mxu0
        %2956 = vmatprep.mubr.f32.mxu0 0.0
        %2957 = vmatmul.mubr.f32.gmra.mxu0 %v2755
        %v2958 = vpop.f32.mrf.mxu0
        %v2959 = vadd.f32 %v2695, %v2958
        %v2960 = vpop.f32.mrf.mxu0
        %2961 = vmatprep.mubr.f32.mxu0 0.0
        %2962 = vmatmul.mubr.f32.gmra.mxu0 %v2758
        %v2963 = vpop.f32.mrf.mxu0
        %v2964 = vadd.f32 %v2695, %v2963
        %v2965 = vpop.f32.mrf.mxu0
        %2966 = vmatprep.mubr.f32.mxu0 0.0
        %2967 = vmatmul.mubr.f32.gmra.mxu0 %v2761
        %v2968 = vpop.f32.mrf.mxu0
        %v2969 = vadd.f32 %v2695, %v2968
        %v2970 = vpop.f32.mrf.mxu0
        %2971 = vmatprep.mubr.f32.mxu0 0.0
        %2972 = vmatmul.mubr.f32.gmra.mxu0 %v2764
        %v2973 = vpop.f32.mrf.mxu0
        %v2974 = vadd.f32 %v2695, %v2973
        %v2975 = vpop.f32.mrf.mxu0
        %2976 = vmatprep.mubr.f32.mxu0 0.0
        %2977 = vmatmul.mubr.f32.gmra.mxu0 %v2767
        %v2978 = vpop.f32.mrf.mxu0
        %v2979 = vadd.f32 %v2695, %v2978
        %v2980 = vpop.f32.mrf.mxu0
        %2981 = vmatprep.mubr.f32.mxu0 0.0
        %2982 = vmatmul.mubr.f32.gmra.mxu0 %v2770
        %v2983 = vpop.f32.mrf.mxu0
        %v2984 = vadd.f32 %v2695, %v2983
        %v2985 = vpop.f32.mrf.mxu0
        %2986 = vmatprep.mubr.f32.mxu0 0.0
        %2987 = vmatmul.mubr.f32.gmra.mxu0 %v2773
        %v2988 = vpop.f32.mrf.mxu0
        %v2989 = vadd.f32 %v2695, %v2988
        %v2990 = vpop.f32.mrf.mxu0
        %2991 = vmatprep.mubr.f32.mxu0 0.0
        %2992 = vmatmul.mubr.f32.gmra.mxu0 %v2776
        %v2993 = vpop.f32.mrf.mxu0
        %v2994 = vadd.f32 %v2695, %v2993
        %v2995 = vpop.f32.mrf.mxu0
        %2996 = vmatprep.mubr.f32.mxu0 0.0
        %2997 = vmatmul.mubr.f32.gmra.mxu0 %v2779
        %v2998 = vpop.f32.mrf.mxu0
        %v2999 = vadd.f32 %v2695, %v2998
        %v3000 = vpop.f32.mrf.mxu0
        %3001 = vmatprep.mubr.f32.mxu0 0.0
        %3002 = vmatmul.mubr.f32.gmra.mxu0 %v2782
        %v3003 = vpop.f32.mrf.mxu0
        %v3004 = vadd.f32 %v2695, %v3003
        %v3005 = vpop.f32.mrf.mxu0
        %3006 = vmatprep.mubr.f32.mxu0 0.0
        %3007 = vmatmul.mubr.f32.gmra.mxu0 %v2785
        %v3008 = vpop.f32.mrf.mxu0
        %v3009 = vadd.f32 %v2695, %v3008
        %v3010 = vpop.f32.mrf.mxu0
        %3011 = vmatprep.mubr.f32.mxu0 0.0
        %3012 = vmatmul.mubr.f32.gmra.mxu0 %v2788
        %v3013 = vpop.f32.mrf.mxu0
        %v3014 = vadd.f32 %v2695, %v3013
        %v3015 = vpop.f32.mrf.mxu0
        %3016 = vmatprep.mubr.f32.mxu0 0.0
        %3017 = vmatmul.mubr.f32.gmra.mxu0 %v2791
        %v3018 = vpop.f32.mrf.mxu0
        %v3019 = vadd.f32 %v2695, %v3018
        %v3020 = vpop.f32.mrf.mxu0
        %3021 = vdwg.mxu0
        %v3022 = vxor.u32 %v2864, 2147483648
        %v3023 = vxor.u32 %v2869, 2147483648
        %v3024 = vxor.u32 %v2874, 2147483648
        %v3025 = vxor.u32 %v2879, 2147483648
        %v3026 = vxor.u32 %v2884, 2147483648
        %v3027 = vxor.u32 %v2889, 2147483648
        %v3028 = vxor.u32 %v2894, 2147483648
        %v3029 = vxor.u32 %v2899, 2147483648
        %v3030 = vxor.u32 %v2904, 2147483648
        %v3031 = vxor.u32 %v2909, 2147483648
        %v3032 = vxor.u32 %v2914, 2147483648
        %v3033 = vxor.u32 %v2919, 2147483648
        %v3034 = vxor.u32 %v2924, 2147483648
        %v3035 = vxor.u32 %v2929, 2147483648
        %v3036 = vxor.u32 %v2934, 2147483648
        %v3037 = vxor.u32 %v2939, 2147483648
        %v3038 = vxor.u32 %v2944, 2147483648
        %v3039 = vxor.u32 %v2949, 2147483648
        %v3040 = vxor.u32 %v2954, 2147483648
        %v3041 = vxor.u32 %v2959, 2147483648
        %v3042 = vxor.u32 %v2964, 2147483648
        %v3043 = vxor.u32 %v2969, 2147483648
        %v3044 = vxor.u32 %v2974, 2147483648
        %v3045 = vxor.u32 %v2979, 2147483648
        %v3046 = vxor.u32 %v2984, 2147483648
        %v3047 = vxor.u32 %v2989, 2147483648
        %v3048 = vxor.u32 %v2994, 2147483648
        %v3049 = vxor.u32 %v2999, 2147483648
        %v3050 = vxor.u32 %v3004, 2147483648
        %v3051 = vxor.u32 %v3009, 2147483648
        %v3052 = vxor.u32 %v3014, 2147483648
        %v3053 = vxor.u32 %v3019, 2147483648
        %v3054 = vmul.f32 %v3022, 1.442695
        %v3055 = vpow.pop %v3054
        %v3056 = vmul.f32 %v3023, 1.442695
        %v3057 = vpow.pop %v3056
        %v3058 = vmul.f32 %v3024, 1.442695
        %v3059 = vpow.pop %v3058
        %v3060 = vmul.f32 %v3025, 1.442695
        %v3061 = vpow.pop %v3060
        %v3062 = vmul.f32 %v3026, 1.442695
        %v3063 = vpow.pop %v3062
        %v3064 = vmul.f32 %v3027, 1.442695
        %v3065 = vpow.pop %v3064
        %v3066 = vmul.f32 %v3028, 1.442695
        %v3067 = vpow.pop %v3066
        %v3068 = vmul.f32 %v3029, 1.442695
        %v3069 = vpow.pop %v3068
        %v3070 = vmul.f32 %v3030, 1.442695
        %v3071 = vpow.pop %v3070
        %v3072 = vmul.f32 %v3031, 1.442695
        %v3073 = vpow.pop %v3072
        %v3074 = vmul.f32 %v3032, 1.442695
        %v3075 = vpow.pop %v3074
        %v3076 = vmul.f32 %v3033, 1.442695
        %v3077 = vpow.pop %v3076
        %v3078 = vmul.f32 %v3034, 1.442695
        %v3079 = vpow.pop %v3078
        %v3080 = vmul.f32 %v3035, 1.442695
        %v3081 = vpow.pop %v3080
        %v3082 = vmul.f32 %v3036, 1.442695
        %v3083 = vpow.pop %v3082
        %v3084 = vmul.f32 %v3037, 1.442695
        %v3085 = vpow.pop %v3084
        %v3086 = vmul.f32 %v3038, 1.442695
        %v3087 = vpow.pop %v3086
        %v3088 = vmul.f32 %v3039, 1.442695
        %v3089 = vpow.pop %v3088
        %v3090 = vmul.f32 %v3040, 1.442695
        %v3091 = vpow.pop %v3090
        %v3092 = vmul.f32 %v3041, 1.442695
        %v3093 = vpow.pop %v3092
        %v3094 = vmul.f32 %v3042, 1.442695
        %v3095 = vpow.pop %v3094
        %v3096 = vmul.f32 %v3043, 1.442695
        %v3097 = vpow.pop %v3096
        %v3098 = vmul.f32 %v3044, 1.442695
        %v3099 = vpow.pop %v3098
        %v3100 = vmul.f32 %v3045, 1.442695
        %v3101 = vpow.pop %v3100
        %v3102 = vmul.f32 %v3046, 1.442695
        %v3103 = vpow.pop %v3102
        %v3104 = vmul.f32 %v3047, 1.442695
        %v3105 = vpow.pop %v3104
        %v3106 = vmul.f32 %v3048, 1.442695
        %v3107 = vpow.pop %v3106
        %v3108 = vmul.f32 %v3049, 1.442695
        %v3109 = vpow.pop %v3108
        %v3110 = vmul.f32 %v3050, 1.442695
        %v3111 = vpow.pop %v3110
        %v3112 = vmul.f32 %v3051, 1.442695
        %v3113 = vpow.pop %v3112
        %v3114 = vmul.f32 %v3052, 1.442695
        %v3115 = vpow.pop %v3114
        %v3116 = vmul.f32 %v3053, 1.442695
        %v3117 = vpow.pop %v3116
        %v3118 = vadd.f32 %v3055, 1.0
        %v3119 = vadd.f32 %v3057, 1.0
        %v3120 = vadd.f32 %v3059, 1.0
        %v3121 = vadd.f32 %v3061, 1.0
        %v3122 = vadd.f32 %v3063, 1.0
        %v3123 = vadd.f32 %v3065, 1.0
        %v3124 = vadd.f32 %v3067, 1.0
        %v3125 = vadd.f32 %v3069, 1.0
        %v3126 = vadd.f32 %v3071, 1.0
        %v3127 = vadd.f32 %v3073, 1.0
        %v3128 = vadd.f32 %v3075, 1.0
        %v3129 = vadd.f32 %v3077, 1.0
        %v3130 = vadd.f32 %v3079, 1.0
        %v3131 = vadd.f32 %v3081, 1.0
        %v3132 = vadd.f32 %v3083, 1.0
        %v3133 = vadd.f32 %v3085, 1.0
        %v3134 = vadd.f32 %v3087, 1.0
        %v3135 = vadd.f32 %v3089, 1.0
        %v3136 = vadd.f32 %v3091, 1.0
        %v3137 = vadd.f32 %v3093, 1.0
        %v3138 = vadd.f32 %v3095, 1.0
        %v3139 = vadd.f32 %v3097, 1.0
        %v3140 = vadd.f32 %v3099, 1.0
        %v3141 = vadd.f32 %v3101, 1.0
        %v3142 = vadd.f32 %v3103, 1.0
        %v3143 = vadd.f32 %v3105, 1.0
        %v3144 = vadd.f32 %v3107, 1.0
        %v3145 = vadd.f32 %v3109, 1.0
        %v3146 = vadd.f32 %v3111, 1.0
        %v3147 = vadd.f32 %v3113, 1.0
        %v3148 = vadd.f32 %v3115, 1.0
        %v3149 = vadd.f32 %v3117, 1.0
        %v3150 = vrcp.pop %v3118
        %v3151 = vmul.f32 1.0, %v3150
        %v3152 = vrcp.pop %v3119
        %v3153 = vmul.f32 1.0, %v3152
        %v3154 = vrcp.pop %v3120
        %v3155 = vmul.f32 1.0, %v3154
        %v3156 = vrcp.pop %v3121
        %v3157 = vmul.f32 1.0, %v3156
        %v3158 = vrcp.pop %v3122
        %v3159 = vmul.f32 1.0, %v3158
        %v3160 = vrcp.pop %v3123
        %v3161 = vmul.f32 1.0, %v3160
        %v3162 = vrcp.pop %v3124
        %v3163 = vmul.f32 1.0, %v3162
        %v3164 = vrcp.pop %v3125
        %v3165 = vmul.f32 1.0, %v3164
        %v3166 = vrcp.pop %v3126
        %v3167 = vmul.f32 1.0, %v3166
        %v3168 = vrcp.pop %v3127
        %v3169 = vmul.f32 1.0, %v3168
        %v3170 = vrcp.pop %v3128
        %v3171 = vmul.f32 1.0, %v3170
        %v3172 = vrcp.pop %v3129
        %v3173 = vmul.f32 1.0, %v3172
        %v3174 = vrcp.pop %v3130
        %v3175 = vmul.f32 1.0, %v3174
        %v3176 = vrcp.pop %v3131
        %v3177 = vmul.f32 1.0, %v3176
        %v3178 = vrcp.pop %v3132
        %v3179 = vmul.f32 1.0, %v3178
        %v3180 = vrcp.pop %v3133
        %v3181 = vmul.f32 1.0, %v3180
        %v3182 = vrcp.pop %v3134
        %v3183 = vmul.f32 1.0, %v3182
        %v3184 = vrcp.pop %v3135
        %v3185 = vmul.f32 1.0, %v3184
        %v3186 = vrcp.pop %v3136
        %v3187 = vmul.f32 1.0, %v3186
        %v3188 = vrcp.pop %v3137
        %v3189 = vmul.f32 1.0, %v3188
        %v3190 = vrcp.pop %v3138
        %v3191 = vmul.f32 1.0, %v3190
        %v3192 = vrcp.pop %v3139
        %v3193 = vmul.f32 1.0, %v3192
        %v3194 = vrcp.pop %v3140
        %v3195 = vmul.f32 1.0, %v3194
        %v3196 = vrcp.pop %v3141
        %v3197 = vmul.f32 1.0, %v3196
        %v3198 = vrcp.pop %v3142
        %v3199 = vmul.f32 1.0, %v3198
        %v3200 = vrcp.pop %v3143
        %v3201 = vmul.f32 1.0, %v3200
        %v3202 = vrcp.pop %v3144
        %v3203 = vmul.f32 1.0, %v3202
        %v3204 = vrcp.pop %v3145
        %v3205 = vmul.f32 1.0, %v3204
        %v3206 = vrcp.pop %v3146
        %v3207 = vmul.f32 1.0, %v3206
        %v3208 = vrcp.pop %v3147
        %v3209 = vmul.f32 1.0, %v3208
        %v3210 = vrcp.pop %v3148
        %v3211 = vmul.f32 1.0, %v3210
        %v3212 = vrcp.pop %v3149
        %v3213 = vmul.f32 1.0, %v3212
        %v3214 = vmul.f32 %v2864, %v3151
        %v3215 = vmul.f32 %v2869, %v3153
        %v3216 = vmul.f32 %v2874, %v3155
        %v3217 = vmul.f32 %v2879, %v3157
        %v3218 = vmul.f32 %v2884, %v3159
        %v3219 = vmul.f32 %v2889, %v3161
        %v3220 = vmul.f32 %v2894, %v3163
        %v3221 = vmul.f32 %v2899, %v3165
        %v3222 = vmul.f32 %v2904, %v3167
        %v3223 = vmul.f32 %v2909, %v3169
        %v3224 = vmul.f32 %v2914, %v3171
        %v3225 = vmul.f32 %v2919, %v3173
        %v3226 = vmul.f32 %v2924, %v3175
        %v3227 = vmul.f32 %v2929, %v3177
        %v3228 = vmul.f32 %v2934, %v3179
        %v3229 = vmul.f32 %v2939, %v3181
        %v3230 = vmul.f32 %v2944, %v3183
        %v3231 = vmul.f32 %v2949, %v3185
        %v3232 = vmul.f32 %v2954, %v3187
        %v3233 = vmul.f32 %v2959, %v3189
        %v3234 = vmul.f32 %v2964, %v3191
        %v3235 = vmul.f32 %v2969, %v3193
        %v3236 = vmul.f32 %v2974, %v3195
        %v3237 = vmul.f32 %v2979, %v3197
        %v3238 = vmul.f32 %v2984, %v3199
        %v3239 = vmul.f32 %v2989, %v3201
        %v3240 = vmul.f32 %v2994, %v3203
        %v3241 = vmul.f32 %v2999, %v3205
        %v3242 = vmul.f32 %v3004, %v3207
        %v3243 = vmul.f32 %v3009, %v3209
        %v3244 = vmul.f32 %v3014, %v3211
        %v3245 = vmul.f32 %v3019, %v3213
        %v3246 = vld [vmem:[%s3 + $0x2] sm:$0x1]
        %v3247 = vld [vmem:[#allocation2 + $0x20] sm:$0xff]
        %v3248 = vld [vmem:[#allocation2 + $0x60] sm:$0xff]
        %v3249 = vld [vmem:[#allocation2 + $0xa0] sm:$0xff]
        %v3250 = vld [vmem:[#allocation2 + $0xe0] sm:$0xff]
        %v3251 = vlaneseq
        %v3252 = vshrl.u32 %v3251, 7
        %v3253 = vsub.s32 0, %v3252
        %v3254 = vrot.slane %v3246, %v3253
        %vm3255 = vcmask 261120
        %v3257 = vsel %vm3255, %v3214, 0
        %v3260 = vsel %vm3255, %v3215, 0
        %v3263 = vsel %vm3255, %v3216, 0
        %v3266 = vsel %vm3255, %v3217, 0
        %v3269 = vsel %vm3255, %v3218, 0
        %v3272 = vsel %vm3255, %v3219, 0
        %v3275 = vsel %vm3255, %v3220, 0
        %v3278 = vsel %vm3255, %v3221, 0
        %v3281 = vsel %vm3255, %v3222, 0
        %v3284 = vsel %vm3255, %v3223, 0
        %v3287 = vsel %vm3255, %v3224, 0
        %v3290 = vsel %vm3255, %v3225, 0
        %v3293 = vsel %vm3255, %v3226, 0
        %v3296 = vsel %vm3255, %v3227, 0
        %v3299 = vsel %vm3255, %v3228, 0
        %v3302 = vsel %vm3255, %v3229, 0
        %v3305 = vsel %vm3255, %v3230, 0
        %v3308 = vsel %vm3255, %v3231, 0
        %v3311 = vsel %vm3255, %v3232, 0
        %v3314 = vsel %vm3255, %v3233, 0
        %v3317 = vsel %vm3255, %v3234, 0
        %v3320 = vsel %vm3255, %v3235, 0
        %v3323 = vsel %vm3255, %v3236, 0
        %v3326 = vsel %vm3255, %v3237, 0
        %v3329 = vsel %vm3255, %v3238, 0
        %v3332 = vsel %vm3255, %v3239, 0
        %v3335 = vsel %vm3255, %v3240, 0
        %v3338 = vsel %vm3255, %v3241, 0
        %v3341 = vsel %vm3255, %v3242, 0
        %v3344 = vsel %vm3255, %v3243, 0
        %v3347 = vsel %vm3255, %v3244, 0
        %v3350 = vsel %vm3255, %v3245, 0
        %3352 = vmatprep.subr.mxu0 0.0
        %3353 = vmatpush1.msra.mxu0 0.0
        %3354 = vmatprep.subr.mxu0 0.0
        %3355 = vmatpush1.msra.mxu0 0.0
        %3356 = vmatprep.subr.mxu0 0.0
        %3357 = vmatpush1.msra.mxu0 0.0
        %3358 = vmatprep.subr.mxu0 0.0
        %3359 = vmatpush1.msra.mxu0 0.0
        %3360 = vmatprep.subr.mxu0 0.0
        %3361 = vmatpush1.msra.mxu0 0.0
        %3362 = vmatprep.subr.mxu0 0.0
        %3363 = vmatpush1.msra.mxu0 0.0
        %3364 = vmatprep.subr.mxu0 0.0
        %3365 = vmatpush1.msra.mxu0 0.0
        %3366 = vmatprep.subr.mxu0 0.0
        %3367 = vmatpush1.msra.mxu0 0.0
        %3368 = vmatprep.subr.mxu0 0.0
        %3369 = vmatpush1.msra.mxu0 0.0
        %3370 = vmatprep.subr.mxu0 0.0
        %3371 = vmatpush1.msra.mxu0 0.0
        %3372 = vmatprep.subr.mxu0 0.0
        %3373 = vmatpush1.msra.mxu0 0.0
        %3374 = vmatprep.subr.mxu0 0.0
        %3375 = vmatpush1.msra.mxu0 0.0
        %3376 = vmatprep.subr.mxu0 0.0
        %3377 = vmatpush1.msra.mxu0 %v3250
        %3378 = vmatprep.subr.mxu0 0.0
        %3379 = vmatpush1.msra.mxu0 %v3249
        %3380 = vmatprep.subr.mxu0 0.0
        %3381 = vmatpush1.msra.mxu0 %v3248
        %3382 = vmatprep.subr.mxu0 0.0
        %3383 = vmatpush1.msra.mxu0 %v3247
        %3384 = vmatprep.subr.mxu0 0.0
        %3385 = vmatpush2.msra.mxu0 0.0
        %3386 = vmatprep.subr.mxu0 0.0
        %3387 = vmatpush2.msra.mxu0 0.0
        %3388 = vmatprep.subr.mxu0 0.0
        %3389 = vmatpush2.msra.mxu0 0.0
        %3390 = vmatprep.subr.mxu0 0.0
        %3391 = vmatpush2.msra.mxu0 0.0
        %3392 = vmatprep.subr.mxu0 0.0
        %3393 = vmatpush2.msra.mxu0 0.0
        %3394 = vmatprep.subr.mxu0 0.0
        %3395 = vmatpush2.msra.mxu0 0.0
        %3396 = vmatprep.subr.mxu0 0.0
        %3397 = vmatpush2.msra.mxu0 0.0
        %3398 = vmatprep.subr.mxu0 0.0
        %3399 = vmatpush2.msra.mxu0 0.0
        %3400 = vmatprep.subr.mxu0 0.0
        %3401 = vmatpush2.msra.mxu0 0.0
        %3402 = vmatprep.subr.mxu0 0.0
        %3403 = vmatpush2.msra.mxu0 0.0
        %3404 = vmatprep.subr.mxu0 0.0
        %3405 = vmatpush2.msra.mxu0 0.0
        %3406 = vmatprep.subr.mxu0 0.0
        %3407 = vmatpush2.msra.mxu0 0.0
        %3408 = vmatprep.subr.mxu0 0.0
        %3409 = vmatpush2.msra.mxu0 0.0
        %3410 = vmatprep.subr.mxu0 0.0
        %3411 = vmatpush2.msra.mxu0 0.0
        %3412 = vmatprep.subr.mxu0 0.0
        %3413 = vmatpush2.msra.mxu0 0.0
        %3414 = vmatprep.subr.mxu0 0.0
        %3415 = vmatpush2.msra.mxu0 0.0
        %3416 = vmatprep.mubr.f32.mxu0 0.0
        %3417 = vmatmul.mubr.f32.gmra.mxu0 %v3257
        %v3418 = vpop.f32.mrf.mxu0
        %v3419 = vadd.f32 %v3254, %v3418
        %v3420 = vpop.f32.mrf.mxu0
        %3421 = vmatprep.mubr.f32.mxu0 0.0
        %3422 = vmatmul.mubr.f32.gmra.mxu0 %v3260
        %v3423 = vpop.f32.mrf.mxu0
        %v3424 = vadd.f32 %v3254, %v3423
        %v3425 = vpop.f32.mrf.mxu0
        %3426 = vmatprep.mubr.f32.mxu0 0.0
        %3427 = vmatmul.mubr.f32.gmra.mxu0 %v3263
        %v3428 = vpop.f32.mrf.mxu0
        %v3429 = vadd.f32 %v3254, %v3428
        %v3430 = vpop.f32.mrf.mxu0
        %3431 = vmatprep.mubr.f32.mxu0 0.0
        %3432 = vmatmul.mubr.f32.gmra.mxu0 %v3266
        %v3433 = vpop.f32.mrf.mxu0
        %v3434 = vadd.f32 %v3254, %v3433
        %v3435 = vpop.f32.mrf.mxu0
        %3436 = vmatprep.mubr.f32.mxu0 0.0
        %3437 = vmatmul.mubr.f32.gmra.mxu0 %v3269
        %v3438 = vpop.f32.mrf.mxu0
        %v3439 = vadd.f32 %v3254, %v3438
        %v3440 = vpop.f32.mrf.mxu0
        %3441 = vmatprep.mubr.f32.mxu0 0.0
        %3442 = vmatmul.mubr.f32.gmra.mxu0 %v3272
        %v3443 = vpop.f32.mrf.mxu0
        %v3444 = vadd.f32 %v3254, %v3443
        %v3445 = vpop.f32.mrf.mxu0
        %3446 = vmatprep.mubr.f32.mxu0 0.0
        %3447 = vmatmul.mubr.f32.gmra.mxu0 %v3275
        %v3448 = vpop.f32.mrf.mxu0
        %v3449 = vadd.f32 %v3254, %v3448
        %v3450 = vpop.f32.mrf.mxu0
        %3451 = vmatprep.mubr.f32.mxu0 0.0
        %3452 = vmatmul.mubr.f32.gmra.mxu0 %v3278
        %v3453 = vpop.f32.mrf.mxu0
        %v3454 = vadd.f32 %v3254, %v3453
        %v3455 = vpop.f32.mrf.mxu0
        %3456 = vmatprep.mubr.f32.mxu0 0.0
        %3457 = vmatmul.mubr.f32.gmra.mxu0 %v3281
        %v3458 = vpop.f32.mrf.mxu0
        %v3459 = vadd.f32 %v3254, %v3458
        %v3460 = vpop.f32.mrf.mxu0
        %3461 = vmatprep.mubr.f32.mxu0 0.0
        %3462 = vmatmul.mubr.f32.gmra.mxu0 %v3284
        %v3463 = vpop.f32.mrf.mxu0
        %v3464 = vadd.f32 %v3254, %v3463
        %v3465 = vpop.f32.mrf.mxu0
        %3466 = vmatprep.mubr.f32.mxu0 0.0
        %3467 = vmatmul.mubr.f32.gmra.mxu0 %v3287
        %v3468 = vpop.f32.mrf.mxu0
        %v3469 = vadd.f32 %v3254, %v3468
        %v3470 = vpop.f32.mrf.mxu0
        %3471 = vmatprep.mubr.f32.mxu0 0.0
        %3472 = vmatmul.mubr.f32.gmra.mxu0 %v3290
        %v3473 = vpop.f32.mrf.mxu0
        %v3474 = vadd.f32 %v3254, %v3473
        %v3475 = vpop.f32.mrf.mxu0
        %3476 = vmatprep.mubr.f32.mxu0 0.0
        %3477 = vmatmul.mubr.f32.gmra.mxu0 %v3293
        %v3478 = vpop.f32.mrf.mxu0
        %v3479 = vadd.f32 %v3254, %v3478
        %v3480 = vpop.f32.mrf.mxu0
        %3481 = vmatprep.mubr.f32.mxu0 0.0
        %3482 = vmatmul.mubr.f32.gmra.mxu0 %v3296
        %v3483 = vpop.f32.mrf.mxu0
        %v3484 = vadd.f32 %v3254, %v3483
        %v3485 = vpop.f32.mrf.mxu0
        %3486 = vmatprep.mubr.f32.mxu0 0.0
        %3487 = vmatmul.mubr.f32.gmra.mxu0 %v3299
        %v3488 = vpop.f32.mrf.mxu0
        %v3489 = vadd.f32 %v3254, %v3488
        %v3490 = vpop.f32.mrf.mxu0
        %3491 = vmatprep.mubr.f32.mxu0 0.0
        %3492 = vmatmul.mubr.f32.gmra.mxu0 %v3302
        %v3493 = vpop.f32.mrf.mxu0
        %v3494 = vadd.f32 %v3254, %v3493
        %v3495 = vpop.f32.mrf.mxu0
        %3496 = vmatprep.mubr.f32.mxu0 0.0
        %3497 = vmatmul.mubr.f32.gmra.mxu0 %v3305
        %v3498 = vpop.f32.mrf.mxu0
        %v3499 = vadd.f32 %v3254, %v3498
        %v3500 = vpop.f32.mrf.mxu0
        %3501 = vmatprep.mubr.f32.mxu0 0.0
        %3502 = vmatmul.mubr.f32.gmra.mxu0 %v3308
        %v3503 = vpop.f32.mrf.mxu0
        %v3504 = vadd.f32 %v3254, %v3503
        %v3505 = vpop.f32.mrf.mxu0
        %3506 = vmatprep.mubr.f32.mxu0 0.0
        %3507 = vmatmul.mubr.f32.gmra.mxu0 %v3311
        %v3508 = vpop.f32.mrf.mxu0
        %v3509 = vadd.f32 %v3254, %v3508
        %v3510 = vpop.f32.mrf.mxu0
        %3511 = vmatprep.mubr.f32.mxu0 0.0
        %3512 = vmatmul.mubr.f32.gmra.mxu0 %v3314
        %v3513 = vpop.f32.mrf.mxu0
        %v3514 = vadd.f32 %v3254, %v3513
        %v3515 = vpop.f32.mrf.mxu0
        %3516 = vmatprep.mubr.f32.mxu0 0.0
        %3517 = vmatmul.mubr.f32.gmra.mxu0 %v3317
        %v3518 = vpop.f32.mrf.mxu0
        %v3519 = vadd.f32 %v3254, %v3518
        %v3520 = vpop.f32.mrf.mxu0
        %3521 = vmatprep.mubr.f32.mxu0 0.0
        %3522 = vmatmul.mubr.f32.gmra.mxu0 %v3320
        %v3523 = vpop.f32.mrf.mxu0
        %v3524 = vadd.f32 %v3254, %v3523
        %v3525 = vpop.f32.mrf.mxu0
        %3526 = vmatprep.mubr.f32.mxu0 0.0
        %3527 = vmatmul.mubr.f32.gmra.mxu0 %v3323
        %v3528 = vpop.f32.mrf.mxu0
        %v3529 = vadd.f32 %v3254, %v3528
        %v3530 = vpop.f32.mrf.mxu0
        %3531 = vmatprep.mubr.f32.mxu0 0.0
        %3532 = vmatmul.mubr.f32.gmra.mxu0 %v3326
        %v3533 = vpop.f32.mrf.mxu0
        %v3534 = vadd.f32 %v3254, %v3533
        %v3535 = vpop.f32.mrf.mxu0
        %3536 = vmatprep.mubr.f32.mxu0 0.0
        %3537 = vmatmul.mubr.f32.gmra.mxu0 %v3329
        %v3538 = vpop.f32.mrf.mxu0
        %v3539 = vadd.f32 %v3254, %v3538
        %v3540 = vpop.f32.mrf.mxu0
        %3541 = vmatprep.mubr.f32.mxu0 0.0
        %3542 = vmatmul.mubr.f32.gmra.mxu0 %v3332
        %v3543 = vpop.f32.mrf.mxu0
        %v3544 = vadd.f32 %v3254, %v3543
        %v3545 = vpop.f32.mrf.mxu0
        %3546 = vmatprep.mubr.f32.mxu0 0.0
        %3547 = vmatmul.mubr.f32.gmra.mxu0 %v3335
        %v3548 = vpop.f32.mrf.mxu0
        %v3549 = vadd.f32 %v3254, %v3548
        %v3550 = vpop.f32.mrf.mxu0
        %3551 = vmatprep.mubr.f32.mxu0 0.0
        %3552 = vmatmul.mubr.f32.gmra.mxu0 %v3338
        %v3553 = vpop.f32.mrf.mxu0
        %v3554 = vadd.f32 %v3254, %v3553
        %v3555 = vpop.f32.mrf.mxu0
        %3556 = vmatprep.mubr.f32.mxu0 0.0
        %3557 = vmatmul.mubr.f32.gmra.mxu0 %v3341
        %v3558 = vpop.f32.mrf.mxu0
        %v3559 = vadd.f32 %v3254, %v3558
        %v3560 = vpop.f32.mrf.mxu0
        %3561 = vmatprep.mubr.f32.mxu0 0.0
        %3562 = vmatmul.mubr.f32.gmra.mxu0 %v3344
        %v3563 = vpop.f32.mrf.mxu0
        %v3564 = vadd.f32 %v3254, %v3563
        %v3565 = vpop.f32.mrf.mxu0
        %3566 = vmatprep.mubr.f32.mxu0 0.0
        %3567 = vmatmul.mubr.f32.gmra.mxu0 %v3347
        %v3568 = vpop.f32.mrf.mxu0
        %v3569 = vadd.f32 %v3254, %v3568
        %v3570 = vpop.f32.mrf.mxu0
        %3571 = vmatprep.mubr.f32.mxu0 0.0
        %3572 = vmatmul.mubr.f32.gmra.mxu0 %v3350
        %v3573 = vpop.f32.mrf.mxu0
        %v3574 = vadd.f32 %v3254, %v3573
        %v3575 = vpop.f32.mrf.mxu0
        %3576 = vdwg.mxu0
        %v3577 = vxor.u32 %v3419, 2147483648
        %v3578 = vxor.u32 %v3424, 2147483648
        %v3579 = vxor.u32 %v3429, 2147483648
        %v3580 = vxor.u32 %v3434, 2147483648
        %v3581 = vxor.u32 %v3439, 2147483648
        %v3582 = vxor.u32 %v3444, 2147483648
        %v3583 = vxor.u32 %v3449, 2147483648
        %v3584 = vxor.u32 %v3454, 2147483648
        %v3585 = vxor.u32 %v3459, 2147483648
        %v3586 = vxor.u32 %v3464, 2147483648
        %v3587 = vxor.u32 %v3469, 2147483648
        %v3588 = vxor.u32 %v3474, 2147483648
        %v3589 = vxor.u32 %v3479, 2147483648
        %v3590 = vxor.u32 %v3484, 2147483648
        %v3591 = vxor.u32 %v3489, 2147483648
        %v3592 = vxor.u32 %v3494, 2147483648
        %v3593 = vxor.u32 %v3499, 2147483648
        %v3594 = vxor.u32 %v3504, 2147483648
        %v3595 = vxor.u32 %v3509, 2147483648
        %v3596 = vxor.u32 %v3514, 2147483648
        %v3597 = vxor.u32 %v3519, 2147483648
        %v3598 = vxor.u32 %v3524, 2147483648
        %v3599 = vxor.u32 %v3529, 2147483648
        %v3600 = vxor.u32 %v3534, 2147483648
        %v3601 = vxor.u32 %v3539, 2147483648
        %v3602 = vxor.u32 %v3544, 2147483648
        %v3603 = vxor.u32 %v3549, 2147483648
        %v3604 = vxor.u32 %v3554, 2147483648
        %v3605 = vxor.u32 %v3559, 2147483648
        %v3606 = vxor.u32 %v3564, 2147483648
        %v3607 = vxor.u32 %v3569, 2147483648
        %v3608 = vxor.u32 %v3574, 2147483648
        %v3609 = vmul.f32 %v3577, 1.442695
        %v3610 = vpow.pop %v3609
        %v3611 = vmul.f32 %v3578, 1.442695
        %v3612 = vpow.pop %v3611
        %v3613 = vmul.f32 %v3579, 1.442695
        %v3614 = vpow.pop %v3613
        %v3615 = vmul.f32 %v3580, 1.442695
        %v3616 = vpow.pop %v3615
        %v3617 = vmul.f32 %v3581, 1.442695
        %v3618 = vpow.pop %v3617
        %v3619 = vmul.f32 %v3582, 1.442695
        %v3620 = vpow.pop %v3619
        %v3621 = vmul.f32 %v3583, 1.442695
        %v3622 = vpow.pop %v3621
        %v3623 = vmul.f32 %v3584, 1.442695
        %v3624 = vpow.pop %v3623
        %v3625 = vmul.f32 %v3585, 1.442695
        %v3626 = vpow.pop %v3625
        %v3627 = vmul.f32 %v3586, 1.442695
        %v3628 = vpow.pop %v3627
        %v3629 = vmul.f32 %v3587, 1.442695
        %v3630 = vpow.pop %v3629
        %v3631 = vmul.f32 %v3588, 1.442695
        %v3632 = vpow.pop %v3631
        %v3633 = vmul.f32 %v3589, 1.442695
        %v3634 = vpow.pop %v3633
        %v3635 = vmul.f32 %v3590, 1.442695
        %v3636 = vpow.pop %v3635
        %v3637 = vmul.f32 %v3591, 1.442695
        %v3638 = vpow.pop %v3637
        %v3639 = vmul.f32 %v3592, 1.442695
        %v3640 = vpow.pop %v3639
        %v3641 = vmul.f32 %v3593, 1.442695
        %v3642 = vpow.pop %v3641
        %v3643 = vmul.f32 %v3594, 1.442695
        %v3644 = vpow.pop %v3643
        %v3645 = vmul.f32 %v3595, 1.442695
        %v3646 = vpow.pop %v3645
        %v3647 = vmul.f32 %v3596, 1.442695
        %v3648 = vpow.pop %v3647
        %v3649 = vmul.f32 %v3597, 1.442695
        %v3650 = vpow.pop %v3649
        %v3651 = vmul.f32 %v3598, 1.442695
        %v3652 = vpow.pop %v3651
        %v3653 = vmul.f32 %v3599, 1.442695
        %v3654 = vpow.pop %v3653
        %v3655 = vmul.f32 %v3600, 1.442695
        %v3656 = vpow.pop %v3655
        %v3657 = vmul.f32 %v3601, 1.442695
        %v3658 = vpow.pop %v3657
        %v3659 = vmul.f32 %v3602, 1.442695
        %v3660 = vpow.pop %v3659
        %v3661 = vmul.f32 %v3603, 1.442695
        %v3662 = vpow.pop %v3661
        %v3663 = vmul.f32 %v3604, 1.442695
        %v3664 = vpow.pop %v3663
        %v3665 = vmul.f32 %v3605, 1.442695
        %v3666 = vpow.pop %v3665
        %v3667 = vmul.f32 %v3606, 1.442695
        %v3668 = vpow.pop %v3667
        %v3669 = vmul.f32 %v3607, 1.442695
        %v3670 = vpow.pop %v3669
        %v3671 = vmul.f32 %v3608, 1.442695
        %v3672 = vpow.pop %v3671
        %v3673 = vadd.f32 %v3610, 1.0
        %v3674 = vadd.f32 %v3612, 1.0
        %v3675 = vadd.f32 %v3614, 1.0
        %v3676 = vadd.f32 %v3616, 1.0
        %v3677 = vadd.f32 %v3618, 1.0
        %v3678 = vadd.f32 %v3620, 1.0
        %v3679 = vadd.f32 %v3622, 1.0
        %v3680 = vadd.f32 %v3624, 1.0
        %v3681 = vadd.f32 %v3626, 1.0
        %v3682 = vadd.f32 %v3628, 1.0
        %v3683 = vadd.f32 %v3630, 1.0
        %v3684 = vadd.f32 %v3632, 1.0
        %v3685 = vadd.f32 %v3634, 1.0
        %v3686 = vadd.f32 %v3636, 1.0
        %v3687 = vadd.f32 %v3638, 1.0
        %v3688 = vadd.f32 %v3640, 1.0
        %v3689 = vadd.f32 %v3642, 1.0
        %v3690 = vadd.f32 %v3644, 1.0
        %v3691 = vadd.f32 %v3646, 1.0
        %v3692 = vadd.f32 %v3648, 1.0
        %v3693 = vadd.f32 %v3650, 1.0
        %v3694 = vadd.f32 %v3652, 1.0
        %v3695 = vadd.f32 %v3654, 1.0
        %v3696 = vadd.f32 %v3656, 1.0
        %v3697 = vadd.f32 %v3658, 1.0
        %v3698 = vadd.f32 %v3660, 1.0
        %v3699 = vadd.f32 %v3662, 1.0
        %v3700 = vadd.f32 %v3664, 1.0
        %v3701 = vadd.f32 %v3666, 1.0
        %v3702 = vadd.f32 %v3668, 1.0
        %v3703 = vadd.f32 %v3670, 1.0
        %v3704 = vadd.f32 %v3672, 1.0
        %v3705 = vrcp.pop %v3673
        %v3706 = vmul.f32 1.0, %v3705
        %v3707 = vrcp.pop %v3674
        %v3708 = vmul.f32 1.0, %v3707
        %v3709 = vrcp.pop %v3675
        %v3710 = vmul.f32 1.0, %v3709
        %v3711 = vrcp.pop %v3676
        %v3712 = vmul.f32 1.0, %v3711
        %v3713 = vrcp.pop %v3677
        %v3714 = vmul.f32 1.0, %v3713
        %v3715 = vrcp.pop %v3678
        %v3716 = vmul.f32 1.0, %v3715
        %v3717 = vrcp.pop %v3679
        %v3718 = vmul.f32 1.0, %v3717
        %v3719 = vrcp.pop %v3680
        %v3720 = vmul.f32 1.0, %v3719
        %v3721 = vrcp.pop %v3681
        %v3722 = vmul.f32 1.0, %v3721
        %v3723 = vrcp.pop %v3682
        %v3724 = vmul.f32 1.0, %v3723
        %v3725 = vrcp.pop %v3683
        %v3726 = vmul.f32 1.0, %v3725
        %v3727 = vrcp.pop %v3684
        %v3728 = vmul.f32 1.0, %v3727
        %v3729 = vrcp.pop %v3685
        %v3730 = vmul.f32 1.0, %v3729
        %v3731 = vrcp.pop %v3686
        %v3732 = vmul.f32 1.0, %v3731
        %v3733 = vrcp.pop %v3687
        %v3734 = vmul.f32 1.0, %v3733
        %v3735 = vrcp.pop %v3688
        %v3736 = vmul.f32 1.0, %v3735
        %v3737 = vrcp.pop %v3689
        %v3738 = vmul.f32 1.0, %v3737
        %v3739 = vrcp.pop %v3690
        %v3740 = vmul.f32 1.0, %v3739
        %v3741 = vrcp.pop %v3691
        %v3742 = vmul.f32 1.0, %v3741
        %v3743 = vrcp.pop %v3692
        %v3744 = vmul.f32 1.0, %v3743
        %v3745 = vrcp.pop %v3693
        %v3746 = vmul.f32 1.0, %v3745
        %v3747 = vrcp.pop %v3694
        %v3748 = vmul.f32 1.0, %v3747
        %v3749 = vrcp.pop %v3695
        %v3750 = vmul.f32 1.0, %v3749
        %v3751 = vrcp.pop %v3696
        %v3752 = vmul.f32 1.0, %v3751
        %v3753 = vrcp.pop %v3697
        %v3754 = vmul.f32 1.0, %v3753
        %v3755 = vrcp.pop %v3698
        %v3756 = vmul.f32 1.0, %v3755
        %v3757 = vrcp.pop %v3699
        %v3758 = vmul.f32 1.0, %v3757
        %v3759 = vrcp.pop %v3700
        %v3760 = vmul.f32 1.0, %v3759
        %v3761 = vrcp.pop %v3701
        %v3762 = vmul.f32 1.0, %v3761
        %v3763 = vrcp.pop %v3702
        %v3764 = vmul.f32 1.0, %v3763
        %v3765 = vrcp.pop %v3703
        %v3766 = vmul.f32 1.0, %v3765
        %v3767 = vrcp.pop %v3704
        %v3768 = vmul.f32 1.0, %v3767
        %v3769 = vmul.f32 %v3419, %v3706
        %v3770 = vmul.f32 %v3424, %v3708
        %v3771 = vmul.f32 %v3429, %v3710
        %v3772 = vmul.f32 %v3434, %v3712
        %v3773 = vmul.f32 %v3439, %v3714
        %v3774 = vmul.f32 %v3444, %v3716
        %v3775 = vmul.f32 %v3449, %v3718
        %v3776 = vmul.f32 %v3454, %v3720
        %v3777 = vmul.f32 %v3459, %v3722
        %v3778 = vmul.f32 %v3464, %v3724
        %v3779 = vmul.f32 %v3469, %v3726
        %v3780 = vmul.f32 %v3474, %v3728
        %v3781 = vmul.f32 %v3479, %v3730
        %v3782 = vmul.f32 %v3484, %v3732
        %v3783 = vmul.f32 %v3489, %v3734
        %v3784 = vmul.f32 %v3494, %v3736
        %v3785 = vmul.f32 %v3499, %v3738
        %v3786 = vmul.f32 %v3504, %v3740
        %v3787 = vmul.f32 %v3509, %v3742
        %v3788 = vmul.f32 %v3514, %v3744
        %v3789 = vmul.f32 %v3519, %v3746
        %v3790 = vmul.f32 %v3524, %v3748
        %v3791 = vmul.f32 %v3529, %v3750
        %v3792 = vmul.f32 %v3534, %v3752
        %v3793 = vmul.f32 %v3539, %v3754
        %v3794 = vmul.f32 %v3544, %v3756
        %v3795 = vmul.f32 %v3549, %v3758
        %v3796 = vmul.f32 %v3554, %v3760
        %v3797 = vmul.f32 %v3559, %v3762
        %v3798 = vmul.f32 %v3564, %v3764
        %v3799 = vmul.f32 %v3569, %v3766
        %v3800 = vmul.f32 %v3574, %v3768
        %v3801 = vld [vmem:[%s3 + $0x8] sm:$0x1]
        %v3802 = vld [vmem:[%s3 + $0x3] sm:$0x1]
        %v3803 = vlaneseq
        %v3804 = vshrl.u32 %v3803, 7
        %v3805 = vsub.s32 0, %v3804
        %v3806 = vrot.slane %v3801, %v3805
        %v3807 = vmul.f32 %v3769, %v3806
        %v3808 = vmul.f32 %v3770, %v3806
        %v3809 = vmul.f32 %v3771, %v3806
        %v3810 = vmul.f32 %v3772, %v3806
        %v3811 = vmul.f32 %v3773, %v3806
        %v3812 = vmul.f32 %v3774, %v3806
        %v3813 = vmul.f32 %v3775, %v3806
        %v3814 = vmul.f32 %v3776, %v3806
        %v3815 = vmul.f32 %v3777, %v3806
        %v3816 = vmul.f32 %v3778, %v3806
        %v3817 = vmul.f32 %v3779, %v3806
        %v3818 = vmul.f32 %v3780, %v3806
        %v3819 = vmul.f32 %v3781, %v3806
        %v3820 = vmul.f32 %v3782, %v3806
        %v3821 = vmul.f32 %v3783, %v3806
        %v3822 = vmul.f32 %v3784, %v3806
        %v3823 = vmul.f32 %v3785, %v3806
        %v3824 = vmul.f32 %v3786, %v3806
        %v3825 = vmul.f32 %v3787, %v3806
        %v3826 = vmul.f32 %v3788, %v3806
        %v3827 = vmul.f32 %v3789, %v3806
        %v3828 = vmul.f32 %v3790, %v3806
        %v3829 = vmul.f32 %v3791, %v3806
        %v3830 = vmul.f32 %v3792, %v3806
        %v3831 = vmul.f32 %v3793, %v3806
        %v3832 = vmul.f32 %v3794, %v3806
        %v3833 = vmul.f32 %v3795, %v3806
        %v3834 = vmul.f32 %v3796, %v3806
        %v3835 = vmul.f32 %v3797, %v3806
        %v3836 = vmul.f32 %v3798, %v3806
        %v3837 = vmul.f32 %v3799, %v3806
        %v3838 = vmul.f32 %v3800, %v3806
        %3839 = vadd.xlane.f32.xlu0 %v3807
        %v3840 = vpop.xlane.xlu0 %3839
        %3841 = vadd.xlane.f32.xlu0 %v3808
        %v3842 = vpop.xlane.xlu0 %3841
        %3843 = vadd.xlane.f32.xlu0 %v3809
        %v3844 = vpop.xlane.xlu0 %3843
        %3845 = vadd.xlane.f32.xlu0 %v3810
        %v3846 = vpop.xlane.xlu0 %3845
        %3847 = vadd.xlane.f32.xlu0 %v3811
        %v3848 = vpop.xlane.xlu0 %3847
        %3849 = vadd.xlane.f32.xlu0 %v3812
        %v3850 = vpop.xlane.xlu0 %3849
        %3851 = vadd.xlane.f32.xlu0 %v3813
        %v3852 = vpop.xlane.xlu0 %3851
        %3853 = vadd.xlane.f32.xlu0 %v3814
        %v3854 = vpop.xlane.xlu0 %3853
        %3855 = vadd.xlane.f32.xlu0 %v3815
        %v3856 = vpop.xlane.xlu0 %3855
        %3857 = vadd.xlane.f32.xlu0 %v3816
        %v3858 = vpop.xlane.xlu0 %3857
        %3859 = vadd.xlane.f32.xlu0 %v3817
        %v3860 = vpop.xlane.xlu0 %3859
        %3861 = vadd.xlane.f32.xlu0 %v3818
        %v3862 = vpop.xlane.xlu0 %3861
        %3863 = vadd.xlane.f32.xlu0 %v3819
        %v3864 = vpop.xlane.xlu0 %3863
        %3865 = vadd.xlane.f32.xlu0 %v3820
        %v3866 = vpop.xlane.xlu0 %3865
        %3867 = vadd.xlane.f32.xlu0 %v3821
        %v3868 = vpop.xlane.xlu0 %3867
        %3869 = vadd.xlane.f32.xlu0 %v3822
        %v3870 = vpop.xlane.xlu0 %3869
        %3871 = vadd.xlane.f32.xlu0 %v3823
        %v3872 = vpop.xlane.xlu0 %3871
        %3873 = vadd.xlane.f32.xlu0 %v3824
        %v3874 = vpop.xlane.xlu0 %3873
        %3875 = vadd.xlane.f32.xlu0 %v3825
        %v3876 = vpop.xlane.xlu0 %3875
        %3877 = vadd.xlane.f32.xlu0 %v3826
        %v3878 = vpop.xlane.xlu0 %3877
        %3879 = vadd.xlane.f32.xlu0 %v3827
        %v3880 = vpop.xlane.xlu0 %3879
        %3881 = vadd.xlane.f32.xlu0 %v3828
        %v3882 = vpop.xlane.xlu0 %3881
        %3883 = vadd.xlane.f32.xlu0 %v3829
        %v3884 = vpop.xlane.xlu0 %3883
        %3885 = vadd.xlane.f32.xlu0 %v3830
        %v3886 = vpop.xlane.xlu0 %3885
        %3887 = vadd.xlane.f32.xlu0 %v3831
        %v3888 = vpop.xlane.xlu0 %3887
        %3889 = vadd.xlane.f32.xlu0 %v3832
        %v3890 = vpop.xlane.xlu0 %3889
        %3891 = vadd.xlane.f32.xlu0 %v3833
        %v3892 = vpop.xlane.xlu0 %3891
        %3893 = vadd.xlane.f32.xlu0 %v3834
        %v3894 = vpop.xlane.xlu0 %3893
        %3895 = vadd.xlane.f32.xlu0 %v3835
        %v3896 = vpop.xlane.xlu0 %3895
        %3897 = vadd.xlane.f32.xlu0 %v3836
        %v3898 = vpop.xlane.xlu0 %3897
        %3899 = vadd.xlane.f32.xlu0 %v3837
        %v3900 = vpop.xlane.xlu0 %3899
        %3901 = vadd.xlane.f32.xlu0 %v3838
        %v3902 = vpop.xlane.xlu0 %3901
        %v3903 = vlaneseq
        %v3904 = vshrl.u32 %v3903, 7
        %v3905 = vsub.s32 0, %v3904
        %v3906 = vrot.slane %v3802, %v3905
        %v3907 = vadd.f32 %v3840, %v3906
        %v3908 = vadd.f32 %v3842, %v3906
        %v3909 = vadd.f32 %v3844, %v3906
        %v3910 = vadd.f32 %v3846, %v3906
        %v3911 = vadd.f32 %v3848, %v3906
        %v3912 = vadd.f32 %v3850, %v3906
        %v3913 = vadd.f32 %v3852, %v3906
        %v3914 = vadd.f32 %v3854, %v3906
        %v3915 = vadd.f32 %v3856, %v3906
        %v3916 = vadd.f32 %v3858, %v3906
        %v3917 = vadd.f32 %v3860, %v3906
        %v3918 = vadd.f32 %v3862, %v3906
        %v3919 = vadd.f32 %v3864, %v3906
        %v3920 = vadd.f32 %v3866, %v3906
        %v3921 = vadd.f32 %v3868, %v3906
        %v3922 = vadd.f32 %v3870, %v3906
        %v3923 = vadd.f32 %v3872, %v3906
        %v3924 = vadd.f32 %v3874, %v3906
        %v3925 = vadd.f32 %v3876, %v3906
        %v3926 = vadd.f32 %v3878, %v3906
        %v3927 = vadd.f32 %v3880, %v3906
        %v3928 = vadd.f32 %v3882, %v3906
        %v3929 = vadd.f32 %v3884, %v3906
        %v3930 = vadd.f32 %v3886, %v3906
        %v3931 = vadd.f32 %v3888, %v3906
        %v3932 = vadd.f32 %v3890, %v3906
        %v3933 = vadd.f32 %v3892, %v3906
        %v3934 = vadd.f32 %v3894, %v3906
        %v3935 = vadd.f32 %v3896, %v3906
        %v3936 = vadd.f32 %v3898, %v3906
        %v3937 = vadd.f32 %v3900, %v3906
        %v3938 = vadd.f32 %v3902, %v3906
        %vm3939 = vcmask 7168
        %v3940 = vsel %vm3939, %v3907, 0.0
        %v3941 = vsel %vm3939, %v3908, 0.0
        %v3942 = vadd.f32 %v3940, %v3941
        %v3943 = vrot.slane %v3942, 4
        %v3944 = vadd.f32 %v3942, %v3943
        %v3945 = vrot.slane %v3944, 2
        %v3946 = vadd.f32 %v3944, %v3945
        %v3947 = vrot.slane %v3946, 1
        %v3948 = vadd.f32 %v3946, %v3947
        %v3949 = vsel %vm3939, %v3909, 0.0
        %v3950 = vsel %vm3939, %v3910, 0.0
        %v3951 = vadd.f32 %v3949, %v3950
        %v3952 = vrot.slane %v3951, 4
        %v3953 = vadd.f32 %v3951, %v3952
        %v3954 = vrot.slane %v3953, 2
        %v3955 = vadd.f32 %v3953, %v3954
        %v3956 = vrot.slane %v3955, 1
        %v3957 = vadd.f32 %v3955, %v3956
        %v3958 = vsel %vm3939, %v3911, 0.0
        %v3959 = vsel %vm3939, %v3912, 0.0
        %v3960 = vadd.f32 %v3958, %v3959
        %v3961 = vrot.slane %v3960, 4
        %v3962 = vadd.f32 %v3960, %v3961
        %v3963 = vrot.slane %v3962, 2
        %v3964 = vadd.f32 %v3962, %v3963
        %v3965 = vrot.slane %v3964, 1
        %v3966 = vadd.f32 %v3964, %v3965
        %v3967 = vsel %vm3939, %v3913, 0.0
        %v3968 = vsel %vm3939, %v3914, 0.0
        %v3969 = vadd.f32 %v3967, %v3968
        %v3970 = vrot.slane %v3969, 4
        %v3971 = vadd.f32 %v3969, %v3970
        %v3972 = vrot.slane %v3971, 2
        %v3973 = vadd.f32 %v3971, %v3972
        %v3974 = vrot.slane %v3973, 1
        %v3975 = vadd.f32 %v3973, %v3974
        %v3976 = vsel %vm3939, %v3915, 0.0
        %v3977 = vsel %vm3939, %v3916, 0.0
        %v3978 = vadd.f32 %v3976, %v3977
        %v3979 = vrot.slane %v3978, 4
        %v3980 = vadd.f32 %v3978, %v3979
        %v3981 = vrot.slane %v3980, 2
        %v3982 = vadd.f32 %v3980, %v3981
        %v3983 = vrot.slane %v3982, 1
        %v3984 = vadd.f32 %v3982, %v3983
        %v3985 = vsel %vm3939, %v3917, 0.0
        %v3986 = vsel %vm3939, %v3918, 0.0
        %v3987 = vadd.f32 %v3985, %v3986
        %v3988 = vrot.slane %v3987, 4
        %v3989 = vadd.f32 %v3987, %v3988
        %v3990 = vrot.slane %v3989, 2
        %v3991 = vadd.f32 %v3989, %v3990
        %v3992 = vrot.slane %v3991, 1
        %v3993 = vadd.f32 %v3991, %v3992
        %v3994 = vsel %vm3939, %v3919, 0.0
        %v3995 = vsel %vm3939, %v3920, 0.0
        %v3996 = vadd.f32 %v3994, %v3995
        %v3997 = vrot.slane %v3996, 4
        %v3998 = vadd.f32 %v3996, %v3997
        %v3999 = vrot.slane %v3998, 2
        %v4000 = vadd.f32 %v3998, %v3999
        %v4001 = vrot.slane %v4000, 1
        %v4002 = vadd.f32 %v4000, %v4001
        %v4003 = vsel %vm3939, %v3921, 0.0
        %v4004 = vsel %vm3939, %v3922, 0.0
        %v4005 = vadd.f32 %v4003, %v4004
        %v4006 = vrot.slane %v4005, 4
        %v4007 = vadd.f32 %v4005, %v4006
        %v4008 = vrot.slane %v4007, 2
        %v4009 = vadd.f32 %v4007, %v4008
        %v4010 = vrot.slane %v4009, 1
        %v4011 = vadd.f32 %v4009, %v4010
        %v4012 = vsel %vm3939, %v3923, 0.0
        %v4013 = vsel %vm3939, %v3924, 0.0
        %v4014 = vadd.f32 %v4012, %v4013
        %v4015 = vrot.slane %v4014, 4
        %v4016 = vadd.f32 %v4014, %v4015
        %v4017 = vrot.slane %v4016, 2
        %v4018 = vadd.f32 %v4016, %v4017
        %v4019 = vrot.slane %v4018, 1
        %v4020 = vadd.f32 %v4018, %v4019
        %v4021 = vsel %vm3939, %v3925, 0.0
        %v4022 = vsel %vm3939, %v3926, 0.0
        %v4023 = vadd.f32 %v4021, %v4022
        %v4024 = vrot.slane %v4023, 4
        %v4025 = vadd.f32 %v4023, %v4024
        %v4026 = vrot.slane %v4025, 2
        %v4027 = vadd.f32 %v4025, %v4026
        %v4028 = vrot.slane %v4027, 1
        %v4029 = vadd.f32 %v4027, %v4028
        %v4030 = vsel %vm3939, %v3927, 0.0
        %v4031 = vsel %vm3939, %v3928, 0.0
        %v4032 = vadd.f32 %v4030, %v4031
        %v4033 = vrot.slane %v4032, 4
        %v4034 = vadd.f32 %v4032, %v4033
        %v4035 = vrot.slane %v4034, 2
        %v4036 = vadd.f32 %v4034, %v4035
        %v4037 = vrot.slane %v4036, 1
        %v4038 = vadd.f32 %v4036, %v4037
        %v4039 = vsel %vm3939, %v3929, 0.0
        %v4040 = vsel %vm3939, %v3930, 0.0
        %v4041 = vadd.f32 %v4039, %v4040
        %v4042 = vrot.slane %v4041, 4
        %v4043 = vadd.f32 %v4041, %v4042
        %v4044 = vrot.slane %v4043, 2
        %v4045 = vadd.f32 %v4043, %v4044
        %v4046 = vrot.slane %v4045, 1
        %v4047 = vadd.f32 %v4045, %v4046
        %v4048 = vsel %vm3939, %v3931, 0.0
        %v4049 = vsel %vm3939, %v3932, 0.0
        %v4050 = vadd.f32 %v4048, %v4049
        %v4051 = vrot.slane %v4050, 4
        %v4052 = vadd.f32 %v4050, %v4051
        %v4053 = vrot.slane %v4052, 2
        %v4054 = vadd.f32 %v4052, %v4053
        %v4055 = vrot.slane %v4054, 1
        %v4056 = vadd.f32 %v4054, %v4055
        %v4057 = vsel %vm3939, %v3933, 0.0
        %v4058 = vsel %vm3939, %v3934, 0.0
        %v4059 = vadd.f32 %v4057, %v4058
        %v4060 = vrot.slane %v4059, 4
        %v4061 = vadd.f32 %v4059, %v4060
        %v4062 = vrot.slane %v4061, 2
        %v4063 = vadd.f32 %v4061, %v4062
        %v4064 = vrot.slane %v4063, 1
        %v4065 = vadd.f32 %v4063, %v4064
        %v4066 = vsel %vm3939, %v3935, 0.0
        %v4067 = vsel %vm3939, %v3936, 0.0
        %v4068 = vadd.f32 %v4066, %v4067
        %v4069 = vrot.slane %v4068, 4
        %v4070 = vadd.f32 %v4068, %v4069
        %v4071 = vrot.slane %v4070, 2
        %v4072 = vadd.f32 %v4070, %v4071
        %v4073 = vrot.slane %v4072, 1
        %v4074 = vadd.f32 %v4072, %v4073
        %v4075 = vsel %vm3939, %v3937, 0.0
        %v4076 = vsel %vm3939, %v3938, 0.0
        %v4077 = vadd.f32 %v4075, %v4076
        %v4078 = vrot.slane %v4077, 4
        %v4079 = vadd.f32 %v4077, %v4078
        %v4080 = vrot.slane %v4079, 2
        %v4081 = vadd.f32 %v4079, %v4080
        %v4082 = vrot.slane %v4081, 1
        %v4083 = vadd.f32 %v4081, %v4082
        %v4084 = vmul.f32 %v3907, %v232
        %v4085 = vmul.f32 %v3908, %v234
        %v4086 = vmul.f32 %v3909, %v232
        %v4087 = vmul.f32 %v3910, %v234
        %v4088 = vmul.f32 %v3911, %v232
        %v4089 = vmul.f32 %v3912, %v234
        %v4090 = vmul.f32 %v3913, %v232
        %v4091 = vmul.f32 %v3914, %v234
        %v4092 = vmul.f32 %v3915, %v232
        %v4093 = vmul.f32 %v3916, %v234
        %v4094 = vmul.f32 %v3917, %v232
        %v4095 = vmul.f32 %v3918, %v234
        %v4096 = vmul.f32 %v3919, %v232
        %v4097 = vmul.f32 %v3920, %v234
        %v4098 = vmul.f32 %v3921, %v232
        %v4099 = vmul.f32 %v3922, %v234
        %v4100 = vmul.f32 %v3923, %v232
        %v4101 = vmul.f32 %v3924, %v234
        %v4102 = vmul.f32 %v3925, %v232
        %v4103 = vmul.f32 %v3926, %v234
        %v4104 = vmul.f32 %v3927, %v232
        %v4105 = vmul.f32 %v3928, %v234
        %v4106 = vmul.f32 %v3929, %v232
        %v4107 = vmul.f32 %v3930, %v234
        %v4108 = vmul.f32 %v3931, %v232
        %v4109 = vmul.f32 %v3932, %v234
        %v4110 = vmul.f32 %v3933, %v232
        %v4111 = vmul.f32 %v3934, %v234
        %v4112 = vmul.f32 %v3935, %v232
        %v4113 = vmul.f32 %v3936, %v234
        %v4114 = vmul.f32 %v3937, %v232
        %v4115 = vmul.f32 %v3938, %v234
        %v4116 = vsel %vm3939, %v4084, 0.0
        %v4117 = vsel %vm3939, %v4085, 0.0
        %v4118 = vadd.f32 %v4116, %v4117
        %v4119 = vrot.slane %v4118, 4
        %v4120 = vadd.f32 %v4118, %v4119
        %v4121 = vrot.slane %v4120, 2
        %v4122 = vadd.f32 %v4120, %v4121
        %v4123 = vrot.slane %v4122, 1
        %v4124 = vadd.f32 %v4122, %v4123
        %v4125 = vsel %vm3939, %v4086, 0.0
        %v4126 = vsel %vm3939, %v4087, 0.0
        %v4127 = vadd.f32 %v4125, %v4126
        %v4128 = vrot.slane %v4127, 4
        %v4129 = vadd.f32 %v4127, %v4128
        %v4130 = vrot.slane %v4129, 2
        %v4131 = vadd.f32 %v4129, %v4130
        %v4132 = vrot.slane %v4131, 1
        %v4133 = vadd.f32 %v4131, %v4132
        %v4134 = vsel %vm3939, %v4088, 0.0
        %v4135 = vsel %vm3939, %v4089, 0.0
        %v4136 = vadd.f32 %v4134, %v4135
        %v4137 = vrot.slane %v4136, 4
        %v4138 = vadd.f32 %v4136, %v4137
        %v4139 = vrot.slane %v4138, 2
        %v4140 = vadd.f32 %v4138, %v4139
        %v4141 = vrot.slane %v4140, 1
        %v4142 = vadd.f32 %v4140, %v4141
        %v4143 = vsel %vm3939, %v4090, 0.0
        %v4144 = vsel %vm3939, %v4091, 0.0
        %v4145 = vadd.f32 %v4143, %v4144
        %v4146 = vrot.slane %v4145, 4
        %v4147 = vadd.f32 %v4145, %v4146
        %v4148 = vrot.slane %v4147, 2
        %v4149 = vadd.f32 %v4147, %v4148
        %v4150 = vrot.slane %v4149, 1
        %v4151 = vadd.f32 %v4149, %v4150
        %v4152 = vsel %vm3939, %v4092, 0.0
        %v4153 = vsel %vm3939, %v4093, 0.0
        %v4154 = vadd.f32 %v4152, %v4153
        %v4155 = vrot.slane %v4154, 4
        %v4156 = vadd.f32 %v4154, %v4155
        %v4157 = vrot.slane %v4156, 2
        %v4158 = vadd.f32 %v4156, %v4157
        %v4159 = vrot.slane %v4158, 1
        %v4160 = vadd.f32 %v4158, %v4159
        %v4161 = vsel %vm3939, %v4094, 0.0
        %v4162 = vsel %vm3939, %v4095, 0.0
        %v4163 = vadd.f32 %v4161, %v4162
        %v4164 = vrot.slane %v4163, 4
        %v4165 = vadd.f32 %v4163, %v4164
        %v4166 = vrot.slane %v4165, 2
        %v4167 = vadd.f32 %v4165, %v4166
        %v4168 = vrot.slane %v4167, 1
        %v4169 = vadd.f32 %v4167, %v4168
        %v4170 = vsel %vm3939, %v4096, 0.0
        %v4171 = vsel %vm3939, %v4097, 0.0
        %v4172 = vadd.f32 %v4170, %v4171
        %v4173 = vrot.slane %v4172, 4
        %v4174 = vadd.f32 %v4172, %v4173
        %v4175 = vrot.slane %v4174, 2
        %v4176 = vadd.f32 %v4174, %v4175
        %v4177 = vrot.slane %v4176, 1
        %v4178 = vadd.f32 %v4176, %v4177
        %v4179 = vsel %vm3939, %v4098, 0.0
        %v4180 = vsel %vm3939, %v4099, 0.0
        %v4181 = vadd.f32 %v4179, %v4180
        %v4182 = vrot.slane %v4181, 4
        %v4183 = vadd.f32 %v4181, %v4182
        %v4184 = vrot.slane %v4183, 2
        %v4185 = vadd.f32 %v4183, %v4184
        %v4186 = vrot.slane %v4185, 1
        %v4187 = vadd.f32 %v4185, %v4186
        %v4188 = vsel %vm3939, %v4100, 0.0
        %v4189 = vsel %vm3939, %v4101, 0.0
        %v4190 = vadd.f32 %v4188, %v4189
        %v4191 = vrot.slane %v4190, 4
        %v4192 = vadd.f32 %v4190, %v4191
        %v4193 = vrot.slane %v4192, 2
        %v4194 = vadd.f32 %v4192, %v4193
        %v4195 = vrot.slane %v4194, 1
        %v4196 = vadd.f32 %v4194, %v4195
        %v4197 = vsel %vm3939, %v4102, 0.0
        %v4198 = vsel %vm3939, %v4103, 0.0
        %v4199 = vadd.f32 %v4197, %v4198
        %v4200 = vrot.slane %v4199, 4
        %v4201 = vadd.f32 %v4199, %v4200
        %v4202 = vrot.slane %v4201, 2
        %v4203 = vadd.f32 %v4201, %v4202
        %v4204 = vrot.slane %v4203, 1
        %v4205 = vadd.f32 %v4203, %v4204
        %v4206 = vsel %vm3939, %v4104, 0.0
        %v4207 = vsel %vm3939, %v4105, 0.0
        %v4208 = vadd.f32 %v4206, %v4207
        %v4209 = vrot.slane %v4208, 4
        %v4210 = vadd.f32 %v4208, %v4209
        %v4211 = vrot.slane %v4210, 2
        %v4212 = vadd.f32 %v4210, %v4211
        %v4213 = vrot.slane %v4212, 1
        %v4214 = vadd.f32 %v4212, %v4213
        %v4215 = vsel %vm3939, %v4106, 0.0
        %v4216 = vsel %vm3939, %v4107, 0.0
        %v4217 = vadd.f32 %v4215, %v4216
        %v4218 = vrot.slane %v4217, 4
        %v4219 = vadd.f32 %v4217, %v4218
        %v4220 = vrot.slane %v4219, 2
        %v4221 = vadd.f32 %v4219, %v4220
        %v4222 = vrot.slane %v4221, 1
        %v4223 = vadd.f32 %v4221, %v4222
        %v4224 = vsel %vm3939, %v4108, 0.0
        %v4225 = vsel %vm3939, %v4109, 0.0
        %v4226 = vadd.f32 %v4224, %v4225
        %v4227 = vrot.slane %v4226, 4
        %v4228 = vadd.f32 %v4226, %v4227
        %v4229 = vrot.slane %v4228, 2
        %v4230 = vadd.f32 %v4228, %v4229
        %v4231 = vrot.slane %v4230, 1
        %v4232 = vadd.f32 %v4230, %v4231
        %v4233 = vsel %vm3939, %v4110, 0.0
        %v4234 = vsel %vm3939, %v4111, 0.0
        %v4235 = vadd.f32 %v4233, %v4234
        %v4236 = vrot.slane %v4235, 4
        %v4237 = vadd.f32 %v4235, %v4236
        %v4238 = vrot.slane %v4237, 2
        %v4239 = vadd.f32 %v4237, %v4238
        %v4240 = vrot.slane %v4239, 1
        %v4241 = vadd.f32 %v4239, %v4240
        %v4242 = vsel %vm3939, %v4112, 0.0
        %v4243 = vsel %vm3939, %v4113, 0.0
        %v4244 = vadd.f32 %v4242, %v4243
        %v4245 = vrot.slane %v4244, 4
        %v4246 = vadd.f32 %v4244, %v4245
        %v4247 = vrot.slane %v4246, 2
        %v4248 = vadd.f32 %v4246, %v4247
        %v4249 = vrot.slane %v4248, 1
        %v4250 = vadd.f32 %v4248, %v4249
        %v4251 = vsel %vm3939, %v4114, 0.0
        %v4252 = vsel %vm3939, %v4115, 0.0
        %v4253 = vadd.f32 %v4251, %v4252
        %v4254 = vrot.slane %v4253, 4
        %v4255 = vadd.f32 %v4253, %v4254
        %v4256 = vrot.slane %v4255, 2
        %v4257 = vadd.f32 %v4255, %v4256
        %v4258 = vrot.slane %v4257, 1
        %v4259 = vadd.f32 %v4257, %v4258
        %v4260 = vrot.slane %v232, 1
        %v4261 = vrot.slane %v232, 2
        %v4262 = vrot.slane %v232, 3
        %v4263 = vrot.slane %v232, 4
        %v4264 = vrot.slane %v232, 5
        %v4265 = vrot.slane %v232, 6
        %v4266 = vrot.slane %v232, 7
        %v4267 = vrot.slane %v234, 1
        %v4268 = vrot.slane %v234, 2
        %v4269 = vrot.slane %v234, 3
        %v4270 = vrot.slane %v234, 4
        %v4271 = vrot.slane %v234, 5
        %v4272 = vrot.slane %v234, 6
        %v4273 = vrot.slane %v234, 7
        %v4290 = vmul.f32 %v3948, %v232
        %v4291 = vmul.f32 %v3957, %v4260
        %v4292 = vmul.f32 %v3966, %v4261
        %v4293 = vmul.f32 %v3975, %v4262
        %v4294 = vmul.f32 %v3984, %v4263
        %v4295 = vmul.f32 %v3993, %v4264
        %v4296 = vmul.f32 %v4002, %v4265
        %v4297 = vmul.f32 %v4011, %v4266
        %v4298 = vmul.f32 %v4020, %v234
        %v4299 = vmul.f32 %v4029, %v4267
        %v4300 = vmul.f32 %v4038, %v4268
        %v4301 = vmul.f32 %v4047, %v4269
        %v4302 = vmul.f32 %v4056, %v4270
        %v4303 = vmul.f32 %v4065, %v4271
        %v4304 = vmul.f32 %v4074, %v4272
        %v4305 = vmul.f32 %v4083, %v4273
        %v4322 = vrot.slane %v4291, 7
        %vm4323 = vcmask 1041409
        %v4324 = vsel %vm4323, %v4322, %v4290
        %v4325 = vrot.slane %v4292, 6
        %vm4326 = vcmask 1042434
        %v4327 = vsel %vm4326, %v4325, %v4324
        %v4328 = vrot.slane %v4293, 5
        %vm4329 = vcmask 1043459
        %v4330 = vsel %vm4329, %v4328, %v4327
        %v4331 = vrot.slane %v4294, 4
        %vm4332 = vcmask 1044484
        %v4333 = vsel %vm4332, %v4331, %v4330
        %v4334 = vrot.slane %v4295, 3
        %vm4335 = vcmask 1045509
        %v4336 = vsel %vm4335, %v4334, %v4333
        %v4337 = vrot.slane %v4296, 2
        %vm4338 = vcmask 1046534
        %v4339 = vsel %vm4338, %v4337, %v4336
        %v4340 = vrot.slane %v4297, 1
        %vm4341 = vcmask 1047559
        %v4342 = vsel %vm4341, %v4340, %v4339
        %v4343 = vrot.slane %v4299, 7
        %v4344 = vsel %vm4323, %v4343, %v4298
        %v4345 = vrot.slane %v4300, 6
        %v4346 = vsel %vm4326, %v4345, %v4344
        %v4347 = vrot.slane %v4301, 5
        %v4348 = vsel %vm4329, %v4347, %v4346
        %v4349 = vrot.slane %v4302, 4
        %v4350 = vsel %vm4332, %v4349, %v4348
        %v4351 = vrot.slane %v4303, 3
        %v4352 = vsel %vm4335, %v4351, %v4350
        %v4353 = vrot.slane %v4304, 2
        %v4354 = vsel %vm4338, %v4353, %v4352
        %v4355 = vrot.slane %v4305, 1
        %v4356 = vsel %vm4341, %v4355, %v4354
        %v4359 = vadd.f32 %v232, %v4342
        %v4360 = vadd.f32 %v234, %v4356
        %v4377 = vsel %vm4323, %v4133, %v4124
        %v4378 = vsel %vm4326, %v4142, %v4377
        %v4379 = vsel %vm4329, %v4151, %v4378
        %v4380 = vsel %vm4332, %v4160, %v4379
        %v4381 = vsel %vm4335, %v4169, %v4380
        %v4382 = vsel %vm4338, %v4178, %v4381
        %v4383 = vsel %vm4341, %v4187, %v4382
        %v4384 = vsel %vm4323, %v4205, %v4196
        %v4385 = vsel %vm4326, %v4214, %v4384
        %v4386 = vsel %vm4329, %v4223, %v4385
        %v4387 = vsel %vm4332, %v4232, %v4386
        %v4388 = vsel %vm4335, %v4241, %v4387
        %v4389 = vsel %vm4338, %v4250, %v4388
        %v4390 = vsel %vm4341, %v4259, %v4389
        %v4393 = vsub.f32 %v4359, %v4383
        %v4394 = vsub.f32 %v4360, %v4390
        %4395 = vrot.lane.b32.xlu0 %v232, 127
        %v4396 = vpop.permute.xlu0 %4395
        %4397 = vrot.lane.b32.xlu0 %v234, 127
        %v4398 = vpop.permute.xlu0 %4397
        %v4401 = vmul.f32 %v3907, %v4396
        %v4402 = vmul.f32 %v3908, %v4398
        %v4403 = vmul.f32 %v3909, %v4396
        %v4404 = vmul.f32 %v3910, %v4398
        %v4405 = vmul.f32 %v3911, %v4396
        %v4406 = vmul.f32 %v3912, %v4398
        %v4407 = vmul.f32 %v3913, %v4396
        %v4408 = vmul.f32 %v3914, %v4398
        %v4409 = vmul.f32 %v3915, %v4396
        %v4410 = vmul.f32 %v3916, %v4398
        %v4411 = vmul.f32 %v3917, %v4396
        %v4412 = vmul.f32 %v3918, %v4398
        %v4413 = vmul.f32 %v3919, %v4396
        %v4414 = vmul.f32 %v3920, %v4398
        %v4415 = vmul.f32 %v3921, %v4396
        %v4416 = vmul.f32 %v3922, %v4398
        %v4417 = vmul.f32 %v3923, %v4396
        %v4418 = vmul.f32 %v3924, %v4398
        %v4419 = vmul.f32 %v3925, %v4396
        %v4420 = vmul.f32 %v3926, %v4398
        %v4421 = vmul.f32 %v3927, %v4396
        %v4422 = vmul.f32 %v3928, %v4398
        %v4423 = vmul.f32 %v3929, %v4396
        %v4424 = vmul.f32 %v3930, %v4398
        %v4425 = vmul.f32 %v3931, %v4396
        %v4426 = vmul.f32 %v3932, %v4398
        %v4427 = vmul.f32 %v3933, %v4396
        %v4428 = vmul.f32 %v3934, %v4398
        %v4429 = vmul.f32 %v3935, %v4396
        %v4430 = vmul.f32 %v3936, %v4398
        %v4431 = vmul.f32 %v3937, %v4396
        %v4432 = vmul.f32 %v3938, %v4398
        %v4433 = vsel %vm3939, %v4401, 0.0
        %v4434 = vsel %vm3939, %v4402, 0.0
        %v4435 = vadd.f32 %v4433, %v4434
        %v4436 = vrot.slane %v4435, 4
        %v4437 = vadd.f32 %v4435, %v4436
        %v4438 = vrot.slane %v4437, 2
        %v4439 = vadd.f32 %v4437, %v4438
        %v4440 = vrot.slane %v4439, 1
        %v4441 = vadd.f32 %v4439, %v4440
        %v4442 = vsel %vm3939, %v4403, 0.0
        %v4443 = vsel %vm3939, %v4404, 0.0
        %v4444 = vadd.f32 %v4442, %v4443
        %v4445 = vrot.slane %v4444, 4
        %v4446 = vadd.f32 %v4444, %v4445
        %v4447 = vrot.slane %v4446, 2
        %v4448 = vadd.f32 %v4446, %v4447
        %v4449 = vrot.slane %v4448, 1
        %v4450 = vadd.f32 %v4448, %v4449
        %v4451 = vsel %vm3939, %v4405, 0.0
        %v4452 = vsel %vm3939, %v4406, 0.0
        %v4453 = vadd.f32 %v4451, %v4452
        %v4454 = vrot.slane %v4453, 4
        %v4455 = vadd.f32 %v4453, %v4454
        %v4456 = vrot.slane %v4455, 2
        %v4457 = vadd.f32 %v4455, %v4456
        %v4458 = vrot.slane %v4457, 1
        %v4459 = vadd.f32 %v4457, %v4458
        %v4460 = vsel %vm3939, %v4407, 0.0
        %v4461 = vsel %vm3939, %v4408, 0.0
        %v4462 = vadd.f32 %v4460, %v4461
        %v4463 = vrot.slane %v4462, 4
        %v4464 = vadd.f32 %v4462, %v4463
        %v4465 = vrot.slane %v4464, 2
        %v4466 = vadd.f32 %v4464, %v4465
        %v4467 = vrot.slane %v4466, 1
        %v4468 = vadd.f32 %v4466, %v4467
        %v4469 = vsel %vm3939, %v4409, 0.0
        %v4470 = vsel %vm3939, %v4410, 0.0
        %v4471 = vadd.f32 %v4469, %v4470
        %v4472 = vrot.slane %v4471, 4
        %v4473 = vadd.f32 %v4471, %v4472
        %v4474 = vrot.slane %v4473, 2
        %v4475 = vadd.f32 %v4473, %v4474
        %v4476 = vrot.slane %v4475, 1
        %v4477 = vadd.f32 %v4475, %v4476
        %v4478 = vsel %vm3939, %v4411, 0.0
        %v4479 = vsel %vm3939, %v4412, 0.0
        %v4480 = vadd.f32 %v4478, %v4479
        %v4481 = vrot.slane %v4480, 4
        %v4482 = vadd.f32 %v4480, %v4481
        %v4483 = vrot.slane %v4482, 2
        %v4484 = vadd.f32 %v4482, %v4483
        %v4485 = vrot.slane %v4484, 1
        %v4486 = vadd.f32 %v4484, %v4485
        %v4487 = vsel %vm3939, %v4413, 0.0
        %v4488 = vsel %vm3939, %v4414, 0.0
        %v4489 = vadd.f32 %v4487, %v4488
        %v4490 = vrot.slane %v4489, 4
        %v4491 = vadd.f32 %v4489, %v4490
        %v4492 = vrot.slane %v4491, 2
        %v4493 = vadd.f32 %v4491, %v4492
        %v4494 = vrot.slane %v4493, 1
        %v4495 = vadd.f32 %v4493, %v4494
        %v4496 = vsel %vm3939, %v4415, 0.0
        %v4497 = vsel %vm3939, %v4416, 0.0
        %v4498 = vadd.f32 %v4496, %v4497
        %v4499 = vrot.slane %v4498, 4
        %v4500 = vadd.f32 %v4498, %v4499
        %v4501 = vrot.slane %v4500, 2
        %v4502 = vadd.f32 %v4500, %v4501
        %v4503 = vrot.slane %v4502, 1
        %v4504 = vadd.f32 %v4502, %v4503
        %v4505 = vsel %vm3939, %v4417, 0.0
        %v4506 = vsel %vm3939, %v4418, 0.0
        %v4507 = vadd.f32 %v4505, %v4506
        %v4508 = vrot.slane %v4507, 4
        %v4509 = vadd.f32 %v4507, %v4508
        %v4510 = vrot.slane %v4509, 2
        %v4511 = vadd.f32 %v4509, %v4510
        %v4512 = vrot.slane %v4511, 1
        %v4513 = vadd.f32 %v4511, %v4512
        %v4514 = vsel %vm3939, %v4419, 0.0
        %v4515 = vsel %vm3939, %v4420, 0.0
        %v4516 = vadd.f32 %v4514, %v4515
        %v4517 = vrot.slane %v4516, 4
        %v4518 = vadd.f32 %v4516, %v4517
        %v4519 = vrot.slane %v4518, 2
        %v4520 = vadd.f32 %v4518, %v4519
        %v4521 = vrot.slane %v4520, 1
        %v4522 = vadd.f32 %v4520, %v4521
        %v4523 = vsel %vm3939, %v4421, 0.0
        %v4524 = vsel %vm3939, %v4422, 0.0
        %v4525 = vadd.f32 %v4523, %v4524
        %v4526 = vrot.slane %v4525, 4
        %v4527 = vadd.f32 %v4525, %v4526
        %v4528 = vrot.slane %v4527, 2
        %v4529 = vadd.f32 %v4527, %v4528
        %v4530 = vrot.slane %v4529, 1
        %v4531 = vadd.f32 %v4529, %v4530
        %v4532 = vsel %vm3939, %v4423, 0.0
        %v4533 = vsel %vm3939, %v4424, 0.0
        %v4534 = vadd.f32 %v4532, %v4533
        %v4535 = vrot.slane %v4534, 4
        %v4536 = vadd.f32 %v4534, %v4535
        %v4537 = vrot.slane %v4536, 2
        %v4538 = vadd.f32 %v4536, %v4537
        %v4539 = vrot.slane %v4538, 1
        %v4540 = vadd.f32 %v4538, %v4539
        %v4541 = vsel %vm3939, %v4425, 0.0
        %v4542 = vsel %vm3939, %v4426, 0.0
        %v4543 = vadd.f32 %v4541, %v4542
        %v4544 = vrot.slane %v4543, 4
        %v4545 = vadd.f32 %v4543, %v4544
        %v4546 = vrot.slane %v4545, 2
        %v4547 = vadd.f32 %v4545, %v4546
        %v4548 = vrot.slane %v4547, 1
        %v4549 = vadd.f32 %v4547, %v4548
        %v4550 = vsel %vm3939, %v4427, 0.0
        %v4551 = vsel %vm3939, %v4428, 0.0
        %v4552 = vadd.f32 %v4550, %v4551
        %v4553 = vrot.slane %v4552, 4
        %v4554 = vadd.f32 %v4552, %v4553
        %v4555 = vrot.slane %v4554, 2
        %v4556 = vadd.f32 %v4554, %v4555
        %v4557 = vrot.slane %v4556, 1
        %v4558 = vadd.f32 %v4556, %v4557
        %v4559 = vsel %vm3939, %v4429, 0.0
        %v4560 = vsel %vm3939, %v4430, 0.0
        %v4561 = vadd.f32 %v4559, %v4560
        %v4562 = vrot.slane %v4561, 4
        %v4563 = vadd.f32 %v4561, %v4562
        %v4564 = vrot.slane %v4563, 2
        %v4565 = vadd.f32 %v4563, %v4564
        %v4566 = vrot.slane %v4565, 1
        %v4567 = vadd.f32 %v4565, %v4566
        %v4568 = vsel %vm3939, %v4431, 0.0
        %v4569 = vsel %vm3939, %v4432, 0.0
        %v4570 = vadd.f32 %v4568, %v4569
        %v4571 = vrot.slane %v4570, 4
        %v4572 = vadd.f32 %v4570, %v4571
        %v4573 = vrot.slane %v4572, 2
        %v4574 = vadd.f32 %v4572, %v4573
        %v4575 = vrot.slane %v4574, 1
        %v4576 = vadd.f32 %v4574, %v4575
        %4577 = vrot.lane.b32.xlu0 %v4260, 127
        %v4578 = vpop.permute.xlu0 %4577
        %4579 = vrot.lane.b32.xlu0 %v4261, 127
        %v4580 = vpop.permute.xlu0 %4579
        %4581 = vrot.lane.b32.xlu0 %v4262, 127
        %v4582 = vpop.permute.xlu0 %4581
        %4583 = vrot.lane.b32.xlu0 %v4263, 127
        %v4584 = vpop.permute.xlu0 %4583
        %4585 = vrot.lane.b32.xlu0 %v4264, 127
        %v4586 = vpop.permute.xlu0 %4585
        %4587 = vrot.lane.b32.xlu0 %v4265, 127
        %v4588 = vpop.permute.xlu0 %4587
        %4589 = vrot.lane.b32.xlu0 %v4266, 127
        %v4590 = vpop.permute.xlu0 %4589
        %4591 = vrot.lane.b32.xlu0 %v4267, 127
        %v4592 = vpop.permute.xlu0 %4591
        %4593 = vrot.lane.b32.xlu0 %v4268, 127
        %v4594 = vpop.permute.xlu0 %4593
        %4595 = vrot.lane.b32.xlu0 %v4269, 127
        %v4596 = vpop.permute.xlu0 %4595
        %4597 = vrot.lane.b32.xlu0 %v4270, 127
        %v4598 = vpop.permute.xlu0 %4597
        %4599 = vrot.lane.b32.xlu0 %v4271, 127
        %v4600 = vpop.permute.xlu0 %4599
        %4601 = vrot.lane.b32.xlu0 %v4272, 127
        %v4602 = vpop.permute.xlu0 %4601
        %4603 = vrot.lane.b32.xlu0 %v4273, 127
        %v4604 = vpop.permute.xlu0 %4603
        %v4619 = vmul.f32 %v3948, %v4396
        %v4620 = vmul.f32 %v3957, %v4578
        %v4621 = vmul.f32 %v3966, %v4580
        %v4622 = vmul.f32 %v3975, %v4582
        %v4623 = vmul.f32 %v3984, %v4584
        %v4624 = vmul.f32 %v3993, %v4586
        %v4625 = vmul.f32 %v4002, %v4588
        %v4626 = vmul.f32 %v4011, %v4590
        %v4627 = vmul.f32 %v4020, %v4398
        %v4628 = vmul.f32 %v4029, %v4592
        %v4629 = vmul.f32 %v4038, %v4594
        %v4630 = vmul.f32 %v4047, %v4596
        %v4631 = vmul.f32 %v4056, %v4598
        %v4632 = vmul.f32 %v4065, %v4600
        %v4633 = vmul.f32 %v4074, %v4602
        %v4634 = vmul.f32 %v4083, %v4604
        %v4651 = vrot.slane %v4620, 7
        %v4652 = vsel %vm4323, %v4651, %v4619
        %v4653 = vrot.slane %v4621, 6
        %v4654 = vsel %vm4326, %v4653, %v4652
        %v4655 = vrot.slane %v4622, 5
        %v4656 = vsel %vm4329, %v4655, %v4654
        %v4657 = vrot.slane %v4623, 4
        %v4658 = vsel %vm4332, %v4657, %v4656
        %v4659 = vrot.slane %v4624, 3
        %v4660 = vsel %vm4335, %v4659, %v4658
        %v4661 = vrot.slane %v4625, 2
        %v4662 = vsel %vm4338, %v4661, %v4660
        %v4663 = vrot.slane %v4626, 1
        %v4664 = vsel %vm4341, %v4663, %v4662
        %v4665 = vrot.slane %v4628, 7
        %v4666 = vsel %vm4323, %v4665, %v4627
        %v4667 = vrot.slane %v4629, 6
        %v4668 = vsel %vm4326, %v4667, %v4666
        %v4669 = vrot.slane %v4630, 5
        %v4670 = vsel %vm4329, %v4669, %v4668
        %v4671 = vrot.slane %v4631, 4
        %v4672 = vsel %vm4332, %v4671, %v4670
        %v4673 = vrot.slane %v4632, 3
        %v4674 = vsel %vm4335, %v4673, %v4672
        %v4675 = vrot.slane %v4633, 2
        %v4676 = vsel %vm4338, %v4675, %v4674
        %v4677 = vrot.slane %v4634, 1
        %v4678 = vsel %vm4341, %v4677, %v4676
        %4679 = vrot.lane.b32.xlu0 %v4664, 1
        %v4680 = vpop.permute.xlu0 %4679
        %4681 = vrot.lane.b32.xlu0 %v4678, 1
        %v4682 = vpop.permute.xlu0 %4681
        %v4685 = vadd.f32 %v232, %v4680
        %v4686 = vadd.f32 %v234, %v4682
        %v4703 = vsel %vm4323, %v4450, %v4441
        %v4704 = vsel %vm4326, %v4459, %v4703
        %v4705 = vsel %vm4329, %v4468, %v4704
        %v4706 = vsel %vm4332, %v4477, %v4705
        %v4707 = vsel %vm4335, %v4486, %v4706
        %v4708 = vsel %vm4338, %v4495, %v4707
        %v4709 = vsel %vm4341, %v4504, %v4708
        %v4710 = vsel %vm4323, %v4522, %v4513
        %v4711 = vsel %vm4326, %v4531, %v4710
        %v4712 = vsel %vm4329, %v4540, %v4711
        %v4713 = vsel %vm4332, %v4549, %v4712
        %v4714 = vsel %vm4335, %v4558, %v4713
        %v4715 = vsel %vm4338, %v4567, %v4714
        %v4716 = vsel %vm4341, %v4576, %v4715
        %4717 = vrot.lane.b32.xlu0 %v4709, 1
        %v4718 = vpop.permute.xlu0 %4717
        %4719 = vrot.lane.b32.xlu0 %v4716, 1
        %v4720 = vpop.permute.xlu0 %4719
        %v4723 = vsub.f32 %v4685, %v4718
        %v4724 = vsub.f32 %v4686, %v4720
        %4725 = vrot.lane.b32.xlu0 %v232, 126
        %v4726 = vpop.permute.xlu0 %4725
        %4727 = vrot.lane.b32.xlu0 %v234, 126
        %v4728 = vpop.permute.xlu0 %4727
        %v4731 = vmul.f32 %v3907, %v4726
        %v4732 = vmul.f32 %v3908, %v4728
        %v4733 = vmul.f32 %v3909, %v4726
        %v4734 = vmul.f32 %v3910, %v4728
        %v4735 = vmul.f32 %v3911, %v4726
        %v4736 = vmul.f32 %v3912, %v4728
        %v4737 = vmul.f32 %v3913, %v4726
        %v4738 = vmul.f32 %v3914, %v4728
        %v4739 = vmul.f32 %v3915, %v4726
        %v4740 = vmul.f32 %v3916, %v4728
        %v4741 = vmul.f32 %v3917, %v4726
        %v4742 = vmul.f32 %v3918, %v4728
        %v4743 = vmul.f32 %v3919, %v4726
        %v4744 = vmul.f32 %v3920, %v4728
        %v4745 = vmul.f32 %v3921, %v4726
        %v4746 = vmul.f32 %v3922, %v4728
        %v4747 = vmul.f32 %v3923, %v4726
        %v4748 = vmul.f32 %v3924, %v4728
        %v4749 = vmul.f32 %v3925, %v4726
        %v4750 = vmul.f32 %v3926, %v4728
        %v4751 = vmul.f32 %v3927, %v4726
        %v4752 = vmul.f32 %v3928, %v4728
        %v4753 = vmul.f32 %v3929, %v4726
        %v4754 = vmul.f32 %v3930, %v4728
        %v4755 = vmul.f32 %v3931, %v4726
        %v4756 = vmul.f32 %v3932, %v4728
        %v4757 = vmul.f32 %v3933, %v4726
        %v4758 = vmul.f32 %v3934, %v4728
        %v4759 = vmul.f32 %v3935, %v4726
        %v4760 = vmul.f32 %v3936, %v4728
        %v4761 = vmul.f32 %v3937, %v4726
        %v4762 = vmul.f32 %v3938, %v4728
        %v4763 = vsel %vm3939, %v4731, 0.0
        %v4764 = vsel %vm3939, %v4732, 0.0
        %v4765 = vadd.f32 %v4763, %v4764
        %v4766 = vrot.slane %v4765, 4
        %v4767 = vadd.f32 %v4765, %v4766
        %v4768 = vrot.slane %v4767, 2
        %v4769 = vadd.f32 %v4767, %v4768
        %v4770 = vrot.slane %v4769, 1
        %v4771 = vadd.f32 %v4769, %v4770
        %v4772 = vsel %vm3939, %v4733, 0.0
        %v4773 = vsel %vm3939, %v4734, 0.0
        %v4774 = vadd.f32 %v4772, %v4773
        %v4775 = vrot.slane %v4774, 4
        %v4776 = vadd.f32 %v4774, %v4775
        %v4777 = vrot.slane %v4776, 2
        %v4778 = vadd.f32 %v4776, %v4777
        %v4779 = vrot.slane %v4778, 1
        %v4780 = vadd.f32 %v4778, %v4779
        %v4781 = vsel %vm3939, %v4735, 0.0
        %v4782 = vsel %vm3939, %v4736, 0.0
        %v4783 = vadd.f32 %v4781, %v4782
        %v4784 = vrot.slane %v4783, 4
        %v4785 = vadd.f32 %v4783, %v4784
        %v4786 = vrot.slane %v4785, 2
        %v4787 = vadd.f32 %v4785, %v4786
        %v4788 = vrot.slane %v4787, 1
        %v4789 = vadd.f32 %v4787, %v4788
        %v4790 = vsel %vm3939, %v4737, 0.0
        %v4791 = vsel %vm3939, %v4738, 0.0
        %v4792 = vadd.f32 %v4790, %v4791
        %v4793 = vrot.slane %v4792, 4
        %v4794 = vadd.f32 %v4792, %v4793
        %v4795 = vrot.slane %v4794, 2
        %v4796 = vadd.f32 %v4794, %v4795
        %v4797 = vrot.slane %v4796, 1
        %v4798 = vadd.f32 %v4796, %v4797
        %v4799 = vsel %vm3939, %v4739, 0.0
        %v4800 = vsel %vm3939, %v4740, 0.0
        %v4801 = vadd.f32 %v4799, %v4800
        %v4802 = vrot.slane %v4801, 4
        %v4803 = vadd.f32 %v4801, %v4802
        %v4804 = vrot.slane %v4803, 2
        %v4805 = vadd.f32 %v4803, %v4804
        %v4806 = vrot.slane %v4805, 1
        %v4807 = vadd.f32 %v4805, %v4806
        %v4808 = vsel %vm3939, %v4741, 0.0
        %v4809 = vsel %vm3939, %v4742, 0.0
        %v4810 = vadd.f32 %v4808, %v4809
        %v4811 = vrot.slane %v4810, 4
        %v4812 = vadd.f32 %v4810, %v4811
        %v4813 = vrot.slane %v4812, 2
        %v4814 = vadd.f32 %v4812, %v4813
        %v4815 = vrot.slane %v4814, 1
        %v4816 = vadd.f32 %v4814, %v4815
        %v4817 = vsel %vm3939, %v4743, 0.0
        %v4818 = vsel %vm3939, %v4744, 0.0
        %v4819 = vadd.f32 %v4817, %v4818
        %v4820 = vrot.slane %v4819, 4
        %v4821 = vadd.f32 %v4819, %v4820
        %v4822 = vrot.slane %v4821, 2
        %v4823 = vadd.f32 %v4821, %v4822
        %v4824 = vrot.slane %v4823, 1
        %v4825 = vadd.f32 %v4823, %v4824
        %v4826 = vsel %vm3939, %v4745, 0.0
        %v4827 = vsel %vm3939, %v4746, 0.0
        %v4828 = vadd.f32 %v4826, %v4827
        %v4829 = vrot.slane %v4828, 4
        %v4830 = vadd.f32 %v4828, %v4829
        %v4831 = vrot.slane %v4830, 2
        %v4832 = vadd.f32 %v4830, %v4831
        %v4833 = vrot.slane %v4832, 1
        %v4834 = vadd.f32 %v4832, %v4833
        %v4835 = vsel %vm3939, %v4747, 0.0
        %v4836 = vsel %vm3939, %v4748, 0.0
        %v4837 = vadd.f32 %v4835, %v4836
        %v4838 = vrot.slane %v4837, 4
        %v4839 = vadd.f32 %v4837, %v4838
        %v4840 = vrot.slane %v4839, 2
        %v4841 = vadd.f32 %v4839, %v4840
        %v4842 = vrot.slane %v4841, 1
        %v4843 = vadd.f32 %v4841, %v4842
        %v4844 = vsel %vm3939, %v4749, 0.0
        %v4845 = vsel %vm3939, %v4750, 0.0
        %v4846 = vadd.f32 %v4844, %v4845
        %v4847 = vrot.slane %v4846, 4
        %v4848 = vadd.f32 %v4846, %v4847
        %v4849 = vrot.slane %v4848, 2
        %v4850 = vadd.f32 %v4848, %v4849
        %v4851 = vrot.slane %v4850, 1
        %v4852 = vadd.f32 %v4850, %v4851
        %v4853 = vsel %vm3939, %v4751, 0.0
        %v4854 = vsel %vm3939, %v4752, 0.0
        %v4855 = vadd.f32 %v4853, %v4854
        %v4856 = vrot.slane %v4855, 4
        %v4857 = vadd.f32 %v4855, %v4856
        %v4858 = vrot.slane %v4857, 2
        %v4859 = vadd.f32 %v4857, %v4858
        %v4860 = vrot.slane %v4859, 1
        %v4861 = vadd.f32 %v4859, %v4860
        %v4862 = vsel %vm3939, %v4753, 0.0
        %v4863 = vsel %vm3939, %v4754, 0.0
        %v4864 = vadd.f32 %v4862, %v4863
        %v4865 = vrot.slane %v4864, 4
        %v4866 = vadd.f32 %v4864, %v4865
        %v4867 = vrot.slane %v4866, 2
        %v4868 = vadd.f32 %v4866, %v4867
        %v4869 = vrot.slane %v4868, 1
        %v4870 = vadd.f32 %v4868, %v4869
        %v4871 = vsel %vm3939, %v4755, 0.0
        %v4872 = vsel %vm3939, %v4756, 0.0
        %v4873 = vadd.f32 %v4871, %v4872
        %v4874 = vrot.slane %v4873, 4
        %v4875 = vadd.f32 %v4873, %v4874
        %v4876 = vrot.slane %v4875, 2
        %v4877 = vadd.f32 %v4875, %v4876
        %v4878 = vrot.slane %v4877, 1
        %v4879 = vadd.f32 %v4877, %v4878
        %v4880 = vsel %vm3939, %v4757, 0.0
        %v4881 = vsel %vm3939, %v4758, 0.0
        %v4882 = vadd.f32 %v4880, %v4881
        %v4883 = vrot.slane %v4882, 4
        %v4884 = vadd.f32 %v4882, %v4883
        %v4885 = vrot.slane %v4884, 2
        %v4886 = vadd.f32 %v4884, %v4885
        %v4887 = vrot.slane %v4886, 1
        %v4888 = vadd.f32 %v4886, %v4887
        %v4889 = vsel %vm3939, %v4759, 0.0
        %v4890 = vsel %vm3939, %v4760, 0.0
        %v4891 = vadd.f32 %v4889, %v4890
        %v4892 = vrot.slane %v4891, 4
        %v4893 = vadd.f32 %v4891, %v4892
        %v4894 = vrot.slane %v4893, 2
        %v4895 = vadd.f32 %v4893, %v4894
        %v4896 = vrot.slane %v4895, 1
        %v4897 = vadd.f32 %v4895, %v4896
        %v4898 = vsel %vm3939, %v4761, 0.0
        %v4899 = vsel %vm3939, %v4762, 0.0
        %v4900 = vadd.f32 %v4898, %v4899
        %v4901 = vrot.slane %v4900, 4
        %v4902 = vadd.f32 %v4900, %v4901
        %v4903 = vrot.slane %v4902, 2
        %v4904 = vadd.f32 %v4902, %v4903
        %v4905 = vrot.slane %v4904, 1
        %v4906 = vadd.f32 %v4904, %v4905
        %4907 = vrot.lane.b32.xlu0 %v4260, 126
        %v4908 = vpop.permute.xlu0 %4907
        %4909 = vrot.lane.b32.xlu0 %v4261, 126
        %v4910 = vpop.permute.xlu0 %4909
        %4911 = vrot.lane.b32.xlu0 %v4262, 126
        %v4912 = vpop.permute.xlu0 %4911
        %4913 = vrot.lane.b32.xlu0 %v4263, 126
        %v4914 = vpop.permute.xlu0 %4913
        %4915 = vrot.lane.b32.xlu0 %v4264, 126
        %v4916 = vpop.permute.xlu0 %4915
        %4917 = vrot.lane.b32.xlu0 %v4265, 126
        %v4918 = vpop.permute.xlu0 %4917
        %4919 = vrot.lane.b32.xlu0 %v4266, 126
        %v4920 = vpop.permute.xlu0 %4919
        %4921 = vrot.lane.b32.xlu0 %v4267, 126
        %v4922 = vpop.permute.xlu0 %4921
        %4923 = vrot.lane.b32.xlu0 %v4268, 126
        %v4924 = vpop.permute.xlu0 %4923
        %4925 = vrot.lane.b32.xlu0 %v4269, 126
        %v4926 = vpop.permute.xlu0 %4925
        %4927 = vrot.lane.b32.xlu0 %v4270, 126
        %v4928 = vpop.permute.xlu0 %4927
        %4929 = vrot.lane.b32.xlu0 %v4271, 126
        %v4930 = vpop.permute.xlu0 %4929
        %4931 = vrot.lane.b32.xlu0 %v4272, 126
        %v4932 = vpop.permute.xlu0 %4931
        %4933 = vrot.lane.b32.xlu0 %v4273, 126
        %v4934 = vpop.permute.xlu0 %4933
        %v4949 = vmul.f32 %v3948, %v4726
        %v4950 = vmul.f32 %v3957, %v4908
        %v4951 = vmul.f32 %v3966, %v4910
        %v4952 = vmul.f32 %v3975, %v4912
        %v4953 = vmul.f32 %v3984, %v4914
        %v4954 = vmul.f32 %v3993, %v4916
        %v4955 = vmul.f32 %v4002, %v4918
        %v4956 = vmul.f32 %v4011, %v4920
        %v4957 = vmul.f32 %v4020, %v4728
        %v4958 = vmul.f32 %v4029, %v4922
        %v4959 = vmul.f32 %v4038, %v4924
        %v4960 = vmul.f32 %v4047, %v4926
        %v4961 = vmul.f32 %v4056, %v4928
        %v4962 = vmul.f32 %v4065, %v4930
        %v4963 = vmul.f32 %v4074, %v4932
        %v4964 = vmul.f32 %v4083, %v4934
        %v4981 = vrot.slane %v4950, 7
        %v4982 = vsel %vm4323, %v4981, %v4949
        %v4983 = vrot.slane %v4951, 6
        %v4984 = vsel %vm4326, %v4983, %v4982
        %v4985 = vrot.slane %v4952, 5
        %v4986 = vsel %vm4329, %v4985, %v4984
        %v4987 = vrot.slane %v4953, 4
        %v4988 = vsel %vm4332, %v4987, %v4986
        %v4989 = vrot.slane %v4954, 3
        %v4990 = vsel %vm4335, %v4989, %v4988
        %v4991 = vrot.slane %v4955, 2
        %v4992 = vsel %vm4338, %v4991, %v4990
        %v4993 = vrot.slane %v4956, 1
        %v4994 = vsel %vm4341, %v4993, %v4992
        %v4995 = vrot.slane %v4958, 7
        %v4996 = vsel %vm4323, %v4995, %v4957
        %v4997 = vrot.slane %v4959, 6
        %v4998 = vsel %vm4326, %v4997, %v4996
        %v4999 = vrot.slane %v4960, 5
        %v5000 = vsel %vm4329, %v4999, %v4998
        %v5001 = vrot.slane %v4961, 4
        %v5002 = vsel %vm4332, %v5001, %v5000
        %v5003 = vrot.slane %v4962, 3
        %v5004 = vsel %vm4335, %v5003, %v5002
        %v5005 = vrot.slane %v4963, 2
        %v5006 = vsel %vm4338, %v5005, %v5004
        %v5007 = vrot.slane %v4964, 1
        %v5008 = vsel %vm4341, %v5007, %v5006
        %5009 = vrot.lane.b32.xlu0 %v4994, 2
        %v5010 = vpop.permute.xlu0 %5009
        %5011 = vrot.lane.b32.xlu0 %v5008, 2
        %v5012 = vpop.permute.xlu0 %5011
        %v5015 = vadd.f32 %v232, %v5010
        %v5016 = vadd.f32 %v234, %v5012
        %v5033 = vsel %vm4323, %v4780, %v4771
        %v5034 = vsel %vm4326, %v4789, %v5033
        %v5035 = vsel %vm4329, %v4798, %v5034
        %v5036 = vsel %vm4332, %v4807, %v5035
        %v5037 = vsel %vm4335, %v4816, %v5036
        %v5038 = vsel %vm4338, %v4825, %v5037
        %v5039 = vsel %vm4341, %v4834, %v5038
        %v5040 = vsel %vm4323, %v4852, %v4843
        %v5041 = vsel %vm4326, %v4861, %v5040
        %v5042 = vsel %vm4329, %v4870, %v5041
        %v5043 = vsel %vm4332, %v4879, %v5042
        %v5044 = vsel %vm4335, %v4888, %v5043
        %v5045 = vsel %vm4338, %v4897, %v5044
        %v5046 = vsel %vm4341, %v4906, %v5045
        %5047 = vrot.lane.b32.xlu0 %v5039, 2
        %v5048 = vpop.permute.xlu0 %5047
        %5049 = vrot.lane.b32.xlu0 %v5046, 2
        %v5050 = vpop.permute.xlu0 %5049
        %v5053 = vsub.f32 %v5015, %v5048
        %v5054 = vsub.f32 %v5016, %v5050
        %v5055 = vsel %vm3939, %v4393, %v4723
        %v5056 = vsel %vm3939, %v4394, %v4724
        %vm5057 = vcmask 15360
        %v5058 = vsel %vm5057, %v5055, %v5053
        %v5059 = vsel %vm5057, %v5056, %v5054
        %v5060 = vsel %vm3255, %v3214, 0.0
        %v5061 = vsel %vm3255, %v3215, 0.0
        %v5062 = vadd.f32 %v5060, %v5061
        %v5063 = vrot.slane %v5062, 4
        %v5064 = vadd.f32 %v5062, %v5063
        %v5065 = vrot.slane %v5064, 2
        %v5066 = vadd.f32 %v5064, %v5065
        %v5067 = vrot.slane %v5066, 1
        %v5068 = vadd.f32 %v5066, %v5067
        %v5069 = vsel %vm3255, %v3216, 0.0
        %v5070 = vsel %vm3255, %v3217, 0.0
        %v5071 = vadd.f32 %v5069, %v5070
        %v5072 = vrot.slane %v5071, 4
        %v5073 = vadd.f32 %v5071, %v5072
        %v5074 = vrot.slane %v5073, 2
        %v5075 = vadd.f32 %v5073, %v5074
        %v5076 = vrot.slane %v5075, 1
        %v5077 = vadd.f32 %v5075, %v5076
        %v5078 = vsel %vm3255, %v3218, 0.0
        %v5079 = vsel %vm3255, %v3219, 0.0
        %v5080 = vadd.f32 %v5078, %v5079
        %v5081 = vrot.slane %v5080, 4
        %v5082 = vadd.f32 %v5080, %v5081
        %v5083 = vrot.slane %v5082, 2
        %v5084 = vadd.f32 %v5082, %v5083
        %v5085 = vrot.slane %v5084, 1
        %v5086 = vadd.f32 %v5084, %v5085
        %v5087 = vsel %vm3255, %v3220, 0.0
        %v5088 = vsel %vm3255, %v3221, 0.0
        %v5089 = vadd.f32 %v5087, %v5088
        %v5090 = vrot.slane %v5089, 4
        %v5091 = vadd.f32 %v5089, %v5090
        %v5092 = vrot.slane %v5091, 2
        %v5093 = vadd.f32 %v5091, %v5092
        %v5094 = vrot.slane %v5093, 1
        %v5095 = vadd.f32 %v5093, %v5094
        %v5096 = vsel %vm3255, %v3222, 0.0
        %v5097 = vsel %vm3255, %v3223, 0.0
        %v5098 = vadd.f32 %v5096, %v5097
        %v5099 = vrot.slane %v5098, 4
        %v5100 = vadd.f32 %v5098, %v5099
        %v5101 = vrot.slane %v5100, 2
        %v5102 = vadd.f32 %v5100, %v5101
        %v5103 = vrot.slane %v5102, 1
        %v5104 = vadd.f32 %v5102, %v5103
        %v5105 = vsel %vm3255, %v3224, 0.0
        %v5106 = vsel %vm3255, %v3225, 0.0
        %v5107 = vadd.f32 %v5105, %v5106
        %v5108 = vrot.slane %v5107, 4
        %v5109 = vadd.f32 %v5107, %v5108
        %v5110 = vrot.slane %v5109, 2
        %v5111 = vadd.f32 %v5109, %v5110
        %v5112 = vrot.slane %v5111, 1
        %v5113 = vadd.f32 %v5111, %v5112
        %v5114 = vsel %vm3255, %v3226, 0.0
        %v5115 = vsel %vm3255, %v3227, 0.0
        %v5116 = vadd.f32 %v5114, %v5115
        %v5117 = vrot.slane %v5116, 4
        %v5118 = vadd.f32 %v5116, %v5117
        %v5119 = vrot.slane %v5118, 2
        %v5120 = vadd.f32 %v5118, %v5119
        %v5121 = vrot.slane %v5120, 1
        %v5122 = vadd.f32 %v5120, %v5121
        %v5123 = vsel %vm3255, %v3228, 0.0
        %v5124 = vsel %vm3255, %v3229, 0.0
        %v5125 = vadd.f32 %v5123, %v5124
        %v5126 = vrot.slane %v5125, 4
        %v5127 = vadd.f32 %v5125, %v5126
        %v5128 = vrot.slane %v5127, 2
        %v5129 = vadd.f32 %v5127, %v5128
        %v5130 = vrot.slane %v5129, 1
        %v5131 = vadd.f32 %v5129, %v5130
        %v5132 = vsel %vm3255, %v3230, 0.0
        %v5133 = vsel %vm3255, %v3231, 0.0
        %v5134 = vadd.f32 %v5132, %v5133
        %v5135 = vrot.slane %v5134, 4
        %v5136 = vadd.f32 %v5134, %v5135
        %v5137 = vrot.slane %v5136, 2
        %v5138 = vadd.f32 %v5136, %v5137
        %v5139 = vrot.slane %v5138, 1
        %v5140 = vadd.f32 %v5138, %v5139
        %v5141 = vsel %vm3255, %v3232, 0.0
        %v5142 = vsel %vm3255, %v3233, 0.0
        %v5143 = vadd.f32 %v5141, %v5142
        %v5144 = vrot.slane %v5143, 4
        %v5145 = vadd.f32 %v5143, %v5144
        %v5146 = vrot.slane %v5145, 2
        %v5147 = vadd.f32 %v5145, %v5146
        %v5148 = vrot.slane %v5147, 1
        %v5149 = vadd.f32 %v5147, %v5148
        %v5150 = vsel %vm3255, %v3234, 0.0
        %v5151 = vsel %vm3255, %v3235, 0.0
        %v5152 = vadd.f32 %v5150, %v5151
        %v5153 = vrot.slane %v5152, 4
        %v5154 = vadd.f32 %v5152, %v5153
        %v5155 = vrot.slane %v5154, 2
        %v5156 = vadd.f32 %v5154, %v5155
        %v5157 = vrot.slane %v5156, 1
        %v5158 = vadd.f32 %v5156, %v5157
        %v5159 = vsel %vm3255, %v3236, 0.0
        %v5160 = vsel %vm3255, %v3237, 0.0
        %v5161 = vadd.f32 %v5159, %v5160
        %v5162 = vrot.slane %v5161, 4
        %v5163 = vadd.f32 %v5161, %v5162
        %v5164 = vrot.slane %v5163, 2
        %v5165 = vadd.f32 %v5163, %v5164
        %v5166 = vrot.slane %v5165, 1
        %v5167 = vadd.f32 %v5165, %v5166
        %v5168 = vsel %vm3255, %v3238, 0.0
        %v5169 = vsel %vm3255, %v3239, 0.0
        %v5170 = vadd.f32 %v5168, %v5169
        %v5171 = vrot.slane %v5170, 4
        %v5172 = vadd.f32 %v5170, %v5171
        %v5173 = vrot.slane %v5172, 2
        %v5174 = vadd.f32 %v5172, %v5173
        %v5175 = vrot.slane %v5174, 1
        %v5176 = vadd.f32 %v5174, %v5175
        %v5177 = vsel %vm3255, %v3240, 0.0
        %v5178 = vsel %vm3255, %v3241, 0.0
        %v5179 = vadd.f32 %v5177, %v5178
        %v5180 = vrot.slane %v5179, 4
        %v5181 = vadd.f32 %v5179, %v5180
        %v5182 = vrot.slane %v5181, 2
        %v5183 = vadd.f32 %v5181, %v5182
        %v5184 = vrot.slane %v5183, 1
        %v5185 = vadd.f32 %v5183, %v5184
        %v5186 = vsel %vm3255, %v3242, 0.0
        %v5187 = vsel %vm3255, %v3243, 0.0
        %v5188 = vadd.f32 %v5186, %v5187
        %v5189 = vrot.slane %v5188, 4
        %v5190 = vadd.f32 %v5188, %v5189
        %v5191 = vrot.slane %v5190, 2
        %v5192 = vadd.f32 %v5190, %v5191
        %v5193 = vrot.slane %v5192, 1
        %v5194 = vadd.f32 %v5192, %v5193
        %v5195 = vsel %vm3255, %v3244, 0.0
        %v5196 = vsel %vm3255, %v3245, 0.0
        %v5197 = vadd.f32 %v5195, %v5196
        %v5198 = vrot.slane %v5197, 4
        %v5199 = vadd.f32 %v5197, %v5198
        %v5200 = vrot.slane %v5199, 2
        %v5201 = vadd.f32 %v5199, %v5200
        %v5202 = vrot.slane %v5201, 1
        %v5203 = vadd.f32 %v5201, %v5202
        %v5204 = vld [vmem:[%s3 + $0x4] sm:$0x1]
        %v5205 = vld [vmem:[#allocation2 + $0x28] sm:$0xff]
        %v5206 = vld [vmem:[#allocation2 + $0x68] sm:$0xff]
        %v5207 = vld [vmem:[#allocation2 + $0xa8] sm:$0xff]
        %v5208 = vld [vmem:[#allocation2 + $0xe8] sm:$0xff]
        %v5225 = vsel %vm4323, %v5077, %v5068
        %v5226 = vsel %vm4326, %v5086, %v5225
        %v5227 = vsel %vm4329, %v5095, %v5226
        %v5228 = vsel %vm4332, %v5104, %v5227
        %v5229 = vsel %vm4335, %v5113, %v5228
        %v5230 = vsel %vm4338, %v5122, %v5229
        %v5231 = vsel %vm4341, %v5131, %v5230
        %v5232 = vsel %vm4323, %v5149, %v5140
        %v5233 = vsel %vm4326, %v5158, %v5232
        %v5234 = vsel %vm4329, %v5167, %v5233
        %v5235 = vsel %vm4332, %v5176, %v5234
        %v5236 = vsel %vm4335, %v5185, %v5235
        %v5237 = vsel %vm4338, %v5194, %v5236
        %v5238 = vsel %vm4341, %v5203, %v5237
        %v5239 = vsel %vm3255, %v5231, 0
        %v5241 = vsel %vm3255, %v5238, 0
        %5243 = vmatprep.subr.mxu0 0.0
        %5244 = vmatpush1.msra.mxu0 0.0
        %5245 = vmatprep.subr.mxu0 0.0
        %5246 = vmatpush1.msra.mxu0 0.0
        %5247 = vmatprep.subr.mxu0 0.0
        %5248 = vmatpush1.msra.mxu0 0.0
        %5249 = vmatprep.subr.mxu0 0.0
        %5250 = vmatpush1.msra.mxu0 0.0
        %5251 = vmatprep.subr.mxu0 0.0
        %5252 = vmatpush1.msra.mxu0 0.0
        %5253 = vmatprep.subr.mxu0 0.0
        %5254 = vmatpush1.msra.mxu0 0.0
        %5255 = vmatprep.subr.mxu0 0.0
        %5256 = vmatpush1.msra.mxu0 0.0
        %5257 = vmatprep.subr.mxu0 0.0
        %5258 = vmatpush1.msra.mxu0 0.0
        %5259 = vmatprep.subr.mxu0 0.0
        %5260 = vmatpush1.msra.mxu0 0.0
        %5261 = vmatprep.subr.mxu0 0.0
        %5262 = vmatpush1.msra.mxu0 0.0
        %5263 = vmatprep.subr.mxu0 0.0
        %5264 = vmatpush1.msra.mxu0 0.0
        %5265 = vmatprep.subr.mxu0 0.0
        %5266 = vmatpush1.msra.mxu0 0.0
        %5267 = vmatprep.subr.mxu0 0.0
        %5268 = vmatpush1.msra.mxu0 %v5208
        %5269 = vmatprep.subr.mxu0 0.0
        %5270 = vmatpush1.msra.mxu0 %v5207
        %5271 = vmatprep.subr.mxu0 0.0
        %5272 = vmatpush1.msra.mxu0 %v5206
        %5273 = vmatprep.subr.mxu0 0.0
        %5274 = vmatpush1.msra.mxu0 %v5205
        %5275 = vmatprep.subr.mxu0 0.0
        %5276 = vmatpush2.msra.mxu0 0.0
        %5277 = vmatprep.subr.mxu0 0.0
        %5278 = vmatpush2.msra.mxu0 0.0
        %5279 = vmatprep.subr.mxu0 0.0
        %5280 = vmatpush2.msra.mxu0 0.0
        %5281 = vmatprep.subr.mxu0 0.0
        %5282 = vmatpush2.msra.mxu0 0.0
        %5283 = vmatprep.subr.mxu0 0.0
        %5284 = vmatpush2.msra.mxu0 0.0
        %5285 = vmatprep.subr.mxu0 0.0
        %5286 = vmatpush2.msra.mxu0 0.0
        %5287 = vmatprep.subr.mxu0 0.0
        %5288 = vmatpush2.msra.mxu0 0.0
        %5289 = vmatprep.subr.mxu0 0.0
        %5290 = vmatpush2.msra.mxu0 0.0
        %5291 = vmatprep.subr.mxu0 0.0
        %5292 = vmatpush2.msra.mxu0 0.0
        %5293 = vmatprep.subr.mxu0 0.0
        %5294 = vmatpush2.msra.mxu0 0.0
        %5295 = vmatprep.subr.mxu0 0.0
        %5296 = vmatpush2.msra.mxu0 0.0
        %5297 = vmatprep.subr.mxu0 0.0
        %5298 = vmatpush2.msra.mxu0 0.0
        %5299 = vmatprep.subr.mxu0 0.0
        %5300 = vmatpush2.msra.mxu0 0.0
        %5301 = vmatprep.subr.mxu0 0.0
        %5302 = vmatpush2.msra.mxu0 0.0
        %5303 = vmatprep.subr.mxu0 0.0
        %5304 = vmatpush2.msra.mxu0 0.0
        %5305 = vmatprep.subr.mxu0 0.0
        %5306 = vmatpush2.msra.mxu0 0.0
        %5307 = vmatprep.mubr.f32.mxu0 0.0
        %5308 = vmatmul.mubr.f32.gmra.mxu0 %v5239
        %v5309 = vpop.f32.mrf.mxu0
        %v5310 = vadd.f32 %v427, %v5309
        %v5311 = vpop.f32.mrf.mxu0
        %5312 = vmatprep.mubr.f32.mxu0 0.0
        %5313 = vmatmul.mubr.f32.gmra.mxu0 %v5241
        %v5314 = vpop.f32.mrf.mxu0
        %v5315 = vadd.f32 %v432, %v5314
        %v5316 = vpop.f32.mrf.mxu0
        %5317 = vdwg.mxu0
        %v5318 = vlaneseq
        %v5319 = vshrl.u32 %v5318, 7
        %v5320 = vsub.s32 0, %v5319
        %v5321 = vrot.slane %v5204, %v5320
        %v5322 = vadd.f32 %v5310, %v5321
        %v5323 = vadd.f32 %v5315, %v5321
        %v5324 = vxor.u32 %v5322, 2147483648
        %v5325 = vxor.u32 %v5323, 2147483648
        %v5326 = vmul.f32 %v5324, 1.442695
        %v5327 = vpow.pop %v5326
        %v5328 = vmul.f32 %v5325, 1.442695
        %v5329 = vpow.pop %v5328
        %v5330 = vadd.f32 %v5327, 1.0
        %v5331 = vadd.f32 %v5329, 1.0
        %v5332 = vrcp.pop %v5330
        %v5333 = vmul.f32 1.0, %v5332
        %v5334 = vrcp.pop %v5331
        %v5335 = vmul.f32 1.0, %v5334
        %v5336 = vmul.f32 %v5322, %v5333
        %v5337 = vmul.f32 %v5323, %v5335
        %v5338 = vld [vmem:[%s3 + $0x5] sm:$0x1]
        %v5339 = vld [vmem:[#allocation2 + $0x30] sm:$0xff]
        %v5340 = vld [vmem:[#allocation2 + $0x70] sm:$0xff]
        %v5341 = vld [vmem:[#allocation2 + $0xb0] sm:$0xff]
        %v5342 = vld [vmem:[#allocation2 + $0xf0] sm:$0xff]
        %v5343 = vld [vmem:[#allocation2 + $0x130] sm:$0xff]
        %v5344 = vld [vmem:[#allocation2 + $0x170] sm:$0xff]
        %v5345 = vld [vmem:[#allocation2 + $0x1b0] sm:$0xf]
        %v5346 = vlaneseq
        %v5347 = vshrl.u32 %v5346, 7
        %v5348 = vsub.s32 0, %v5347
        %v5349 = vrot.slane %v5338, %v5348
        %vm5350 = vcmask 424960
        %v5352 = vsel %vm5350, %v5336, 0
        %v5355 = vsel %vm5350, %v5337, 0
        %vm5357 = vcmask 1043456
        %v5359 = vsel %vm5357, %v5345, 0
        %5361 = vmatprep.subr.mxu0 0.0
        %5362 = vmatpush1.msra.mxu0 0.0
        %5363 = vmatprep.subr.mxu0 0.0
        %5364 = vmatpush1.msra.mxu0 0.0
        %5365 = vmatprep.subr.mxu0 0.0
        %5366 = vmatpush1.msra.mxu0 0.0
        %5367 = vmatprep.subr.mxu0 0.0
        %5368 = vmatpush1.msra.mxu0 0.0
        %5369 = vmatprep.subr.mxu0 0.0
        %5370 = vmatpush1.msra.mxu0 0.0
        %5371 = vmatprep.subr.mxu0 0.0
        %5372 = vmatpush1.msra.mxu0 0.0
        %5373 = vmatprep.subr.mxu0 0.0
        %5374 = vmatpush1.msra.mxu0 0.0
        %5375 = vmatprep.subr.mxu0 0.0
        %5376 = vmatpush1.msra.mxu0 0.0
        %5377 = vmatprep.subr.mxu0 0.0
        %5378 = vmatpush1.msra.mxu0 0.0
        %5379 = vmatprep.subr.mxu0 0.0
        %5380 = vmatpush1.msra.mxu0 %v5359
        %5381 = vmatprep.subr.mxu0 0.0
        %5382 = vmatpush1.msra.mxu0 %v5344
        %5383 = vmatprep.subr.mxu0 0.0
        %5384 = vmatpush1.msra.mxu0 %v5343
        %5385 = vmatprep.subr.mxu0 0.0
        %5386 = vmatpush1.msra.mxu0 %v5342
        %5387 = vmatprep.subr.mxu0 0.0
        %5388 = vmatpush1.msra.mxu0 %v5341
        %5389 = vmatprep.subr.mxu0 0.0
        %5390 = vmatpush1.msra.mxu0 %v5340
        %5391 = vmatprep.subr.mxu0 0.0
        %5392 = vmatpush1.msra.mxu0 %v5339
        %5393 = vmatprep.subr.mxu0 0.0
        %5394 = vmatpush2.msra.mxu0 0.0
        %5395 = vmatprep.subr.mxu0 0.0
        %5396 = vmatpush2.msra.mxu0 0.0
        %5397 = vmatprep.subr.mxu0 0.0
        %5398 = vmatpush2.msra.mxu0 0.0
        %5399 = vmatprep.subr.mxu0 0.0
        %5400 = vmatpush2.msra.mxu0 0.0
        %5401 = vmatprep.subr.mxu0 0.0
        %5402 = vmatpush2.msra.mxu0 0.0
        %5403 = vmatprep.subr.mxu0 0.0
        %5404 = vmatpush2.msra.mxu0 0.0
        %5405 = vmatprep.subr.mxu0 0.0
        %5406 = vmatpush2.msra.mxu0 0.0
        %5407 = vmatprep.subr.mxu0 0.0
        %5408 = vmatpush2.msra.mxu0 0.0
        %5409 = vmatprep.subr.mxu0 0.0
        %5410 = vmatpush2.msra.mxu0 0.0
        %5411 = vmatprep.subr.mxu0 0.0
        %5412 = vmatpush2.msra.mxu0 0.0
        %5413 = vmatprep.subr.mxu0 0.0
        %5414 = vmatpush2.msra.mxu0 0.0
        %5415 = vmatprep.subr.mxu0 0.0
        %5416 = vmatpush2.msra.mxu0 0.0
        %5417 = vmatprep.subr.mxu0 0.0
        %5418 = vmatpush2.msra.mxu0 0.0
        %5419 = vmatprep.subr.mxu0 0.0
        %5420 = vmatpush2.msra.mxu0 0.0
        %5421 = vmatprep.subr.mxu0 0.0
        %5422 = vmatpush2.msra.mxu0 0.0
        %5423 = vmatprep.subr.mxu0 0.0
        %5424 = vmatpush2.msra.mxu0 0.0
        %5425 = vmatprep.mubr.f32.mxu0 0.0
        %5426 = vmatmul.mubr.f32.gmra.mxu0 %v5352
        %v5427 = vpop.f32.mrf.mxu0
        %v5428 = vadd.f32 %v5349, %v5427
        %v5429 = vpop.f32.mrf.mxu0
        %5430 = vmatprep.mubr.f32.mxu0 0.0
        %5431 = vmatmul.mubr.f32.gmra.mxu0 %v5355
        %v5432 = vpop.f32.mrf.mxu0
        %v5433 = vadd.f32 %v5349, %v5432
        %v5434 = vpop.f32.mrf.mxu0
        %5435 = vdwg.mxu0
        %v5436 = vadd.f32 %v5428, %v231
        %v5437 = vadd.f32 %v5433, %v233
        %v5438 = vld [vmem:[%s3 + $0x6] sm:$0x1]
        %v5439 = vld [vmem:[#allocation2 + $0x38] sm:$0xff]
        %v5440 = vld [vmem:[#allocation2 + $0x78] sm:$0xff]
        %v5441 = vld [vmem:[#allocation2 + $0xb8] sm:$0xff]
        %v5442 = vld [vmem:[#allocation2 + $0xf8] sm:$0x3]
        %v5443 = vlaneseq
        %v5444 = vshrl.u32 %v5443, 7
        %v5445 = vsub.s32 0, %v5444
        %v5446 = vrot.slane %v5438, %v5445
        %vm5447 = vcmask 211968
        %v5449 = vsel %vm5447, %v5436, 0
        %v5452 = vsel %vm5447, %v5437, 0
        %v5455 = vsel %vm2793, %v5442, 0
        %5457 = vmatprep.subr.mxu0 0.0
        %5458 = vmatpush1.msra.mxu0 0.0
        %5459 = vmatprep.subr.mxu0 0.0
        %5460 = vmatpush1.msra.mxu0 0.0
        %5461 = vmatprep.subr.mxu0 0.0
        %5462 = vmatpush1.msra.mxu0 0.0
        %5463 = vmatprep.subr.mxu0 0.0
        %5464 = vmatpush1.msra.mxu0 0.0
        %5465 = vmatprep.subr.mxu0 0.0
        %5466 = vmatpush1.msra.mxu0 0.0
        %5467 = vmatprep.subr.mxu0 0.0
        %5468 = vmatpush1.msra.mxu0 0.0
        %5469 = vmatprep.subr.mxu0 0.0
        %5470 = vmatpush1.msra.mxu0 0.0
        %5471 = vmatprep.subr.mxu0 0.0
        %5472 = vmatpush1.msra.mxu0 0.0
        %5473 = vmatprep.subr.mxu0 0.0
        %5474 = vmatpush1.msra.mxu0 0.0
        %5475 = vmatprep.subr.mxu0 0.0
        %5476 = vmatpush1.msra.mxu0 0.0
        %5477 = vmatprep.subr.mxu0 0.0
        %5478 = vmatpush1.msra.mxu0 0.0
        %5479 = vmatprep.subr.mxu0 0.0
        %5480 = vmatpush1.msra.mxu0 0.0
        %5481 = vmatprep.subr.mxu0 0.0
        %5482 = vmatpush1.msra.mxu0 %v5455
        %5483 = vmatprep.subr.mxu0 0.0
        %5484 = vmatpush1.msra.mxu0 %v5441
        %5485 = vmatprep.subr.mxu0 0.0
        %5486 = vmatpush1.msra.mxu0 %v5440
        %5487 = vmatprep.subr.mxu0 0.0
        %5488 = vmatpush1.msra.mxu0 %v5439
        %5489 = vmatprep.subr.mxu0 0.0
        %5490 = vmatpush2.msra.mxu0 0.0
        %5491 = vmatprep.subr.mxu0 0.0
        %5492 = vmatpush2.msra.mxu0 0.0
        %5493 = vmatprep.subr.mxu0 0.0
        %5494 = vmatpush2.msra.mxu0 0.0
        %5495 = vmatprep.subr.mxu0 0.0
        %5496 = vmatpush2.msra.mxu0 0.0
        %5497 = vmatprep.subr.mxu0 0.0
        %5498 = vmatpush2.msra.mxu0 0.0
        %5499 = vmatprep.subr.mxu0 0.0
        %5500 = vmatpush2.msra.mxu0 0.0
        %5501 = vmatprep.subr.mxu0 0.0
        %5502 = vmatpush2.msra.mxu0 0.0
        %5503 = vmatprep.subr.mxu0 0.0
        %5504 = vmatpush2.msra.mxu0 0.0
        %5505 = vmatprep.subr.mxu0 0.0
        %5506 = vmatpush2.msra.mxu0 0.0
        %5507 = vmatprep.subr.mxu0 0.0
        %5508 = vmatpush2.msra.mxu0 0.0
        %5509 = vmatprep.subr.mxu0 0.0
        %5510 = vmatpush2.msra.mxu0 0.0
        %5511 = vmatprep.subr.mxu0 0.0
        %5512 = vmatpush2.msra.mxu0 0.0
        %5513 = vmatprep.subr.mxu0 0.0
        %5514 = vmatpush2.msra.mxu0 0.0
        %5515 = vmatprep.subr.mxu0 0.0
        %5516 = vmatpush2.msra.mxu0 0.0
        %5517 = vmatprep.subr.mxu0 0.0
        %5518 = vmatpush2.msra.mxu0 0.0
        %5519 = vmatprep.subr.mxu0 0.0
        %5520 = vmatpush2.msra.mxu0 0.0
        %5521 = vmatprep.mubr.f32.mxu0 0.0
        %5522 = vmatmul.mubr.f32.gmra.mxu0 %v5449
        %v5523 = vpop.f32.mrf.mxu0
        %v5524 = vadd.f32 %v5446, %v5523
        %v5525 = vpop.f32.mrf.mxu0
        %5526 = vmatprep.mubr.f32.mxu0 0.0
        %5527 = vmatmul.mubr.f32.gmra.mxu0 %v5452
        %v5528 = vpop.f32.mrf.mxu0
        %v5529 = vadd.f32 %v5446, %v5528
        %v5530 = vpop.f32.mrf.mxu0
        %5531 = vdwg.mxu0
        %5532 = vst [vmem:[%s220] sm:$0xff] %v5524
        %5533 = vst [vmem:[%s220 + $0x10] sm:$0xff] %v5529
        %v5534 = vsel %vm437, %v5058, 0.0
        %v5535 = vsel %vm437, %v5059, 0.0
        %5536 = vst [vmem:[%s220 + $0x8] sm:$0xff] %v5534
        %5537 = vst [vmem:[%s220 + $0x18] sm:$0xff] %v5535
        %s5538 = sand.u32 %s121, 1
        %s5539 = scalar_lea.sflag [#allocation4], %s5538
        %s5540 = sand.u32 %s121, 1
        %s5541 = smul.addr %s5540, 32
        %s5542 = scalar_lea.vmem [#allocation5], %s5541
        // Predicated region
        $region41: #{tpu_custom_call.1} parent=35 // pred_check
          %p5543 = pneg %p131
        $region42: #{tpu_custom_call.1} parent=35 // pred_check_branch
          %5545 = sbr.rel (%p5543) target = $region44
        $region43: #{tpu_custom_call.1} parent=35 // pred_region
          %s5547 = ssub.s32 512, 512
          %5548 = vsyncadd %s5539, %s5547
          %s5549 = smul.addr %s19, 4
          %s5550 = smul.addr %s5549, 128
          %s5551 = scalar_lea.hbm %s4, %s5550
          %s5552 = sshll.u32 %s5542, 4
          %s5553 = int_to_ptr.vmem [resolvable:$true] %s5552
          %5558 = dma.vmem_to_hbm [thread:$0]  %s5553, 512, %s5551, %s5539, 256, 256, 16
        $region44: #{tpu_custom_call.1} parent=35 // pred_fallthru
          _
      $region36: #{tpu_custom_call.1} parent=5 // pred_fallthru
        _
      %p5559 = scmp.le.s32.totalorder 2, %s14
      // Predicated region
      $region45: #{tpu_custom_call.1} parent=5 // pred_check
        %p5560 = pneg %p5559
      $region46: #{tpu_custom_call.1} parent=5 // pred_check_branch
        %5562 = sbr.rel (%p5560) target = $region48
      $region47: #{tpu_custom_call.1} parent=5 // pred_region
        %s5563 = ssub.s32 %s14, 2
        // Predicated region
        $region49: #{tpu_custom_call.1} parent=47 // pred_check
          %p5564 = pneg %p137
        $region50: #{tpu_custom_call.1} parent=47 // pred_check_branch
          %5566 = sbr.rel (%p5564) target = $region52
        $region51: #{tpu_custom_call.1} parent=47 // pred_region
          %s5567 = sand.u32 %s122, 1
          %s5568 = scalar_lea.sflag [#allocation4], %s5567
          %s5569 = sand.u32 %s122, 1
          %s5570 = smul.addr %s5569, 32
          %s5571 = scalar_lea.vmem [#allocation5], %s5570
          %5572 = dma.done %s5568, 512
        $region52: #{tpu_custom_call.1} parent=47 // pred_fallthru
          _
      $region48: #{tpu_custom_call.1} parent=5 // pred_fallthru
        _
    $region6: #{tpu_custom_call.1} parent=1 // loop_footer
      %s18 = sadd.s32 1, %s14
    $region7: #{tpu_custom_call.1} parent=1 // loop_footer_branch
      %13 = sbr.rel target = $region3
    $region8: #{tpu_custom_call.1} parent=1 // loop_exit
      _
    %5573 = vsyncpa [#allocation3], 1
    %s5574 = scalar_lea.sflag [#allocation3], 1
    %5575 = vsyncpa %s5574, 1
    %5576 = vsyncpa [#allocation4], 1
    %s5577 = scalar_lea.sflag [#allocation4], 1
    %5578 = vsyncpa %s5577, 1

</llo_original>
